<compile_context>
chip_gen: v7x
topology: tpu7x:2x2x1
jax: 0.10.0
libtpu: 0.0.40
codegen_flags: <defaults>
</compile_context>

<pallas_src>
import functools

import numpy as np
import jax
import jax.numpy as jnp
from jax import lax
from jax.experimental import pallas as pl
from jax.experimental.pallas import tpu as pltpu

ALPHA = 0.01  # LeakyReLU negative slope (torch default)
STEP = 1.0    # TODO(synk): NonexpansiveBlock step/bias convention not given in the source;
              # assuming z <- z - step * K^T(LeakyReLU(K z + b)), same as the reference below.

_MIB = 1024 * 1024
_VMEM_LIMIT_CACHE = None


def _vmem_limit_bytes():
    """Generation-aware scoped-VMEM limit (v5e/v6e: 128 MiB physical, v7x: 64 MiB)."""
    global _VMEM_LIMIT_CACHE
    if _VMEM_LIMIT_CACHE is None:
        cap = 64 * _MIB
        try:
            cap = int(getattr(pltpu.get_tpu_info(), "vmem_capacity_bytes", cap))
        except Exception:
            pass
        _VMEM_LIMIT_CACHE = int(min(cap * 3 // 4, 96 * _MIB))
    return _VMEM_LIMIT_CACHE


def _compiler_params():
    return pltpu.CompilerParams(
        dimension_semantics=("parallel",),          # batch grid axis -> both TCs on v7x
        vmem_limit_bytes=_vmem_limit_bytes(),
    )


# ------------------------------- Pallas kernels ------------------------------- #

def _banded_conv(pad_ref, v, w_ref, base, *, BN, H, WC):
    """3x3 SAME conv on a lane-dense (BN*H, W*C) slab as 3 row-shifted matmuls.

    pad_ref : VMEM scratch (BN, H+2, WC) in the MXU dtype; rows 0 and H+1 are zero halo.
    v       : (BN*H, WC) f32 value (current activation).
    w_ref   : (nblocks*3, WC, WCout) packed block-banded weights; taps base..base+2.
    returns : (BN*H, WCout) f32 (accumulated in f32 on the MXU).
    """
    cdt = pad_ref.dtype
    vc = v.reshape(BN, H, WC).astype(cdt)
    pad_ref[:, 1:H + 1, :] = vc                        # interior; halo rows stay zero
    y = jnp.dot(vc.reshape(BN * H, WC), w_ref[base + 1],
                preferred_element_type=jnp.float32)    # centre tap (kh = 1), no shift
    y = y + jnp.dot(pad_ref[:, 0:H, :].reshape(BN * H, WC), w_ref[base + 0],
                    preferred_element_type=jnp.float32)   # rows h-1 (kh = 0)
    y = y + jnp.dot(pad_ref[:, 2:H + 2, :].reshape(BN * H, WC), w_ref[base + 2],
                    preferred_element_type=jnp.float32)   # rows h+1 (kh = 2)
    return y


def _run_blocks(z, pad_ref, wb_ref, wtb_ref, bb_ref, *, nblocks, BN, H, WC, step, alpha):
    """z <- z - step * K^T(LeakyReLU(K z + b)) for every block; residual path stays f32."""
    for blk in range(nblocks):
        y = _banded_conv(pad_ref, z, wb_ref, 3 * blk, BN=BN, H=H, WC=WC) + bb_ref[blk]
        a = jnp.where(y >= 0, y, alpha * y)            # LeakyReLU on full 128-lane vregs
        z = z - step * _banded_conv(pad_ref, a, wtb_ref, 3 * blk, BN=BN, H=H, WC=WC)
    return z


def _stage_kernel(*refs, nblocks, H, W, C, Cout, step, alpha, has_lift):
    """Non-final stage: [fused 1x1 lift] -> blocks -> 1x1 linear (+width pool folded)
    -> height pool; emits the next stage's lane-dense slab."""
    if has_lift:
        (x_ref, wlift_ref, blift_ref, wb_ref, wtb_ref, bb_ref,
         wlin_ref, blin_ref, o_ref, pad_ref) = refs
    else:
        (x_ref, wb_ref, wtb_ref, bb_ref, wlin_ref, blin_ref, o_ref, pad_ref) = refs
    BN = x_ref.shape[0]
    WC = W * C
    cdt = pad_ref.dtype

    # zero only the halo border rows (interior is overwritten before every conv)
    pad_ref[:, 0:1, :] = jnp.zeros((BN, 1, WC), cdt)
    pad_ref[:, H + 1:H + 2, :] = jnp.zeros((BN, 1, WC), cdt)

    if has_lift:   # fused 1x1 lift: block-diagonal lane-dense matmul on the raw image slab
        x2 = x_ref[...].reshape(BN * H, x_ref.shape[2])
        z = (jnp.dot(x2.astype(cdt), wlift_ref[...],
                     preferred_element_type=jnp.float32) + blift_ref[...])
    else:
        z = x_ref[...].reshape(BN * H, WC)

    z = _run_blocks(z, pad_ref, wb_ref, wtb_ref, bb_ref,
                    nblocks=nblocks, BN=BN, H=H, WC=WC, step=step, alpha=alpha)

    # 1x1 linear with the WIDTH half of the 2x2 avg-pool folded into the packed weight
    # (0.25 factor folded in), then HEIGHT pooling as an adjacent-row add; bias last.
    m = (W // 2) * Cout
    yw = jnp.dot(z.astype(cdt), wlin_ref[...], preferred_element_type=jnp.float32)
    t = yw.reshape(BN * H // 2, 2 * m)
    o = t[:, :m] + t[:, m:] + blin_ref[...]
    o_ref[...] = o.reshape(BN, H // 2, m).astype(o_ref.dtype)


def _final_stage_kernel(*refs, nblocks, H, W, C, step, alpha):
    """Last stage fused with the classifier tail:
    blocks -> spatial mean -> 1x1 linear -> projection.
    (mean o avg_pool2x2 o (1x1 conv + b) == Wl . mean(z) + b, exactly.)"""
    (z_ref, wb_ref, wtb_ref, bb_ref, wtail_ref, btail_ref,
     wp_ref, bp_ref, o_ref, pad_ref) = refs
    BN = z_ref.shape[0]
    WC = W * C
    cdt = pad_ref.dtype

    pad_ref[:, 0:1, :] = jnp.zeros((BN, 1, WC), cdt)
    pad_ref[:, H + 1:H + 2, :] = jnp.zeros((BN, 1, WC), cdt)

    z = _run_blocks(z_ref[...].reshape(BN * H, WC), pad_ref, wb_ref, wtb_ref, bb_ref,
                    nblocks=nblocks, BN=BN, H=H, WC=WC, step=step, alpha=alpha)

    # row-sum over H; the W-sum and the 1/(H*W) mean factor are folded into wtail.
    s = jnp.sum(z.reshape(BN, H, WC), axis=1)                               # (BN, WC)
    h = (jnp.dot(s.astype(cdt), wtail_ref[...],
                 preferred_element_type=jnp.float32) + btail_ref[...])      # (BN, C2)
    logits = (jnp.dot(h.astype(cdt), wp_ref[...],
                      preferred_element_type=jnp.float32) + bp_ref[...])    # (BN, ncls)
    o_ref[...] = logits.reshape(BN, 1, logits.shape[-1]).astype(o_ref.dtype)


# ----------------------------- pallas_call wrappers ---------------------------- #

def stage_call(z, st, lift, *, dims, batch_tile, step, alpha):
    H, W, C, Cout, nblocks = dims
    N = z.shape[0]
    BN = batch_tile
    assert N % BN == 0, "batch must be divisible by batch_tile"
    assert H % 2 == 0 and W % 2 == 0, "avg_pool2x2 requires even spatial dims"
    WC = W * C
    m = (W // 2) * Cout
    has_lift = lift is not None
    mxu_dtype = st["wb"].dtype
    lane_in = z.shape[2]

    kern = functools.partial(_stage_kernel, nblocks=nblocks, H=H, W=W, C=C, Cout=Cout,
                             step=step, alpha=alpha, has_lift=has_lift)

    args = [z]
    in_specs = [pl.BlockSpec((BN, H, lane_in), lambda i: (i, 0, 0))]
    if has_lift:
        wlift, blift = lift
        args += [wlift, blift]
        in_specs += [pl.BlockSpec(wlift.shape, lambda i: (0, 0)),
                     pl.BlockSpec(blift.shape, lambda i: (0, 0))]
    args += [st["wb"], st["wtb"], st["bb"], st["wlin"], st["blin"]]
    in_specs += [pl.BlockSpec(st["wb"].shape, lambda i: (0, 0, 0)),
                 pl.BlockSpec(st["wtb"].shape, lambda i: (0, 0, 0)),
                 pl.BlockSpec(st["bb"].shape, lambda i: (0, 0, 0)),
                 pl.BlockSpec(st["wlin"].shape, lambda i: (0, 0)),
                 pl.BlockSpec(st["blin"].shape, lambda i: (0, 0))]

    return pl.pallas_call(
        kern,
        out_shape=jax.ShapeDtypeStruct((N, H // 2, m), jnp.float32),
        grid_spec=pltpu.PrefetchScalarGridSpec(
            num_scalar_prefetch=0,
            grid=(N // BN,),
            in_specs=in_specs,
            out_specs=pl.BlockSpec((BN, H // 2, m), lambda i: (i, 0, 0)),
            scratch_shapes=[pltpu.VMEM((BN, H + 2, WC), mxu_dtype)]),
        compiler_params=_compiler_params(),
    )(*args)


def final_stage_call(z, st, project, *, dims, batch_tile, step, alpha):
    H, W, C, _cout, nblocks = dims
    N = z.shape[0]
    BN = batch_tile
    assert N % BN == 0
    WC = W * C
    wp, bp = project
    ncls = wp.shape[1]
    mxu_dtype = st["wb"].dtype

    kern = functools.partial(_final_stage_kernel, nblocks=nblocks, H=H, W=W, C=C,
                             step=step, alpha=alpha)
    args = [z, st["wb"], st["wtb"], st["bb"], st["wtail"], st["btail"], wp, bp]
    in_specs = [pl.BlockSpec((BN, H, WC), lambda i: (i, 0, 0)),
                pl.BlockSpec(st["wb"].shape, lambda i: (0, 0, 0)),
                pl.BlockSpec(st["wtb"].shape, lambda i: (0, 0, 0)),
                pl.BlockSpec(st["bb"].shape, lambda i: (0, 0, 0)),
                pl.BlockSpec(st["wtail"].shape, lambda i: (0, 0)),
                pl.BlockSpec(st["btail"].shape, lambda i: (0, 0)),
                pl.BlockSpec(wp.shape, lambda i: (0, 0)),
                pl.BlockSpec(bp.shape, lambda i: (0, 0))]

    return pl.pallas_call(
        kern,
        out_shape=jax.ShapeDtypeStruct((N, 1, ncls), jnp.float32),
        grid_spec=pltpu.PrefetchScalarGridSpec(
            num_scalar_prefetch=0,
            grid=(N // BN,),
            in_specs=in_specs,
            out_specs=pl.BlockSpec((BN, 1, ncls), lambda i: (i, 0, 0)),
            scratch_shapes=[pltpu.VMEM((BN, H + 2, WC), mxu_dtype)]),
        compiler_params=_compiler_params(),
    )(*args)


# --------------------------- parameter setup (plain JAX) ----------------------- #

def _conv_same(v, w):
    return lax.conv_general_dilated(
        v, w, window_strides=(1, 1), padding="SAME",
        dimension_numbers=("NHWC", "HWIO", "NHWC"))


def spectral_norm_conv(w, input_size, key, iters=20):
    """Power iteration on the (zero-padded, stride-1) conv operator at input_size."""
    H, W_ = input_size
    cin = w.shape[2]
    v = jax.random.normal(key, (1, H, W_, cin), jnp.float32)
    v = v / (jnp.linalg.norm(v) + 1e-12)
    f = lambda u: _conv_same(u, w)
    for _ in range(iters):
        u = f(v)
        (vt,) = jax.vjp(f, v)[1](u)
        v = vt / (jnp.linalg.norm(vt) + 1e-12)
    return jnp.linalg.norm(f(v)) + 1e-12


def spectral_norm_matrix(w, key, iters=20):
    v = jax.random.normal(key, (w.shape[0],), jnp.float32)
    v = v / (jnp.linalg.norm(v) + 1e-12)
    for _ in range(iters):
        u = v @ w
        vt = u @ w.T
        v = vt / (jnp.linalg.norm(vt) + 1e-12)
    return jnp.linalg.norm(v @ w) + 1e-12


def init_params(key, *, in_channels, n_classes, int_channels, blocks_per_stage,
                stages, factor, input_size):
    """Raw (PyTorch-equivalent) parameters with spectral normalisation applied."""
    keys = iter(jax.random.split(key, 1024))
    H0, W0 = input_size
    sizes = [(H0 // 2 ** i, W0 // 2 ** i) for i in range(stages)]
    raw = {}

    w = jax.random.normal(next(keys), (1, 1, in_channels, int_channels), jnp.float32) * 0.2
    w = w / spectral_norm_conv(w, (H0, W0), next(keys))
    b = jax.random.normal(next(keys), (1, int_channels), jnp.float32) * 0.05
    raw["lift"] = (w, b)

    raw["blocks"], raw["linears"] = [], []
    for i in range(stages):
        c = factor ** i * int_channels
        stage = []
        for _ in range(blocks_per_stage):
            wk = jax.random.normal(next(keys), (3, 3, c, c), jnp.float32) * 0.2
            wk = wk / spectral_norm_conv(wk, sizes[i], next(keys))
            bk = jax.random.normal(next(keys), (1, c), jnp.float32) * 0.05
            stage.append((wk, bk))
        raw["blocks"].append(stage)

        cout = factor ** (i + 1) * int_channels
        wl = jax.random.normal(next(keys), (1, 1, c, cout), jnp.float32) * 0.2
        wl = wl / spectral_norm_conv(wl, sizes[i], next(keys))
        bl = jax.random.normal(next(keys), (1, cout), jnp.float32) * 0.05
        raw["linears"].append((wl.reshape(c, cout), bl))

    cfin = factor ** stages * int_channels
    wp = jax.random.normal(next(keys), (cfin, n_classes), jnp.float32) * 0.2
    wp = wp / spectral_norm_matrix(wp, next(keys))
    bp = jax.random.normal(next(keys), (1, n_classes), jnp.float32) * 0.05
    raw["project"] = (wp, bp)
    return raw


def pack_params(raw, *, input_size, mxu_dtype=jnp.bfloat16):
    """One-time hoisted parameter prep for the kernels:
       - block-diagonal lane-dense lift weight (1x1 conv on the (N*H, W*Cin) slab)
       - block-banded per-tap weights (W*C, W*C) for each 3x3 conv and its adjoint
       - per-stage 1x1 linear with the width half of the 2x2 avg-pool folded in
       - final-stage tail weight with the spatial mean folded in
       - per-channel biases tiled to lane-dense width (kept in f32).
       Returns (params_pytree_of_arrays, static_dims_tuple)."""
    H0, W0 = input_size
    md = mxu_dtype

    def band3x3(w_np, W):
        cin, cout = w_np.shape[2], w_np.shape[3]
        B = np.zeros((3, W * cin, W * cout), np.float32)
        for kh in range(3):
            for wout in range(W):
                for kw in range(3):
                    win = wout + kw - 1
                    if 0 <= win < W:
                        B[kh, win * cin:(win + 1) * cin,
                          wout * cout:(wout + 1) * cout] = w_np[kh, kw]
        return B

    params = {"stage": []}
    dims = []

    wlf, blf = raw["lift"]
    cin, c0 = wlf.shape[2], wlf.shape[3]
    w2 = np.asarray(wlf, np.float32).reshape(cin, c0)
    params["lift"] = (
        jnp.asarray(np.kron(np.eye(W0, dtype=np.float32), w2), md),          # (W0*Cin, W0*C0)
        jnp.asarray(np.tile(np.asarray(blf, np.float32).reshape(1, c0), (1, W0)),
                    jnp.float32),                                            # (1, W0*C0)
    )

    nst = len(raw["blocks"])
    H, W = H0, W0
    for i in range(nst):
        stage_blocks = raw["blocks"][i]
        c = stage_blocks[0][0].shape[2]
        wb_list, wtb_list, bb_list = [], [], []
        for (wk, bk) in stage_blocks:
            wk_np = np.asarray(wk, np.float32)
            wt_np = np.transpose(np.flip(wk_np, axis=(0, 1)), (0, 1, 3, 2))  # adjoint conv
            wb_list.append(band3x3(wk_np, W))
            wtb_list.append(band3x3(wt_np, W))
            bb_list.append(np.tile(np.asarray(bk, np.float32).reshape(1, c), (1, W)))
        st = {
            "wb": jnp.asarray(np.concatenate(wb_list, axis=0), md),          # (nb*3, WC, WC)
            "wtb": jnp.asarray(np.concatenate(wtb_list, axis=0), md),
            "bb": jnp.asarray(np.stack(bb_list, axis=0), jnp.float32),       # (nb, 1, WC)
        }

        wlin, blin = raw["linears"][i]
        wlin_np = np.asarray(wlin, np.float32)
        blin_np = np.asarray(blin, np.float32)
        cout = wlin_np.shape[1]
        if i < nst - 1:
            # 1x1 linear + width-avg-pool (0.25 of the full 2x2 factor folded in)
            Bm = np.zeros((W * c, (W // 2) * cout), np.float32)
            for w2o in range(W // 2):
                for dw in range(2):
                    win = 2 * w2o + dw
                    Bm[win * c:(win + 1) * c, w2o * cout:(w2o + 1) * cout] = 0.25 * wlin_np
            st["wlin"] = jnp.asarray(Bm, md)
            st["blin"] = jnp.asarray(np.tile(blin_np, (1, W // 2)), jnp.float32)
        else:
            # mean o avg_pool2x2 o (1x1 conv + b) == Wl . mean(z) + b : fold W-sum and 1/(H*W)
            Bt = np.tile(wlin_np, (W, 1)) / float(H * W)                     # (W*c, cout)
            st["wtail"] = jnp.asarray(Bt, md)
            st["btail"] = jnp.asarray(blin_np, jnp.float32)

        params["stage"].append(st)
        dims.append((H, W, c, cout, len(stage_blocks)))
        H, W = H // 2, W // 2

    wp, bp = raw["project"]
    params["project"] = (jnp.asarray(np.asarray(wp, np.float32), md),
                         jnp.asarray(np.asarray(bp, np.float32), jnp.float32))
    return params, tuple(dims)


# ------------------------------------ forward ---------------------------------- #

def forward(params, x_nchw, *, dims, batch_tile=1, step=STEP, alpha=ALPHA):
    """dims: static tuple of (H, W, C, Cout, nblocks) per stage."""
    x = jnp.transpose(x_nchw, (0, 2, 3, 1)).astype(jnp.float32)   # NCHW -> NHWC
    N, H0, W0, Cin = x.shape
    assert (H0, W0) == (dims[0][0], dims[0][1])
    nstages = len(dims)
    assert nstages >= 2, "fused lift requires stages >= 2"
    z = x.reshape(N, H0, W0 * Cin)                                # lane-dense image slab
    for i in range(nstages - 1):
        z = stage_call(z, params["stage"][i], params["lift"] if i == 0 else None,
                       dims=dims[i], batch_tile=batch_tile, step=step, alpha=alpha)
    logits = final_stage_call(z, params["stage"][-1], params["project"],
                              dims=dims[-1], batch_tile=batch_tile, step=step, alpha=alpha)
    return logits[:, 0, :]


# ------------------------- pure-JAX reference (for checking) ------------------- #

def reference_forward(raw, x_nchw, *, stages, step=STEP, alpha=ALPHA):
    x = jnp.transpose(x_nchw, (0, 2, 3, 1)).astype(jnp.float32)
    w, b = raw["lift"]
    z = _conv_same(x, w) + b.reshape(1, 1, 1, -1)
    for i in range(stages):
        for (wk, bk) in raw["blocks"][i]:
            a = _conv_same(z, wk) + bk.reshape(1, 1, 1, -1)
            a = jnp.where(a >= 0, a, alpha * a)
            wt = jnp.transpose(jnp.flip(wk, axis=(0, 1)), (0, 1, 3, 2))
            z = z - step * _conv_same(a, wt)
        wl, bl = raw["linears"][i]
        z = jnp.einsum("nhwc,cd->nhwd", z, wl) + bl.reshape(1, 1, 1, -1)
        n_, h_, w_, c_ = z.shape
        z = z.reshape(n_, h_ // 2, 2, w_ // 2, 2, c_).mean(axis=(2, 4))
    zm = z.mean(axis=(1, 2))
    wp, bp = raw["project"]
    return zm @ wp + bp


# -------------------------------------- main ------------------------------------ #

if __name__ == "__main__":
    batch = 2
    in_channels = 3
    n_classes = 10
    int_channels = 8
    blocks_per_stage = 2
    stages = 2
    factor = 2
    input_size = (16, 16)

    key = jax.random.PRNGKey(0)
    kp, kx = jax.random.split(key)
    raw = init_params(kp, in_channels=in_channels, n_classes=n_classes,
                      int_channels=int_channels, blocks_per_stage=blocks_per_stage,
                      stages=stages, factor=factor, input_size=input_size)
    x = jax.random.normal(kx, (batch, in_channels) + input_size, jnp.float32)   # NCHW

    ref = np.asarray(reference_forward(raw, x, stages=stages))

    fwd = jax.jit(forward, static_argnames=("dims", "batch_tile", "step", "alpha"))

    # f32-MXU path: tight numerical check against the pure-JAX lax.conv reference.
    params32, dims = pack_params(raw, input_size=input_size, mxu_dtype=jnp.float32)
    out32 = jax.block_until_ready(fwd(params32, x, dims=dims))
    assert out32.shape == (batch, n_classes)
    assert bool(jnp.all(jnp.isfinite(out32)))
    np.testing.assert_allclose(np.asarray(out32), ref, rtol=2e-3, atol=2e-3)

    # bf16-MXU path (perf configuration for v6e/v7x; elementwise / residual math stays f32).
    params_bf, _ = pack_params(raw, input_size=input_size, mxu_dtype=jnp.bfloat16)
    out_bf = jax.block_until_ready(fwd(params_bf, x, dims=dims))
    assert out_bf.shape == (batch, n_classes)
    assert bool(jnp.all(jnp.isfinite(out_bf)))
    np.testing.assert_allclose(np.asarray(out_bf), np.asarray(out32), rtol=0.1, atol=0.1)

    print("KERNEL_OK")
</pallas_src>

<mosaic_0001>
module attributes {stable_mosaic.version = 11 : i64} {
  func.func @_stage_kernel(%arg0: i32, %arg1: memref<1x16x48xf32, #tpu.memory_space<vmem>>, %arg2: memref<48x128xf32, #tpu.memory_space<vmem>>, %arg3: memref<1x128xf32, #tpu.memory_space<vmem>>, %arg4: memref<6x128x128xf32, #tpu.memory_space<vmem>>, %arg5: memref<6x128x128xf32, #tpu.memory_space<vmem>>, %arg6: memref<2x1x128xf32, #tpu.memory_space<vmem>>, %arg7: memref<128x128xf32, #tpu.memory_space<vmem>>, %arg8: memref<1x128xf32, #tpu.memory_space<vmem>>, %arg9: memref<1x8x128xf32, #tpu.memory_space<vmem>>, %arg10: memref<1x18x128xf32, #tpu.memory_space<vmem>>) attributes {dimension_semantics = [#tpu.dimension_semantics<parallel>], iteration_bounds = array<i64: 2>, scalar_prefetch = 0 : i64, scratch_operands = 1 : i64, tpu.core_type = #tpu.core_type<tc>, window_params = [{transform_indices = @transform_0, window_bounds = array<i64: 1, 16, 48>}, {pipeline_mode = #tpu.pipeline_mode<synchronous>, transform_indices = @transform_1, window_bounds = array<i64: 48, 128>}, {pipeline_mode = #tpu.pipeline_mode<synchronous>, transform_indices = @transform_2, window_bounds = array<i64: 1, 128>}, {pipeline_mode = #tpu.pipeline_mode<synchronous>, transform_indices = @transform_3, window_bounds = array<i64: 6, 128, 128>}, {pipeline_mode = #tpu.pipeline_mode<synchronous>, transform_indices = @transform_4, window_bounds = array<i64: 6, 128, 128>}, {pipeline_mode = #tpu.pipeline_mode<synchronous>, transform_indices = @transform_5, window_bounds = array<i64: 2, 1, 128>}, {pipeline_mode = #tpu.pipeline_mode<synchronous>, transform_indices = @transform_6, window_bounds = array<i64: 128, 128>}, {pipeline_mode = #tpu.pipeline_mode<synchronous>, transform_indices = @transform_7, window_bounds = array<i64: 1, 128>}, {transform_indices = @transform_8, window_bounds = array<i64: 1, 8, 128>}]} {
    %cst = arith.constant 0.000000e+00 : f32
    %0 = vector.broadcast %cst : f32 to vector<1x1x128xf32>
    %c0 = arith.constant 0 : index
    %c0_0 = arith.constant 0 : index
    %c0_1 = arith.constant 0 : index
    %1 = vector.load %arg10[%c0, %c0_0, %c0_1] : memref<1x18x128xf32, #tpu.memory_space<vmem>>, vector<1x1x128xf32>
    tpu.vector_store %arg10[%c0, %c0_0, %c0_1], %0 {strides = array<i32>} : memref<1x18x128xf32, #tpu.memory_space<vmem>>, vector<1x1x128xf32>,
    %cst_2 = arith.constant 0.000000e+00 : f32
    %2 = vector.broadcast %cst_2 : f32 to vector<1x1x128xf32>
    %c0_3 = arith.constant 0 : index
    %c17 = arith.constant 17 : index
    %c0_4 = arith.constant 0 : index
    %3 = vector.load %arg10[%c0_3, %c17, %c0_4] : memref<1x18x128xf32, #tpu.memory_space<vmem>>, vector<1x1x128xf32>
    tpu.vector_store %arg10[%c0_3, %c17, %c0_4], %2 {strides = array<i32>} : memref<1x18x128xf32, #tpu.memory_space<vmem>>, vector<1x1x128xf32>,
    %c0_5 = arith.constant 0 : index
    %c0_6 = arith.constant 0 : index
    %c0_7 = arith.constant 0 : index
    %4 = vector.load %arg1[%c0_5, %c0_6, %c0_7] : memref<1x16x48xf32, #tpu.memory_space<vmem>>, vector<1x16x48xf32>
    %5 = vector.shape_cast %4 : vector<1x16x48xf32> to vector<16x48xf32>
    %c0_8 = arith.constant 0 : index
    %c0_9 = arith.constant 0 : index
    %6 = vector.load %arg2[%c0_8, %c0_9] : memref<48x128xf32, #tpu.memory_space<vmem>>, vector<48x128xf32>
    %cst_10 = arith.constant dense<0.000000e+00> : vector<16x128xf32>
    %7 = tpu.matmul %5, %6, %cst_10 {dimension_numbers = #tpu.dot_dimension_numbers<[1], [0], [0], [1], [0, 0, 1, 1], [], []>} : vector<16x48xf32>, vector<48x128xf32>, vector<16x128xf32> -> vector<16x128xf32>
    %c0_11 = arith.constant 0 : index
    %c0_12 = arith.constant 0 : index
    %8 = vector.load %arg3[%c0_11, %c0_12] : memref<1x128xf32, #tpu.memory_space<vmem>>, vector<1x128xf32>
    %9 = vector.broadcast %8 : vector<1x128xf32> to vector<16x128xf32>
    %10 = arith.addf %7, %9 : vector<16x128xf32>
    %11 = vector.shape_cast %10 : vector<16x128xf32> to vector<1x16x128xf32>
    %c0_13 = arith.constant 0 : index
    %c1 = arith.constant 1 : index
    %c0_14 = arith.constant 0 : index
    %12 = vector.load %arg10[%c0_13, %c1, %c0_14] : memref<1x18x128xf32, #tpu.memory_space<vmem>>, vector<1x16x128xf32>
    tpu.vector_store %arg10[%c0_13, %c1, %c0_14], %11 {strides = array<i32>} : memref<1x18x128xf32, #tpu.memory_space<vmem>>, vector<1x16x128xf32>,
    %13 = vector.shape_cast %11 : vector<1x16x128xf32> to vector<16x128xf32>
    %c1_15 = arith.constant 1 : index
    %c0_16 = arith.constant 0 : index
    %c0_17 = arith.constant 0 : index
    %14 = vector.load %arg4[%c1_15, %c0_16, %c0_17] : memref<6x128x128xf32, #tpu.memory_space<vmem>>, vector<1x128x128xf32>
    %15 = vector.shape_cast %14 : vector<1x128x128xf32> to vector<128x128xf32>
    %cst_18 = arith.constant dense<0.000000e+00> : vector<16x128xf32>
    %16 = tpu.matmul %13, %15, %cst_18 {dimension_numbers = #tpu.dot_dimension_numbers<[1], [0], [0], [1], [0, 0, 1, 1], [], []>} : vector<16x128xf32>, vector<128x128xf32>, vector<16x128xf32> -> vector<16x128xf32>
    %c0_19 = arith.constant 0 : index
    %c0_20 = arith.constant 0 : index
    %c0_21 = arith.constant 0 : index
    %17 = vector.load %arg10[%c0_19, %c0_20, %c0_21] : memref<1x18x128xf32, #tpu.memory_space<vmem>>, vector<1x16x128xf32>
    %18 = vector.shape_cast %17 : vector<1x16x128xf32> to vector<16x128xf32>
    %c0_22 = arith.constant 0 : index
    %c0_23 = arith.constant 0 : index
    %c0_24 = arith.constant 0 : index
    %19 = vector.load %arg4[%c0_22, %c0_23, %c0_24] : memref<6x128x128xf32, #tpu.memory_space<vmem>>, vector<1x128x128xf32>
    %20 = vector.shape_cast %19 : vector<1x128x128xf32> to vector<128x128xf32>
    %cst_25 = arith.constant dense<0.000000e+00> : vector<16x128xf32>
    %21 = tpu.matmul %18, %20, %cst_25 {dimension_numbers = #tpu.dot_dimension_numbers<[1], [0], [0], [1], [0, 0, 1, 1], [], []>} : vector<16x128xf32>, vector<128x128xf32>, vector<16x128xf32> -> vector<16x128xf32>
    %22 = arith.addf %16, %21 : vector<16x128xf32>
    %c0_26 = arith.constant 0 : index
    %c2 = arith.constant 2 : index
    %c0_27 = arith.constant 0 : index
    %23 = vector.load %arg10[%c0_26, %c2, %c0_27] : memref<1x18x128xf32, #tpu.memory_space<vmem>>, vector<1x16x128xf32>
    %24 = vector.shape_cast %23 : vector<1x16x128xf32> to vector<16x128xf32>
    %c2_28 = arith.constant 2 : index
    %c0_29 = arith.constant 0 : index
    %c0_30 = arith.constant 0 : index
    %25 = vector.load %arg4[%c2_28, %c0_29, %c0_30] : memref<6x128x128xf32, #tpu.memory_space<vmem>>, vector<1x128x128xf32>
    %26 = vector.shape_cast %25 : vector<1x128x128xf32> to vector<128x128xf32>
    %cst_31 = arith.constant dense<0.000000e+00> : vector<16x128xf32>
    %27 = tpu.matmul %24, %26, %cst_31 {dimension_numbers = #tpu.dot_dimension_numbers<[1], [0], [0], [1], [0, 0, 1, 1], [], []>} : vector<16x128xf32>, vector<128x128xf32>, vector<16x128xf32> -> vector<16x128xf32>
    %28 = arith.addf %22, %27 : vector<16x128xf32>
    %c0_32 = arith.constant 0 : index
    %c0_33 = arith.constant 0 : index
    %c0_34 = arith.constant 0 : index
    %29 = vector.load %arg6[%c0_32, %c0_33, %c0_34] : memref<2x1x128xf32, #tpu.memory_space<vmem>>, vector<1x1x128xf32>
    %30 = vector.shape_cast %29 : vector<1x1x128xf32> to vector<1x128xf32>
    %31 = vector.broadcast %30 : vector<1x128xf32> to vector<16x128xf32>
    %32 = arith.addf %28, %31 : vector<16x128xf32>
    %cst_35 = arith.constant 0.000000e+00 : f32
    %33 = vector.broadcast %cst_35 : f32 to vector<16x128xf32>
    %34 = arith.cmpf oge, %32, %33 : vector<16x128xf32>
    %cst_36 = arith.constant 0.00999999977 : f32
    %35 = vector.broadcast %cst_36 : f32 to vector<16x128xf32>
    %36 = arith.mulf %35, %32 : vector<16x128xf32>
    %37 = arith.select %34, %32, %36 : vector<16x128xi1>, vector<16x128xf32>
    %38 = vector.shape_cast %37 : vector<16x128xf32> to vector<1x16x128xf32>
    %c0_37 = arith.constant 0 : index
    %c1_38 = arith.constant 1 : index
    %c0_39 = arith.constant 0 : index
    %39 = vector.load %arg10[%c0_37, %c1_38, %c0_39] : memref<1x18x128xf32, #tpu.memory_space<vmem>>, vector<1x16x128xf32>
    tpu.vector_store %arg10[%c0_37, %c1_38, %c0_39], %38 {strides = array<i32>} : memref<1x18x128xf32, #tpu.memory_space<vmem>>, vector<1x16x128xf32>,
    %40 = vector.shape_cast %38 : vector<1x16x128xf32> to vector<16x128xf32>
    %c1_40 = arith.constant 1 : index
    %c0_41 = arith.constant 0 : index
    %c0_42 = arith.constant 0 : index
    %41 = vector.load %arg5[%c1_40, %c0_41, %c0_42] : memref<6x128x128xf32, #tpu.memory_space<vmem>>, vector<1x128x128xf32>
    %42 = vector.shape_cast %41 : vector<1x128x128xf32> to vector<128x128xf32>
    %cst_43 = arith.constant dense<0.000000e+00> : vector<16x128xf32>
    %43 = tpu.matmul %40, %42, %cst_43 {dimension_numbers = #tpu.dot_dimension_numbers<[1], [0], [0], [1], [0, 0, 1, 1], [], []>} : vector<16x128xf32>, vector<128x128xf32>, vector<16x128xf32> -> vector<16x128xf32>
    %c0_44 = arith.constant 0 : index
    %c0_45 = arith.constant 0 : index
    %c0_46 = arith.constant 0 : index
    %44 = vector.load %arg10[%c0_44, %c0_45, %c0_46] : memref<1x18x128xf32, #tpu.memory_space<vmem>>, vector<1x16x128xf32>
    %45 = vector.shape_cast %44 : vector<1x16x128xf32> to vector<16x128xf32>
    %c0_47 = arith.constant 0 : index
    %c0_48 = arith.constant 0 : index
    %c0_49 = arith.constant 0 : index
    %46 = vector.load %arg5[%c0_47, %c0_48, %c0_49] : memref<6x128x128xf32, #tpu.memory_space<vmem>>, vector<1x128x128xf32>
    %47 = vector.shape_cast %46 : vector<1x128x128xf32> to vector<128x128xf32>
    %cst_50 = arith.constant dense<0.000000e+00> : vector<16x128xf32>
    %48 = tpu.matmul %45, %47, %cst_50 {dimension_numbers = #tpu.dot_dimension_numbers<[1], [0], [0], [1], [0, 0, 1, 1], [], []>} : vector<16x128xf32>, vector<128x128xf32>, vector<16x128xf32> -> vector<16x128xf32>
    %49 = arith.addf %43, %48 : vector<16x128xf32>
    %c0_51 = arith.constant 0 : index
    %c2_52 = arith.constant 2 : index
    %c0_53 = arith.constant 0 : index
    %50 = vector.load %arg10[%c0_51, %c2_52, %c0_53] : memref<1x18x128xf32, #tpu.memory_space<vmem>>, vector<1x16x128xf32>
    %51 = vector.shape_cast %50 : vector<1x16x128xf32> to vector<16x128xf32>
    %c2_54 = arith.constant 2 : index
    %c0_55 = arith.constant 0 : index
    %c0_56 = arith.constant 0 : index
    %52 = vector.load %arg5[%c2_54, %c0_55, %c0_56] : memref<6x128x128xf32, #tpu.memory_space<vmem>>, vector<1x128x128xf32>
    %53 = vector.shape_cast %52 : vector<1x128x128xf32> to vector<128x128xf32>
    %cst_57 = arith.constant dense<0.000000e+00> : vector<16x128xf32>
    %54 = tpu.matmul %51, %53, %cst_57 {dimension_numbers = #tpu.dot_dimension_numbers<[1], [0], [0], [1], [0, 0, 1, 1], [], []>} : vector<16x128xf32>, vector<128x128xf32>, vector<16x128xf32> -> vector<16x128xf32>
    %55 = arith.addf %49, %54 : vector<16x128xf32>
    %cst_58 = arith.constant 1.000000e+00 : f32
    %56 = vector.broadcast %cst_58 : f32 to vector<16x128xf32>
    %57 = arith.mulf %56, %55 : vector<16x128xf32>
    %58 = arith.subf %10, %57 : vector<16x128xf32>
    %59 = vector.shape_cast %58 : vector<16x128xf32> to vector<1x16x128xf32>
    %c0_59 = arith.constant 0 : index
    %c1_60 = arith.constant 1 : index
    %c0_61 = arith.constant 0 : index
    %60 = vector.load %arg10[%c0_59, %c1_60, %c0_61] : memref<1x18x128xf32, #tpu.memory_space<vmem>>, vector<1x16x128xf32>
    tpu.vector_store %arg10[%c0_59, %c1_60, %c0_61], %59 {strides = array<i32>} : memref<1x18x128xf32, #tpu.memory_space<vmem>>, vector<1x16x128xf32>,
    %61 = vector.shape_cast %59 : vector<1x16x128xf32> to vector<16x128xf32>
    %c4 = arith.constant 4 : index
    %c0_62 = arith.constant 0 : index
    %c0_63 = arith.constant 0 : index
    %62 = vector.load %arg4[%c4, %c0_62, %c0_63] : memref<6x128x128xf32, #tpu.memory_space<vmem>>, vector<1x128x128xf32>
    %63 = vector.shape_cast %62 : vector<1x128x128xf32> to vector<128x128xf32>
    %cst_64 = arith.constant dense<0.000000e+00> : vector<16x128xf32>
    %64 = tpu.matmul %61, %63, %cst_64 {dimension_numbers = #tpu.dot_dimension_numbers<[1], [0], [0], [1], [0, 0, 1, 1], [], []>} : vector<16x128xf32>, vector<128x128xf32>, vector<16x128xf32> -> vector<16x128xf32>
    %c0_65 = arith.constant 0 : index
    %c0_66 = arith.constant 0 : index
    %c0_67 = arith.constant 0 : index
    %65 = vector.load %arg10[%c0_65, %c0_66, %c0_67] : memref<1x18x128xf32, #tpu.memory_space<vmem>>, vector<1x16x128xf32>
    %66 = vector.shape_cast %65 : vector<1x16x128xf32> to vector<16x128xf32>
    %c3 = arith.constant 3 : index
    %c0_68 = arith.constant 0 : index
    %c0_69 = arith.constant 0 : index
    %67 = vector.load %arg4[%c3, %c0_68, %c0_69] : memref<6x128x128xf32, #tpu.memory_space<vmem>>, vector<1x128x128xf32>
    %68 = vector.shape_cast %67 : vector<1x128x128xf32> to vector<128x128xf32>
    %cst_70 = arith.constant dense<0.000000e+00> : vector<16x128xf32>
    %69 = tpu.matmul %66, %68, %cst_70 {dimension_numbers = #tpu.dot_dimension_numbers<[1], [0], [0], [1], [0, 0, 1, 1], [], []>} : vector<16x128xf32>, vector<128x128xf32>, vector<16x128xf32> -> vector<16x128xf32>
    %70 = arith.addf %64, %69 : vector<16x128xf32>
    %c0_71 = arith.constant 0 : index
    %c2_72 = arith.constant 2 : index
    %c0_73 = arith.constant 0 : index
    %71 = vector.load %arg10[%c0_71, %c2_72, %c0_73] : memref<1x18x128xf32, #tpu.memory_space<vmem>>, vector<1x16x128xf32>
    %72 = vector.shape_cast %71 : vector<1x16x128xf32> to vector<16x128xf32>
    %c5 = arith.constant 5 : index
    %c0_74 = arith.constant 0 : index
    %c0_75 = arith.constant 0 : index
    %73 = vector.load %arg4[%c5, %c0_74, %c0_75] : memref<6x128x128xf32, #tpu.memory_space<vmem>>, vector<1x128x128xf32>
    %74 = vector.shape_cast %73 : vector<1x128x128xf32> to vector<128x128xf32>
    %cst_76 = arith.constant dense<0.000000e+00> : vector<16x128xf32>
    %75 = tpu.matmul %72, %74, %cst_76 {dimension_numbers = #tpu.dot_dimension_numbers<[1], [0], [0], [1], [0, 0, 1, 1], [], []>} : vector<16x128xf32>, vector<128x128xf32>, vector<16x128xf32> -> vector<16x128xf32>
    %76 = arith.addf %70, %75 : vector<16x128xf32>
    %c1_77 = arith.constant 1 : index
    %c0_78 = arith.constant 0 : index
    %c0_79 = arith.constant 0 : index
    %77 = vector.load %arg6[%c1_77, %c0_78, %c0_79] : memref<2x1x128xf32, #tpu.memory_space<vmem>>, vector<1x1x128xf32>
    %78 = vector.shape_cast %77 : vector<1x1x128xf32> to vector<1x128xf32>
    %79 = vector.broadcast %78 : vector<1x128xf32> to vector<16x128xf32>
    %80 = arith.addf %76, %79 : vector<16x128xf32>
    %cst_80 = arith.constant 0.000000e+00 : f32
    %81 = vector.broadcast %cst_80 : f32 to vector<16x128xf32>
    %82 = arith.cmpf oge, %80, %81 : vector<16x128xf32>
    %cst_81 = arith.constant 0.00999999977 : f32
    %83 = vector.broadcast %cst_81 : f32 to vector<16x128xf32>
    %84 = arith.mulf %83, %80 : vector<16x128xf32>
    %85 = arith.select %82, %80, %84 : vector<16x128xi1>, vector<16x128xf32>
    %86 = vector.shape_cast %85 : vector<16x128xf32> to vector<1x16x128xf32>
    %c0_82 = arith.constant 0 : index
    %c1_83 = arith.constant 1 : index
    %c0_84 = arith.constant 0 : index
    %87 = vector.load %arg10[%c0_82, %c1_83, %c0_84] : memref<1x18x128xf32, #tpu.memory_space<vmem>>, vector<1x16x128xf32>
    tpu.vector_store %arg10[%c0_82, %c1_83, %c0_84], %86 {strides = array<i32>} : memref<1x18x128xf32, #tpu.memory_space<vmem>>, vector<1x16x128xf32>,
    %88 = vector.shape_cast %86 : vector<1x16x128xf32> to vector<16x128xf32>
    %c4_85 = arith.constant 4 : index
    %c0_86 = arith.constant 0 : index
    %c0_87 = arith.constant 0 : index
    %89 = vector.load %arg5[%c4_85, %c0_86, %c0_87] : memref<6x128x128xf32, #tpu.memory_space<vmem>>, vector<1x128x128xf32>
    %90 = vector.shape_cast %89 : vector<1x128x128xf32> to vector<128x128xf32>
    %cst_88 = arith.constant dense<0.000000e+00> : vector<16x128xf32>
    %91 = tpu.matmul %88, %90, %cst_88 {dimension_numbers = #tpu.dot_dimension_numbers<[1], [0], [0], [1], [0, 0, 1, 1], [], []>} : vector<16x128xf32>, vector<128x128xf32>, vector<16x128xf32> -> vector<16x128xf32>
    %c0_89 = arith.constant 0 : index
    %c0_90 = arith.constant 0 : index
    %c0_91 = arith.constant 0 : index
    %92 = vector.load %arg10[%c0_89, %c0_90, %c0_91] : memref<1x18x128xf32, #tpu.memory_space<vmem>>, vector<1x16x128xf32>
    %93 = vector.shape_cast %92 : vector<1x16x128xf32> to vector<16x128xf32>
    %c3_92 = arith.constant 3 : index
    %c0_93 = arith.constant 0 : index
    %c0_94 = arith.constant 0 : index
    %94 = vector.load %arg5[%c3_92, %c0_93, %c0_94] : memref<6x128x128xf32, #tpu.memory_space<vmem>>, vector<1x128x128xf32>
    %95 = vector.shape_cast %94 : vector<1x128x128xf32> to vector<128x128xf32>
    %cst_95 = arith.constant dense<0.000000e+00> : vector<16x128xf32>
    %96 = tpu.matmul %93, %95, %cst_95 {dimension_numbers = #tpu.dot_dimension_numbers<[1], [0], [0], [1], [0, 0, 1, 1], [], []>} : vector<16x128xf32>, vector<128x128xf32>, vector<16x128xf32> -> vector<16x128xf32>
    %97 = arith.addf %91, %96 : vector<16x128xf32>
    %c0_96 = arith.constant 0 : index
    %c2_97 = arith.constant 2 : index
    %c0_98 = arith.constant 0 : index
    %98 = vector.load %arg10[%c0_96, %c2_97, %c0_98] : memref<1x18x128xf32, #tpu.memory_space<vmem>>, vector<1x16x128xf32>
    %99 = vector.shape_cast %98 : vector<1x16x128xf32> to vector<16x128xf32>
    %c5_99 = arith.constant 5 : index
    %c0_100 = arith.constant 0 : index
    %c0_101 = arith.constant 0 : index
    %100 = vector.load %arg5[%c5_99, %c0_100, %c0_101] : memref<6x128x128xf32, #tpu.memory_space<vmem>>, vector<1x128x128xf32>
    %101 = vector.shape_cast %100 : vector<1x128x128xf32> to vector<128x128xf32>
    %cst_102 = arith.constant dense<0.000000e+00> : vector<16x128xf32>
    %102 = tpu.matmul %99, %101, %cst_102 {dimension_numbers = #tpu.dot_dimension_numbers<[1], [0], [0], [1], [0, 0, 1, 1], [], []>} : vector<16x128xf32>, vector<128x128xf32>, vector<16x128xf32> -> vector<16x128xf32>
    %103 = arith.addf %97, %102 : vector<16x128xf32>
    %cst_103 = arith.constant 1.000000e+00 : f32
    %104 = vector.broadcast %cst_103 : f32 to vector<16x128xf32>
    %105 = arith.mulf %104, %103 : vector<16x128xf32>
    %106 = arith.subf %58, %105 : vector<16x128xf32>
    %c0_104 = arith.constant 0 : index
    %c0_105 = arith.constant 0 : index
    %107 = vector.load %arg7[%c0_104, %c0_105] : memref<128x128xf32, #tpu.memory_space<vmem>>, vector<128x128xf32>
    %cst_106 = arith.constant dense<0.000000e+00> : vector<16x128xf32>
    %108 = tpu.matmul %106, %107, %cst_106 {dimension_numbers = #tpu.dot_dimension_numbers<[1], [0], [0], [1], [0, 0, 1, 1], [], []>} : vector<16x128xf32>, vector<128x128xf32>, vector<16x128xf32> -> vector<16x128xf32>
    %109 = vector.shape_cast %108 : vector<16x128xf32> to vector<8x256xf32>
    %110 = vector.extract_strided_slice %109 {offsets = [0, 0], sizes = [8, 128], strides = [1, 1]} : vector<8x256xf32> to vector<8x128xf32>
    %111 = vector.extract_strided_slice %109 {offsets = [0, 128], sizes = [8, 128], strides = [1, 1]} : vector<8x256xf32> to vector<8x128xf32>
    %112 = arith.addf %110, %111 : vector<8x128xf32>
    %c0_107 = arith.constant 0 : index
    %c0_108 = arith.constant 0 : index
    %113 = vector.load %arg8[%c0_107, %c0_108] : memref<1x128xf32, #tpu.memory_space<vmem>>, vector<1x128xf32>
    %114 = vector.broadcast %113 : vector<1x128xf32> to vector<8x128xf32>
    %115 = arith.addf %112, %114 : vector<8x128xf32>
    %116 = vector.shape_cast %115 : vector<8x128xf32> to vector<1x8x128xf32>
    %c0_109 = arith.constant 0 : index
    %c0_110 = arith.constant 0 : index
    %c0_111 = arith.constant 0 : index
    %117 = vector.load %arg9[%c0_109, %c0_110, %c0_111] : memref<1x8x128xf32, #tpu.memory_space<vmem>>, vector<1x8x128xf32>
    tpu.vector_store %arg9[%c0_109, %c0_110, %c0_111], %116 {strides = array<i32>} : memref<1x8x128xf32, #tpu.memory_space<vmem>>, vector<1x8x128xf32>,
    return
  }
  func.func @transform_0(%arg0: i32) -> (i32, i32, i32) {
    %c0_i32 = arith.constant 0 : i32
    %c0_i32_0 = arith.constant 0 : i32
    %c0_i32_1 = arith.constant 0 : i32
    return %arg0, %c0_i32, %c0_i32_0 : i32, i32, i32
  }
  func.func @transform_1(%arg0: i32) -> (i32, i32) {
    %c0_i32 = arith.constant 0 : i32
    %c0_i32_0 = arith.constant 0 : i32
    %c0_i32_1 = arith.constant 0 : i32
    return %c0_i32, %c0_i32_0 : i32, i32
  }
  func.func @transform_2(%arg0: i32) -> (i32, i32) {
    %c0_i32 = arith.constant 0 : i32
    %c0_i32_0 = arith.constant 0 : i32
    %c0_i32_1 = arith.constant 0 : i32
    return %c0_i32, %c0_i32_0 : i32, i32
  }
  func.func @transform_3(%arg0: i32) -> (i32, i32, i32) {
    %c0_i32 = arith.constant 0 : i32
    %c0_i32_0 = arith.constant 0 : i32
    %c0_i32_1 = arith.constant 0 : i32
    %c0_i32_2 = arith.constant 0 : i32
    return %c0_i32, %c0_i32_0, %c0_i32_1 : i32, i32, i32
  }
  func.func @transform_4(%arg0: i32) -> (i32, i32, i32) {
    %c0_i32 = arith.constant 0 : i32
    %c0_i32_0 = arith.constant 0 : i32
    %c0_i32_1 = arith.constant 0 : i32
    %c0_i32_2 = arith.constant 0 : i32
    return %c0_i32, %c0_i32_0, %c0_i32_1 : i32, i32, i32
  }
  func.func @transform_5(%arg0: i32) -> (i32, i32, i32) {
    %c0_i32 = arith.constant 0 : i32
    %c0_i32_0 = arith.constant 0 : i32
    %c0_i32_1 = arith.constant 0 : i32
    %c0_i32_2 = arith.constant 0 : i32
    return %c0_i32, %c0_i32_0, %c0_i32_1 : i32, i32, i32
  }
  func.func @transform_6(%arg0: i32) -> (i32, i32) {
    %c0_i32 = arith.constant 0 : i32
    %c0_i32_0 = arith.constant 0 : i32
    %c0_i32_1 = arith.constant 0 : i32
    return %c0_i32, %c0_i32_0 : i32, i32
  }
  func.func @transform_7(%arg0: i32) -> (i32, i32) {
    %c0_i32 = arith.constant 0 : i32
    %c0_i32_0 = arith.constant 0 : i32
    %c0_i32_1 = arith.constant 0 : i32
    return %c0_i32, %c0_i32_0 : i32, i32
  }
  func.func @transform_8(%arg0: i32) -> (i32, i32, i32) {
    %c0_i32 = arith.constant 0 : i32
    %c0_i32_0 = arith.constant 0 : i32
    %c0_i32_1 = arith.constant 0 : i32
    return %arg0, %c0_i32, %c0_i32_0 : i32, i32, i32
  }
}

module attributes {stable_mosaic.version = 11 : i64} {
  func.func @_final_stage_kernel(%arg0: i32, %arg1: memref<1x8x128xf32, #tpu.memory_space<vmem>>, %arg2: memref<6x128x128xf32, #tpu.memory_space<vmem>>, %arg3: memref<6x128x128xf32, #tpu.memory_space<vmem>>, %arg4: memref<2x1x128xf32, #tpu.memory_space<vmem>>, %arg5: memref<128x32xf32, #tpu.memory_space<vmem>>, %arg6: memref<1x32xf32, #tpu.memory_space<vmem>>, %arg7: memref<32x10xf32, #tpu.memory_space<vmem>>, %arg8: memref<1x10xf32, #tpu.memory_space<vmem>>, %arg9: memref<1x1x10xf32, #tpu.memory_space<vmem>>, %arg10: memref<1x10x128xf32, #tpu.memory_space<vmem>>) attributes {dimension_semantics = [#tpu.dimension_semantics<parallel>], iteration_bounds = array<i64: 2>, scalar_prefetch = 0 : i64, scratch_operands = 1 : i64, tpu.core_type = #tpu.core_type<tc>, window_params = [{transform_indices = @transform_0, window_bounds = array<i64: 1, 8, 128>}, {pipeline_mode = #tpu.pipeline_mode<synchronous>, transform_indices = @transform_1, window_bounds = array<i64: 6, 128, 128>}, {pipeline_mode = #tpu.pipeline_mode<synchronous>, transform_indices = @transform_2, window_bounds = array<i64: 6, 128, 128>}, {pipeline_mode = #tpu.pipeline_mode<synchronous>, transform_indices = @transform_3, window_bounds = array<i64: 2, 1, 128>}, {pipeline_mode = #tpu.pipeline_mode<synchronous>, transform_indices = @transform_4, window_bounds = array<i64: 128, 32>}, {pipeline_mode = #tpu.pipeline_mode<synchronous>, transform_indices = @transform_5, window_bounds = array<i64: 1, 32>}, {pipeline_mode = #tpu.pipeline_mode<synchronous>, transform_indices = @transform_6, window_bounds = array<i64: 32, 10>}, {pipeline_mode = #tpu.pipeline_mode<synchronous>, transform_indices = @transform_7, window_bounds = array<i64: 1, 10>}, {transform_indices = @transform_8, window_bounds = array<i64: 1, 1, 10>}]} {
    %cst = arith.constant 0.000000e+00 : f32
    %0 = vector.broadcast %cst : f32 to vector<1x1x128xf32>
    %c0 = arith.constant 0 : index
    %c0_0 = arith.constant 0 : index
    %c0_1 = arith.constant 0 : index
    %1 = vector.load %arg10[%c0, %c0_0, %c0_1] : memref<1x10x128xf32, #tpu.memory_space<vmem>>, vector<1x1x128xf32>
    tpu.vector_store %arg10[%c0, %c0_0, %c0_1], %0 {strides = array<i32>} : memref<1x10x128xf32, #tpu.memory_space<vmem>>, vector<1x1x128xf32>,
    %cst_2 = arith.constant 0.000000e+00 : f32
    %2 = vector.broadcast %cst_2 : f32 to vector<1x1x128xf32>
    %c0_3 = arith.constant 0 : index
    %c9 = arith.constant 9 : index
    %c0_4 = arith.constant 0 : index
    %3 = vector.load %arg10[%c0_3, %c9, %c0_4] : memref<1x10x128xf32, #tpu.memory_space<vmem>>, vector<1x1x128xf32>
    tpu.vector_store %arg10[%c0_3, %c9, %c0_4], %2 {strides = array<i32>} : memref<1x10x128xf32, #tpu.memory_space<vmem>>, vector<1x1x128xf32>,
    %c0_5 = arith.constant 0 : index
    %c0_6 = arith.constant 0 : index
    %c0_7 = arith.constant 0 : index
    %4 = vector.load %arg1[%c0_5, %c0_6, %c0_7] : memref<1x8x128xf32, #tpu.memory_space<vmem>>, vector<1x8x128xf32>
    %5 = vector.shape_cast %4 : vector<1x8x128xf32> to vector<8x128xf32>
    %6 = vector.shape_cast %5 : vector<8x128xf32> to vector<1x8x128xf32>
    %c0_8 = arith.constant 0 : index
    %c1 = arith.constant 1 : index
    %c0_9 = arith.constant 0 : index
    %7 = vector.load %arg10[%c0_8, %c1, %c0_9] : memref<1x10x128xf32, #tpu.memory_space<vmem>>, vector<1x8x128xf32>
    tpu.vector_store %arg10[%c0_8, %c1, %c0_9], %6 {strides = array<i32>} : memref<1x10x128xf32, #tpu.memory_space<vmem>>, vector<1x8x128xf32>,
    %8 = vector.shape_cast %6 : vector<1x8x128xf32> to vector<8x128xf32>
    %c1_10 = arith.constant 1 : index
    %c0_11 = arith.constant 0 : index
    %c0_12 = arith.constant 0 : index
    %9 = vector.load %arg2[%c1_10, %c0_11, %c0_12] : memref<6x128x128xf32, #tpu.memory_space<vmem>>, vector<1x128x128xf32>
    %10 = vector.shape_cast %9 : vector<1x128x128xf32> to vector<128x128xf32>
    %cst_13 = arith.constant dense<0.000000e+00> : vector<8x128xf32>
    %11 = tpu.matmul %8, %10, %cst_13 {dimension_numbers = #tpu.dot_dimension_numbers<[1], [0], [0], [1], [0, 0, 1, 1], [], []>} : vector<8x128xf32>, vector<128x128xf32>, vector<8x128xf32> -> vector<8x128xf32>
    %c0_14 = arith.constant 0 : index
    %c0_15 = arith.constant 0 : index
    %c0_16 = arith.constant 0 : index
    %12 = vector.load %arg10[%c0_14, %c0_15, %c0_16] : memref<1x10x128xf32, #tpu.memory_space<vmem>>, vector<1x8x128xf32>
    %13 = vector.shape_cast %12 : vector<1x8x128xf32> to vector<8x128xf32>
    %c0_17 = arith.constant 0 : index
    %c0_18 = arith.constant 0 : index
    %c0_19 = arith.constant 0 : index
    %14 = vector.load %arg2[%c0_17, %c0_18, %c0_19] : memref<6x128x128xf32, #tpu.memory_space<vmem>>, vector<1x128x128xf32>
    %15 = vector.shape_cast %14 : vector<1x128x128xf32> to vector<128x128xf32>
    %cst_20 = arith.constant dense<0.000000e+00> : vector<8x128xf32>
    %16 = tpu.matmul %13, %15, %cst_20 {dimension_numbers = #tpu.dot_dimension_numbers<[1], [0], [0], [1], [0, 0, 1, 1], [], []>} : vector<8x128xf32>, vector<128x128xf32>, vector<8x128xf32> -> vector<8x128xf32>
    %17 = arith.addf %11, %16 : vector<8x128xf32>
    %c0_21 = arith.constant 0 : index
    %c2 = arith.constant 2 : index
    %c0_22 = arith.constant 0 : index
    %18 = vector.load %arg10[%c0_21, %c2, %c0_22] : memref<1x10x128xf32, #tpu.memory_space<vmem>>, vector<1x8x128xf32>
    %19 = vector.shape_cast %18 : vector<1x8x128xf32> to vector<8x128xf32>
    %c2_23 = arith.constant 2 : index
    %c0_24 = arith.constant 0 : index
    %c0_25 = arith.constant 0 : index
    %20 = vector.load %arg2[%c2_23, %c0_24, %c0_25] : memref<6x128x128xf32, #tpu.memory_space<vmem>>, vector<1x128x128xf32>
    %21 = vector.shape_cast %20 : vector<1x128x128xf32> to vector<128x128xf32>
    %cst_26 = arith.constant dense<0.000000e+00> : vector<8x128xf32>
    %22 = tpu.matmul %19, %21, %cst_26 {dimension_numbers = #tpu.dot_dimension_numbers<[1], [0], [0], [1], [0, 0, 1, 1], [], []>} : vector<8x128xf32>, vector<128x128xf32>, vector<8x128xf32> -> vector<8x128xf32>
    %23 = arith.addf %17, %22 : vector<8x128xf32>
    %c0_27 = arith.constant 0 : index
    %c0_28 = arith.constant 0 : index
    %c0_29 = arith.constant 0 : index
    %24 = vector.load %arg4[%c0_27, %c0_28, %c0_29] : memref<2x1x128xf32, #tpu.memory_space<vmem>>, vector<1x1x128xf32>
    %25 = vector.shape_cast %24 : vector<1x1x128xf32> to vector<1x128xf32>
    %26 = vector.broadcast %25 : vector<1x128xf32> to vector<8x128xf32>
    %27 = arith.addf %23, %26 : vector<8x128xf32>
    %cst_30 = arith.constant 0.000000e+00 : f32
    %28 = vector.broadcast %cst_30 : f32 to vector<8x128xf32>
    %29 = arith.cmpf oge, %27, %28 : vector<8x128xf32>
    %cst_31 = arith.constant 0.00999999977 : f32
    %30 = vector.broadcast %cst_31 : f32 to vector<8x128xf32>
    %31 = arith.mulf %30, %27 : vector<8x128xf32>
    %32 = arith.select %29, %27, %31 : vector<8x128xi1>, vector<8x128xf32>
    %33 = vector.shape_cast %32 : vector<8x128xf32> to vector<1x8x128xf32>
    %c0_32 = arith.constant 0 : index
    %c1_33 = arith.constant 1 : index
    %c0_34 = arith.constant 0 : index
    %34 = vector.load %arg10[%c0_32, %c1_33, %c0_34] : memref<1x10x128xf32, #tpu.memory_space<vmem>>, vector<1x8x128xf32>
    tpu.vector_store %arg10[%c0_32, %c1_33, %c0_34], %33 {strides = array<i32>} : memref<1x10x128xf32, #tpu.memory_space<vmem>>, vector<1x8x128xf32>,
    %35 = vector.shape_cast %33 : vector<1x8x128xf32> to vector<8x128xf32>
    %c1_35 = arith.constant 1 : index
    %c0_36 = arith.constant 0 : index
    %c0_37 = arith.constant 0 : index
    %36 = vector.load %arg3[%c1_35, %c0_36, %c0_37] : memref<6x128x128xf32, #tpu.memory_space<vmem>>, vector<1x128x128xf32>
    %37 = vector.shape_cast %36 : vector<1x128x128xf32> to vector<128x128xf32>
    %cst_38 = arith.constant dense<0.000000e+00> : vector<8x128xf32>
    %38 = tpu.matmul %35, %37, %cst_38 {dimension_numbers = #tpu.dot_dimension_numbers<[1], [0], [0], [1], [0, 0, 1, 1], [], []>} : vector<8x128xf32>, vector<128x128xf32>, vector<8x128xf32> -> vector<8x128xf32>
    %c0_39 = arith.constant 0 : index
    %c0_40 = arith.constant 0 : index
    %c0_41 = arith.constant 0 : index
    %39 = vector.load %arg10[%c0_39, %c0_40, %c0_41] : memref<1x10x128xf32, #tpu.memory_space<vmem>>, vector<1x8x128xf32>
    %40 = vector.shape_cast %39 : vector<1x8x128xf32> to vector<8x128xf32>
    %c0_42 = arith.constant 0 : index
    %c0_43 = arith.constant 0 : index
    %c0_44 = arith.constant 0 : index
    %41 = vector.load %arg3[%c0_42, %c0_43, %c0_44] : memref<6x128x128xf32, #tpu.memory_space<vmem>>, vector<1x128x128xf32>
    %42 = vector.shape_cast %41 : vector<1x128x128xf32> to vector<128x128xf32>
    %cst_45 = arith.constant dense<0.000000e+00> : vector<8x128xf32>
    %43 = tpu.matmul %40, %42, %cst_45 {dimension_numbers = #tpu.dot_dimension_numbers<[1], [0], [0], [1], [0, 0, 1, 1], [], []>} : vector<8x128xf32>, vector<128x128xf32>, vector<8x128xf32> -> vector<8x128xf32>
    %44 = arith.addf %38, %43 : vector<8x128xf32>
    %c0_46 = arith.constant 0 : index
    %c2_47 = arith.constant 2 : index
    %c0_48 = arith.constant 0 : index
    %45 = vector.load %arg10[%c0_46, %c2_47, %c0_48] : memref<1x10x128xf32, #tpu.memory_space<vmem>>, vector<1x8x128xf32>
    %46 = vector.shape_cast %45 : vector<1x8x128xf32> to vector<8x128xf32>
    %c2_49 = arith.constant 2 : index
    %c0_50 = arith.constant 0 : index
    %c0_51 = arith.constant 0 : index
    %47 = vector.load %arg3[%c2_49, %c0_50, %c0_51] : memref<6x128x128xf32, #tpu.memory_space<vmem>>, vector<1x128x128xf32>
    %48 = vector.shape_cast %47 : vector<1x128x128xf32> to vector<128x128xf32>
    %cst_52 = arith.constant dense<0.000000e+00> : vector<8x128xf32>
    %49 = tpu.matmul %46, %48, %cst_52 {dimension_numbers = #tpu.dot_dimension_numbers<[1], [0], [0], [1], [0, 0, 1, 1], [], []>} : vector<8x128xf32>, vector<128x128xf32>, vector<8x128xf32> -> vector<8x128xf32>
    %50 = arith.addf %44, %49 : vector<8x128xf32>
    %cst_53 = arith.constant 1.000000e+00 : f32
    %51 = vector.broadcast %cst_53 : f32 to vector<8x128xf32>
    %52 = arith.mulf %51, %50 : vector<8x128xf32>
    %53 = arith.subf %5, %52 : vector<8x128xf32>
    %54 = vector.shape_cast %53 : vector<8x128xf32> to vector<1x8x128xf32>
    %c0_54 = arith.constant 0 : index
    %c1_55 = arith.constant 1 : index
    %c0_56 = arith.constant 0 : index
    %55 = vector.load %arg10[%c0_54, %c1_55, %c0_56] : memref<1x10x128xf32, #tpu.memory_space<vmem>>, vector<1x8x128xf32>
    tpu.vector_store %arg10[%c0_54, %c1_55, %c0_56], %54 {strides = array<i32>} : memref<1x10x128xf32, #tpu.memory_space<vmem>>, vector<1x8x128xf32>,
    %56 = vector.shape_cast %54 : vector<1x8x128xf32> to vector<8x128xf32>
    %c4 = arith.constant 4 : index
    %c0_57 = arith.constant 0 : index
    %c0_58 = arith.constant 0 : index
    %57 = vector.load %arg2[%c4, %c0_57, %c0_58] : memref<6x128x128xf32, #tpu.memory_space<vmem>>, vector<1x128x128xf32>
    %58 = vector.shape_cast %57 : vector<1x128x128xf32> to vector<128x128xf32>
    %cst_59 = arith.constant dense<0.000000e+00> : vector<8x128xf32>
    %59 = tpu.matmul %56, %58, %cst_59 {dimension_numbers = #tpu.dot_dimension_numbers<[1], [0], [0], [1], [0, 0, 1, 1], [], []>} : vector<8x128xf32>, vector<128x128xf32>, vector<8x128xf32> -> vector<8x128xf32>
    %c0_60 = arith.constant 0 : index
    %c0_61 = arith.constant 0 : index
    %c0_62 = arith.constant 0 : index
    %60 = vector.load %arg10[%c0_60, %c0_61, %c0_62] : memref<1x10x128xf32, #tpu.memory_space<vmem>>, vector<1x8x128xf32>
    %61 = vector.shape_cast %60 : vector<1x8x128xf32> to vector<8x128xf32>
    %c3 = arith.constant 3 : index
    %c0_63 = arith.constant 0 : index
    %c0_64 = arith.constant 0 : index
    %62 = vector.load %arg2[%c3, %c0_63, %c0_64] : memref<6x128x128xf32, #tpu.memory_space<vmem>>, vector<1x128x128xf32>
    %63 = vector.shape_cast %62 : vector<1x128x128xf32> to vector<128x128xf32>
    %cst_65 = arith.constant dense<0.000000e+00> : vector<8x128xf32>
    %64 = tpu.matmul %61, %63, %cst_65 {dimension_numbers = #tpu.dot_dimension_numbers<[1], [0], [0], [1], [0, 0, 1, 1], [], []>} : vector<8x128xf32>, vector<128x128xf32>, vector<8x128xf32> -> vector<8x128xf32>
    %65 = arith.addf %59, %64 : vector<8x128xf32>
    %c0_66 = arith.constant 0 : index
    %c2_67 = arith.constant 2 : index
    %c0_68 = arith.constant 0 : index
    %66 = vector.load %arg10[%c0_66, %c2_67, %c0_68] : memref<1x10x128xf32, #tpu.memory_space<vmem>>, vector<1x8x128xf32>
    %67 = vector.shape_cast %66 : vector<1x8x128xf32> to vector<8x128xf32>
    %c5 = arith.constant 5 : index
    %c0_69 = arith.constant 0 : index
    %c0_70 = arith.constant 0 : index
    %68 = vector.load %arg2[%c5, %c0_69, %c0_70] : memref<6x128x128xf32, #tpu.memory_space<vmem>>, vector<1x128x128xf32>
    %69 = vector.shape_cast %68 : vector<1x128x128xf32> to vector<128x128xf32>
    %cst_71 = arith.constant dense<0.000000e+00> : vector<8x128xf32>
    %70 = tpu.matmul %67, %69, %cst_71 {dimension_numbers = #tpu.dot_dimension_numbers<[1], [0], [0], [1], [0, 0, 1, 1], [], []>} : vector<8x128xf32>, vector<128x128xf32>, vector<8x128xf32> -> vector<8x128xf32>
    %71 = arith.addf %65, %70 : vector<8x128xf32>
    %c1_72 = arith.constant 1 : index
    %c0_73 = arith.constant 0 : index
    %c0_74 = arith.constant 0 : index
    %72 = vector.load %arg4[%c1_72, %c0_73, %c0_74] : memref<2x1x128xf32, #tpu.memory_space<vmem>>, vector<1x1x128xf32>
    %73 = vector.shape_cast %72 : vector<1x1x128xf32> to vector<1x128xf32>
    %74 = vector.broadcast %73 : vector<1x128xf32> to vector<8x128xf32>
    %75 = arith.addf %71, %74 : vector<8x128xf32>
    %cst_75 = arith.constant 0.000000e+00 : f32
    %76 = vector.broadcast %cst_75 : f32 to vector<8x128xf32>
    %77 = arith.cmpf oge, %75, %76 : vector<8x128xf32>
    %cst_76 = arith.constant 0.00999999977 : f32
    %78 = vector.broadcast %cst_76 : f32 to vector<8x128xf32>
    %79 = arith.mulf %78, %75 : vector<8x128xf32>
    %80 = arith.select %77, %75, %79 : vector<8x128xi1>, vector<8x128xf32>
    %81 = vector.shape_cast %80 : vector<8x128xf32> to vector<1x8x128xf32>
    %c0_77 = arith.constant 0 : index
    %c1_78 = arith.constant 1 : index
    %c0_79 = arith.constant 0 : index
    %82 = vector.load %arg10[%c0_77, %c1_78, %c0_79] : memref<1x10x128xf32, #tpu.memory_space<vmem>>, vector<1x8x128xf32>
    tpu.vector_store %arg10[%c0_77, %c1_78, %c0_79], %81 {strides = array<i32>} : memref<1x10x128xf32, #tpu.memory_space<vmem>>, vector<1x8x128xf32>,
    %83 = vector.shape_cast %81 : vector<1x8x128xf32> to vector<8x128xf32>
    %c4_80 = arith.constant 4 : index
    %c0_81 = arith.constant 0 : index
    %c0_82 = arith.constant 0 : index
    %84 = vector.load %arg3[%c4_80, %c0_81, %c0_82] : memref<6x128x128xf32, #tpu.memory_space<vmem>>, vector<1x128x128xf32>
    %85 = vector.shape_cast %84 : vector<1x128x128xf32> to vector<128x128xf32>
    %cst_83 = arith.constant dense<0.000000e+00> : vector<8x128xf32>
    %86 = tpu.matmul %83, %85, %cst_83 {dimension_numbers = #tpu.dot_dimension_numbers<[1], [0], [0], [1], [0, 0, 1, 1], [], []>} : vector<8x128xf32>, vector<128x128xf32>, vector<8x128xf32> -> vector<8x128xf32>
    %c0_84 = arith.constant 0 : index
    %c0_85 = arith.constant 0 : index
    %c0_86 = arith.constant 0 : index
    %87 = vector.load %arg10[%c0_84, %c0_85, %c0_86] : memref<1x10x128xf32, #tpu.memory_space<vmem>>, vector<1x8x128xf32>
    %88 = vector.shape_cast %87 : vector<1x8x128xf32> to vector<8x128xf32>
    %c3_87 = arith.constant 3 : index
    %c0_88 = arith.constant 0 : index
    %c0_89 = arith.constant 0 : index
    %89 = vector.load %arg3[%c3_87, %c0_88, %c0_89] : memref<6x128x128xf32, #tpu.memory_space<vmem>>, vector<1x128x128xf32>
    %90 = vector.shape_cast %89 : vector<1x128x128xf32> to vector<128x128xf32>
    %cst_90 = arith.constant dense<0.000000e+00> : vector<8x128xf32>
    %91 = tpu.matmul %88, %90, %cst_90 {dimension_numbers = #tpu.dot_dimension_numbers<[1], [0], [0], [1], [0, 0, 1, 1], [], []>} : vector<8x128xf32>, vector<128x128xf32>, vector<8x128xf32> -> vector<8x128xf32>
    %92 = arith.addf %86, %91 : vector<8x128xf32>
    %c0_91 = arith.constant 0 : index
    %c2_92 = arith.constant 2 : index
    %c0_93 = arith.constant 0 : index
    %93 = vector.load %arg10[%c0_91, %c2_92, %c0_93] : memref<1x10x128xf32, #tpu.memory_space<vmem>>, vector<1x8x128xf32>
    %94 = vector.shape_cast %93 : vector<1x8x128xf32> to vector<8x128xf32>
    %c5_94 = arith.constant 5 : index
    %c0_95 = arith.constant 0 : index
    %c0_96 = arith.constant 0 : index
    %95 = vector.load %arg3[%c5_94, %c0_95, %c0_96] : memref<6x128x128xf32, #tpu.memory_space<vmem>>, vector<1x128x128xf32>
    %96 = vector.shape_cast %95 : vector<1x128x128xf32> to vector<128x128xf32>
    %cst_97 = arith.constant dense<0.000000e+00> : vector<8x128xf32>
    %97 = tpu.matmul %94, %96, %cst_97 {dimension_numbers = #tpu.dot_dimension_numbers<[1], [0], [0], [1], [0, 0, 1, 1], [], []>} : vector<8x128xf32>, vector<128x128xf32>, vector<8x128xf32> -> vector<8x128xf32>
    %98 = arith.addf %92, %97 : vector<8x128xf32>
    %cst_98 = arith.constant 1.000000e+00 : f32
    %99 = vector.broadcast %cst_98 : f32 to vector<8x128xf32>
    %100 = arith.mulf %99, %98 : vector<8x128xf32>
    %101 = arith.subf %53, %100 : vector<8x128xf32>
    %102 = vector.shape_cast %101 : vector<8x128xf32> to vector<1x8x128xf32>
    %cst_99 = arith.constant dense<0.000000e+00> : vector<1x128xf32>
    %103 = vector.multi_reduction <add>, %102, %cst_99 [1] : vector<1x8x128xf32> to vector<1x128xf32>
    %c0_100 = arith.constant 0 : index
    %c0_101 = arith.constant 0 : index
    %104 = vector.load %arg5[%c0_100, %c0_101] : memref<128x32xf32, #tpu.memory_space<vmem>>, vector<128x32xf32>
    %cst_102 = arith.constant dense<0.000000e+00> : vector<1x32xf32>
    %105 = tpu.matmul %103, %104, %cst_102 {dimension_numbers = #tpu.dot_dimension_numbers<[1], [0], [0], [1], [0, 0, 1, 1], [], []>} : vector<1x128xf32>, vector<128x32xf32>, vector<1x32xf32> -> vector<1x32xf32>
    %c0_103 = arith.constant 0 : index
    %c0_104 = arith.constant 0 : index
    %106 = vector.load %arg6[%c0_103, %c0_104] : memref<1x32xf32, #tpu.memory_space<vmem>>, vector<1x32xf32>
    %107 = arith.addf %105, %106 : vector<1x32xf32>
    %c0_105 = arith.constant 0 : index
    %c0_106 = arith.constant 0 : index
    %108 = vector.load %arg7[%c0_105, %c0_106] : memref<32x10xf32, #tpu.memory_space<vmem>>, vector<32x10xf32>
    %cst_107 = arith.constant dense<0.000000e+00> : vector<1x10xf32>
    %109 = tpu.matmul %107, %108, %cst_107 {dimension_numbers = #tpu.dot_dimension_numbers<[1], [0], [0], [1], [0, 0, 1, 1], [], []>} : vector<1x32xf32>, vector<32x10xf32>, vector<1x10xf32> -> vector<1x10xf32>
    %c0_108 = arith.constant 0 : index
    %c0_109 = arith.constant 0 : index
    %110 = vector.load %arg8[%c0_108, %c0_109] : memref<1x10xf32, #tpu.memory_space<vmem>>, vector<1x10xf32>
    %111 = arith.addf %109, %110 : vector<1x10xf32>
    %112 = vector.shape_cast %111 : vector<1x10xf32> to vector<1x1x10xf32>
    %c0_110 = arith.constant 0 : index
    %c0_111 = arith.constant 0 : index
    %c0_112 = arith.constant 0 : index
    %113 = vector.load %arg9[%c0_110, %c0_111, %c0_112] : memref<1x1x10xf32, #tpu.memory_space<vmem>>, vector<1x1x10xf32>
    tpu.vector_store %arg9[%c0_110, %c0_111, %c0_112], %112 {strides = array<i32>} : memref<1x1x10xf32, #tpu.memory_space<vmem>>, vector<1x1x10xf32>,
    return
  }
  func.func @transform_0(%arg0: i32) -> (i32, i32, i32) {
    %c0_i32 = arith.constant 0 : i32
    %c0_i32_0 = arith.constant 0 : i32
    %c0_i32_1 = arith.constant 0 : i32
    return %arg0, %c0_i32, %c0_i32_0 : i32, i32, i32
  }
  func.func @transform_1(%arg0: i32) -> (i32, i32, i32) {
    %c0_i32 = arith.constant 0 : i32
    %c0_i32_0 = arith.constant 0 : i32
    %c0_i32_1 = arith.constant 0 : i32
    %c0_i32_2 = arith.constant 0 : i32
    return %c0_i32, %c0_i32_0, %c0_i32_1 : i32, i32, i32
  }
  func.func @transform_2(%arg0: i32) -> (i32, i32, i32) {
    %c0_i32 = arith.constant 0 : i32
    %c0_i32_0 = arith.constant 0 : i32
    %c0_i32_1 = arith.constant 0 : i32
    %c0_i32_2 = arith.constant 0 : i32
    return %c0_i32, %c0_i32_0, %c0_i32_1 : i32, i32, i32
  }
  func.func @transform_3(%arg0: i32) -> (i32, i32, i32) {
    %c0_i32 = arith.constant 0 : i32
    %c0_i32_0 = arith.constant 0 : i32
    %c0_i32_1 = arith.constant 0 : i32
    %c0_i32_2 = arith.constant 0 : i32
    return %c0_i32, %c0_i32_0, %c0_i32_1 : i32, i32, i32
  }
  func.func @transform_4(%arg0: i32) -> (i32, i32) {
    %c0_i32 = arith.constant 0 : i32
    %c0_i32_0 = arith.constant 0 : i32
    %c0_i32_1 = arith.constant 0 : i32
    return %c0_i32, %c0_i32_0 : i32, i32
  }
  func.func @transform_5(%arg0: i32) -> (i32, i32) {
    %c0_i32 = arith.constant 0 : i32
    %c0_i32_0 = arith.constant 0 : i32
    %c0_i32_1 = arith.constant 0 : i32
    return %c0_i32, %c0_i32_0 : i32, i32
  }
  func.func @transform_6(%arg0: i32) -> (i32, i32) {
    %c0_i32 = arith.constant 0 : i32
    %c0_i32_0 = arith.constant 0 : i32
    %c0_i32_1 = arith.constant 0 : i32
    return %c0_i32, %c0_i32_0 : i32, i32
  }
  func.func @transform_7(%arg0: i32) -> (i32, i32) {
    %c0_i32 = arith.constant 0 : i32
    %c0_i32_0 = arith.constant 0 : i32
    %c0_i32_1 = arith.constant 0 : i32
    return %c0_i32, %c0_i32_0 : i32, i32
  }
  func.func @transform_8(%arg0: i32) -> (i32, i32, i32) {
    %c0_i32 = arith.constant 0 : i32
    %c0_i32_0 = arith.constant 0 : i32
    %c0_i32_1 = arith.constant 0 : i32
    return %arg0, %c0_i32, %c0_i32_0 : i32, i32, i32
  }
}

</mosaic_0001>

<llo_original>
// kernel: forward.2
$region0: #{forward.2}
  #allocation0 [shape = 'u32[]', space=smem, size = 0x4, offset = 0x4, fixed_abs, tag = 'smem constant byte address 0x4 - core index']
  #allocation1 [shape = 'u32[144,128]{1,0:T(1,128)}', space=vmem, size = 0x12000, scoped, tag = 'internal scratch']
  #allocation2 [shape = 'f32[1,18,128]{2,1,0:T(8,128)}', space=vmem, size = 0x3000, scoped, tag = 'scratch operand']
  %s0 = inlined_call_operand.vmem [shape: f32[2,16,48], index: 0, kind: input, shape index: {}]
  %s1 = inlined_call_operand.vmem [shape: f32[48,128], index: 1, kind: input, shape index: {}]
  %s2 = inlined_call_operand.vmem [shape: f32[1,128], index: 2, kind: input, shape index: {}]
  %s3 = inlined_call_operand.hbm [shape: f32[6,128,128], index: 3, kind: input, shape index: {}]
  %s4 = inlined_call_operand.hbm [shape: f32[6,128,128], index: 4, kind: input, shape index: {}]
  %s5 = inlined_call_operand.vmem [shape: f32[2,1,128], index: 5, kind: input, shape index: {}]
  %s6 = inlined_call_operand.vmem [shape: f32[128,128], index: 6, kind: input, shape index: {}]
  %s7 = inlined_call_operand.vmem [shape: f32[1,128], index: 7, kind: input, shape index: {}]
  %s8 = inlined_call_operand.vmem [shape: f32[2,8,128], index: 8, kind: output, shape index: {}]
  %s9 = sld [smem:[#allocation0]]
  $region73: #{forward.2} parent=0
    _
  %s11 = ssub.s32 1, %s9
  %s12 = scalar_select 0, %s11, %s9
  $region1: #{forward.2} parent=0
    #allocation3 [shape = 'u8[393216]{0}', space=vmem, size = 0x60000, scoped, tag = 'input window, operand 3, single buffered']
    #allocation4 [shape = 's32[2]{0}', space=sflag, size = 0x8, scoped, tag = 'scoped memory for forward.2']
    #allocation5 [shape = 'u8[393216]{0}', space=vmem, size = 0x60000, scoped, tag = 'input window, operand 4, single buffered']
    #allocation6 [shape = 's32[1]{0}', space=sflag, size = 0x4, scoped, tag = 'scoped memory for forward.2']
    %13 = vsyncpa [#allocation4], 0
    %14 = vsyncpa [#allocation6], 0
    loop: start=0, step=1, limit=4
    $region2: #{forward.2} parent=1 // loop_pre_header
      _
    $region3: #{forward.2} parent=1 // loop_header
      %s16 = sphi 0, %s20
      %p17 = scmp.ge.s32.totalorder %s16, 4
      %s26 = sphi 0, %s28
      %s29 = sphi 0, %s26
      %s30 = sphi 0, %s29
      %s46 = sphi 0, %s30
      %s50 = sphi 0, %s50
      %s52 = sphi 0, %s50
      %s53 = sphi 0, %s52
      %s67 = sphi 0, %s53
      %s71 = sphi 0, %s71
      %s73 = sphi 0, %s71
      %s74 = sphi 0, %s73
      %s88 = sphi 0, %s74
      %s92 = sphi 0, %s92
      %s94 = sphi 0, %s92
      %s95 = sphi 0, %s94
      %s109 = sphi 0, %s95
      %s113 = sphi 0, %s113
      %s115 = sphi 0, %s113
      %s116 = sphi 0, %s115
      %s130 = sphi 0, %s116
      %s134 = sphi 0, %s134
      %s136 = sphi 0, %s134
      %s137 = sphi 0, %s136
      %s151 = sphi 0, %s137
      %s155 = sphi 0, %s155
      %s157 = sphi 0, %s155
      %s158 = sphi 0, %s157
      %s172 = sphi 0, %s158
      %s176 = sphi 0, %s176
      %s178 = sphi 0, %s176
      %s179 = sphi 0, %s178
      %s193 = sphi 0, %s179
      %s199 = sphi 0, %s201
      %s202 = sphi 0, %s199
      %s203 = sphi 0, %s202
      %s219 = sphi 0, %s203
    $region4: #{forward.2} parent=1 // loop_header_branch
      %19 = sbr.rel (%p17) target = $region8
    $region5: #{forward.2} parent=1 // loop_body
      %s21 = ssub.s32 %s16, 1
      %s22 = ssub.s32 %s16, 2
      %s23 = sadd.s32 %s16, 1
      %s24 = ssub.s32 %s16, %s23
      %p25 = scmp.eq.s32.totalorder %s24, 0
      %s27 = sadd.s32 %s26, 1
      %s28 = scalar_select %p25, %s26, %s27
      %p31 = pneg %p25
      %p32 = scmp.eq.s32.totalorder %s16, 1
      %p33 = por %p31, %p32
      %p34 = scmp.ne.s32.totalorder %s26, %s29
      %p35 = scmp.eq.s32.totalorder %s16, 0
      %p36 = por %p34, %p35
      %p37 = scmp.ne.s32.totalorder %s26, %s29
      %p38 = scmp.eq.s32.totalorder %s21, 1
      %p39 = por %p37, %p38
      %p40 = scmp.ne.s32.totalorder %s29, %s30
      %p41 = scmp.eq.s32.totalorder %s21, 0
      %p42 = por %p40, %p41
      %p43 = scmp.ne.s32.totalorder %s29, %s30
      %p44 = scmp.eq.s32.totalorder %s22, 1
      %p45 = por %p43, %p44
      %p47 = scmp.ne.s32.totalorder %s30, %s46
      %p48 = scmp.eq.s32.totalorder %s22, 0
      %p49 = por %p47, %p48
      %s51 = sadd.s32 %s50, 1
      %p54 = scmp.eq.s32.totalorder %s16, 1
      %p55 = scmp.ne.s32.totalorder %s50, %s52
      %p56 = scmp.eq.s32.totalorder %s16, 0
      %p57 = por %p55, %p56
      %p58 = scmp.ne.s32.totalorder %s50, %s52
      %p59 = scmp.eq.s32.totalorder %s21, 1
      %p60 = por %p58, %p59
      %p61 = scmp.ne.s32.totalorder %s52, %s53
      %p62 = scmp.eq.s32.totalorder %s21, 0
      %p63 = por %p61, %p62
      %p64 = scmp.ne.s32.totalorder %s52, %s53
      %p65 = scmp.eq.s32.totalorder %s22, 1
      %p66 = por %p64, %p65
      %p68 = scmp.ne.s32.totalorder %s53, %s67
      %p69 = scmp.eq.s32.totalorder %s22, 0
      %p70 = por %p68, %p69
      %s72 = sadd.s32 %s71, 1
      %p75 = scmp.eq.s32.totalorder %s16, 1
      %p76 = scmp.ne.s32.totalorder %s71, %s73
      %p77 = scmp.eq.s32.totalorder %s16, 0
      %p78 = por %p76, %p77
      %p79 = scmp.ne.s32.totalorder %s71, %s73
      %p80 = scmp.eq.s32.totalorder %s21, 1
      %p81 = por %p79, %p80
      %p82 = scmp.ne.s32.totalorder %s73, %s74
      %p83 = scmp.eq.s32.totalorder %s21, 0
      %p84 = por %p82, %p83
      %p85 = scmp.ne.s32.totalorder %s73, %s74
      %p86 = scmp.eq.s32.totalorder %s22, 1
      %p87 = por %p85, %p86
      %p89 = scmp.ne.s32.totalorder %s74, %s88
      %p90 = scmp.eq.s32.totalorder %s22, 0
      %p91 = por %p89, %p90
      %s93 = sadd.s32 %s92, 1
      %p96 = scmp.eq.s32.totalorder %s16, 1
      %p97 = scmp.ne.s32.totalorder %s92, %s94
      %p98 = scmp.eq.s32.totalorder %s16, 0
      %p99 = por %p97, %p98
      %p100 = scmp.ne.s32.totalorder %s92, %s94
      %p101 = scmp.eq.s32.totalorder %s21, 1
      %p102 = por %p100, %p101
      %p103 = scmp.ne.s32.totalorder %s94, %s95
      %p104 = scmp.eq.s32.totalorder %s21, 0
      %p105 = por %p103, %p104
      %p106 = scmp.ne.s32.totalorder %s94, %s95
      %p107 = scmp.eq.s32.totalorder %s22, 1
      %p108 = por %p106, %p107
      %p110 = scmp.ne.s32.totalorder %s95, %s109
      %p111 = scmp.eq.s32.totalorder %s22, 0
      %p112 = por %p110, %p111
      %s114 = sadd.s32 %s113, 1
      %p117 = scmp.eq.s32.totalorder %s16, 1
      %p118 = scmp.ne.s32.totalorder %s113, %s115
      %p119 = scmp.eq.s32.totalorder %s16, 0
      %p120 = por %p118, %p119
      %p121 = scmp.ne.s32.totalorder %s113, %s115
      %p122 = scmp.eq.s32.totalorder %s21, 1
      %p123 = por %p121, %p122
      %p124 = scmp.ne.s32.totalorder %s115, %s116
      %p125 = scmp.eq.s32.totalorder %s21, 0
      %p126 = por %p124, %p125
      %p127 = scmp.ne.s32.totalorder %s115, %s116
      %p128 = scmp.eq.s32.totalorder %s22, 1
      %p129 = por %p127, %p128
      %p131 = scmp.ne.s32.totalorder %s116, %s130
      %p132 = scmp.eq.s32.totalorder %s22, 0
      %p133 = por %p131, %p132
      %s135 = sadd.s32 %s134, 1
      %p138 = scmp.eq.s32.totalorder %s16, 1
      %p139 = scmp.ne.s32.totalorder %s134, %s136
      %p140 = scmp.eq.s32.totalorder %s16, 0
      %p141 = por %p139, %p140
      %p142 = scmp.ne.s32.totalorder %s134, %s136
      %p143 = scmp.eq.s32.totalorder %s21, 1
      %p144 = por %p142, %p143
      %p145 = scmp.ne.s32.totalorder %s136, %s137
      %p146 = scmp.eq.s32.totalorder %s21, 0
      %p147 = por %p145, %p146
      %p148 = scmp.ne.s32.totalorder %s136, %s137
      %p149 = scmp.eq.s32.totalorder %s22, 1
      %p150 = por %p148, %p149
      %p152 = scmp.ne.s32.totalorder %s137, %s151
      %p153 = scmp.eq.s32.totalorder %s22, 0
      %p154 = por %p152, %p153
      %s156 = sadd.s32 %s155, 1
      %p159 = scmp.eq.s32.totalorder %s16, 1
      %p160 = scmp.ne.s32.totalorder %s155, %s157
      %p161 = scmp.eq.s32.totalorder %s16, 0
      %p162 = por %p160, %p161
      %p163 = scmp.ne.s32.totalorder %s155, %s157
      %p164 = scmp.eq.s32.totalorder %s21, 1
      %p165 = por %p163, %p164
      %p166 = scmp.ne.s32.totalorder %s157, %s158
      %p167 = scmp.eq.s32.totalorder %s21, 0
      %p168 = por %p166, %p167
      %p169 = scmp.ne.s32.totalorder %s157, %s158
      %p170 = scmp.eq.s32.totalorder %s22, 1
      %p171 = por %p169, %p170
      %p173 = scmp.ne.s32.totalorder %s158, %s172
      %p174 = scmp.eq.s32.totalorder %s22, 0
      %p175 = por %p173, %p174
      %s177 = sadd.s32 %s176, 1
      %p180 = scmp.eq.s32.totalorder %s16, 1
      %p181 = scmp.ne.s32.totalorder %s176, %s178
      %p182 = scmp.eq.s32.totalorder %s16, 0
      %p183 = por %p181, %p182
      %p184 = scmp.ne.s32.totalorder %s176, %s178
      %p185 = scmp.eq.s32.totalorder %s21, 1
      %p186 = por %p184, %p185
      %p187 = scmp.ne.s32.totalorder %s178, %s179
      %p188 = scmp.eq.s32.totalorder %s21, 0
      %p189 = por %p187, %p188
      %p190 = scmp.ne.s32.totalorder %s178, %s179
      %p191 = scmp.eq.s32.totalorder %s22, 1
      %p192 = por %p190, %p191
      %p194 = scmp.ne.s32.totalorder %s179, %s193
      %p195 = scmp.eq.s32.totalorder %s22, 0
      %p196 = por %p194, %p195
      %s197 = ssub.s32 %s16, %s23
      %p198 = scmp.eq.s32.totalorder %s197, 0
      %s200 = sadd.s32 %s199, 1
      %s201 = scalar_select %p198, %s199, %s200
      %p204 = pneg %p198
      %p205 = scmp.eq.s32.totalorder %s16, 1
      %p206 = por %p204, %p205
      %p207 = scmp.ne.s32.totalorder %s199, %s202
      %p208 = scmp.eq.s32.totalorder %s16, 0
      %p209 = por %p207, %p208
      %p210 = scmp.ne.s32.totalorder %s199, %s202
      %p211 = scmp.eq.s32.totalorder %s21, 1
      %p212 = por %p210, %p211
      %p213 = scmp.ne.s32.totalorder %s202, %s203
      %p214 = scmp.eq.s32.totalorder %s21, 0
      %p215 = por %p213, %p214
      %p216 = scmp.ne.s32.totalorder %s202, %s203
      %p217 = scmp.eq.s32.totalorder %s22, 1
      %p218 = por %p216, %p217
      %p220 = scmp.ne.s32.totalorder %s203, %s219
      %p221 = scmp.eq.s32.totalorder %s22, 0
      %p222 = por %p220, %p221
      %p223 = scmp.le.s32.totalorder 1, %s16
      %p224 = scmp.lt.s32.totalorder %s16, 3
      %p225 = pnand %p223, %p224
      %p226 = pneg %p225
      // Predicated region
      $region9: #{forward.2} parent=5 // pred_check
        _
      $region10: #{forward.2} parent=5 // pred_check_branch
        %228 = sbr.rel (%p225) target = $region12
      $region11: #{forward.2} parent=5 // pred_region
        %s229 = ssub.s32 %s16, 1
        // Predicated region
        $region13: #{forward.2} parent=11 // pred_check
          %p230 = pneg %p63
        $region14: #{forward.2} parent=11 // pred_check_branch
          %232 = sbr.rel (%p230) target = $region16
        $region15: #{forward.2} parent=11 // pred_region
          _
        $region16: #{forward.2} parent=11 // pred_fallthru
          _
        // Predicated region
        $region17: #{forward.2} parent=11 // pred_check
          %p233 = pneg %p84
        $region18: #{forward.2} parent=11 // pred_check_branch
          %235 = sbr.rel (%p233) target = $region20
        $region19: #{forward.2} parent=11 // pred_region
          _
        $region20: #{forward.2} parent=11 // pred_fallthru
          _
        // Predicated region
        $region21: #{forward.2} parent=11 // pred_check
          %p236 = pneg %p105
        $region22: #{forward.2} parent=11 // pred_check_branch
          %238 = sbr.rel (%p236) target = $region24
        $region23: #{forward.2} parent=11 // pred_region
          %s240 = ssub.s32 12288, 12288
          %241 = vsyncadd [#allocation4], %s240
          %s242 = sshll.u32 [#allocation3], 4
          %s243 = int_to_ptr.vmem [resolvable:$true] %s242
          %248 = dma.hbm_to_vmem [thread:$0]  %s3, 12288, %s243, [#allocation4], 128, 128, 8
        $region24: #{forward.2} parent=11 // pred_fallthru
          _
        // Predicated region
        $region25: #{forward.2} parent=11 // pred_check
          %p249 = pneg %p126
        $region26: #{forward.2} parent=11 // pred_check_branch
          %251 = sbr.rel (%p249) target = $region28
        $region27: #{forward.2} parent=11 // pred_region
          %s253 = ssub.s32 12288, 12288
          %254 = vsyncadd [#allocation6], %s253
          %s255 = sshll.u32 [#allocation5], 4
          %s256 = int_to_ptr.vmem [resolvable:$true] %s255
          %261 = dma.hbm_to_vmem [thread:$0]  %s4, 12288, %s256, [#allocation6], 128, 128, 8
        $region28: #{forward.2} parent=11 // pred_fallthru
          _
        // Predicated region
        $region29: #{forward.2} parent=11 // pred_check
          %p262 = pneg %p147
        $region30: #{forward.2} parent=11 // pred_check_branch
          %264 = sbr.rel (%p262) target = $region32
        $region31: #{forward.2} parent=11 // pred_region
          _
        $region32: #{forward.2} parent=11 // pred_fallthru
          _
        // Predicated region
        $region33: #{forward.2} parent=11 // pred_check
          %p265 = pneg %p168
        $region34: #{forward.2} parent=11 // pred_check_branch
          %267 = sbr.rel (%p265) target = $region36
        $region35: #{forward.2} parent=11 // pred_region
          _
        $region36: #{forward.2} parent=11 // pred_fallthru
          _
        // Predicated region
        $region37: #{forward.2} parent=11 // pred_check
          %p268 = pneg %p189
        $region38: #{forward.2} parent=11 // pred_check_branch
          %270 = sbr.rel (%p268) target = $region40
        $region39: #{forward.2} parent=11 // pred_region
          _
        $region40: #{forward.2} parent=11 // pred_fallthru
          _
      $region12: #{forward.2} parent=5 // pred_fallthru
        _
      %p271 = scmp.lt.s32.totalorder %s16, 2
      // Predicated region
      $region41: #{forward.2} parent=5 // pred_check
        %p272 = pneg %p271
      $region42: #{forward.2} parent=5 // pred_check_branch
        %274 = sbr.rel (%p272) target = $region44
      $region43: #{forward.2} parent=5 // pred_region
        // Predicated region
        $region45: #{forward.2} parent=43 // pred_check
          %p275 = pneg %p36
        $region46: #{forward.2} parent=43 // pred_check_branch
          %277 = sbr.rel (%p275) target = $region48
        $region47: #{forward.2} parent=43 // pred_region
          %p278 = scmp.lt.s32.totalorder %s16, 1
          %s279 = scalar_select %p278, %s16, 1
          %s280 = smul.addr %s279, 2
          %s281 = smul.addr %s280, 8
          %s282 = scalar_lea.vmem %s0, %s281
        $region48: #{forward.2} parent=43 // pred_fallthru
          _
      $region44: #{forward.2} parent=5 // pred_fallthru
        _
      %p283 = scmp.le.s32.totalorder 1, %s16
      %p284 = scmp.lt.s32.totalorder %s16, 3
      %p285 = pnand %p283, %p284
      %p286 = pneg %p285
      // Predicated region
      $region49: #{forward.2} parent=5 // pred_check
        _
      $region50: #{forward.2} parent=5 // pred_check_branch
        %288 = sbr.rel (%p285) target = $region52
      $region51: #{forward.2} parent=5 // pred_region
        %s289 = ssub.s32 %s16, 1
        // Predicated region
        $region53: #{forward.2} parent=51 // pred_check
          %p290 = pneg %p105
        $region54: #{forward.2} parent=51 // pred_check_branch
          %292 = sbr.rel (%p290) target = $region56
        $region55: #{forward.2} parent=51 // pred_region
          %293 = dma.done [#allocation4], 12288
        $region56: #{forward.2} parent=51 // pred_fallthru
          _
        // Predicated region
        $region57: #{forward.2} parent=51 // pred_check
          %p294 = pneg %p126
        $region58: #{forward.2} parent=51 // pred_check_branch
          %296 = sbr.rel (%p294) target = $region60
        $region59: #{forward.2} parent=51 // pred_region
          %297 = dma.done [#allocation6], 12288
        $region60: #{forward.2} parent=51 // pred_fallthru
          _
        %p298 = scmp.lt.s32.totalorder %s21, 1
        %s299 = scalar_select %p298, %s21, 1
        %s300 = smul.addr %s299, 2
        %s301 = smul.addr %s300, 8
        %s302 = scalar_lea.vmem %s0, %s301
        %p303 = pneg %p42
        %p304 = pneg %p39
        %p305 = pneg %p63
        %p306 = pneg %p60
        %p307 = pneg %p84
        %p308 = pneg %p81
        %p309 = pneg %p105
        %p310 = pneg %p102
        %p311 = pneg %p126
        %p312 = pneg %p123
        %p313 = pneg %p147
        %p314 = pneg %p144
        %p315 = pneg %p168
        %p316 = pneg %p165
        %p317 = pneg %p189
        %p318 = pneg %p186
        %p319 = pneg %p215
        %p320 = pneg %p212
        %p321 = scmp.lt.s32.totalorder %s21, 1
        %s322 = scalar_select %p321, %s21, 1
        %s323 = smul.addr %s322, 8
        %s324 = scalar_lea.vmem %s8, %s323
        %p325 = scmp.lt.s32.totalorder %s21, 1
        %s326 = scalar_select %p325, %s21, 1
        %s327 = smul.addr %s326, 2
        %s328 = smul.addr %s327, 8
        %s329 = scalar_lea.vmem %s0, %s328
        %p330 = scmp.lt.s32.totalorder %s21, 1
        %s331 = scalar_select %p330, %s21, 1
        %s332 = smul.addr %s331, 8
        %s333 = scalar_lea.vmem %s8, %s332
        %334 = vst [vmem:[#allocation2] sm:$0x1] 0.0
        %335 = vst [vmem:[#allocation2 + $0x11] sm:$0x1] 0.0
        %v336 = vld [vmem:[%s329] sm:$0xff]
        %v337 = vld [vmem:[%s329 + $0x8] sm:$0xff]
        %v338 = vld [vmem:[%s1] sm:$0xff]
        %v339 = vld [vmem:[%s1 + $0x8] sm:$0xff]
        %v340 = vld [vmem:[%s1 + $0x10] sm:$0xff]
        %v341 = vld [vmem:[%s1 + $0x18] sm:$0xff]
        %v342 = vld [vmem:[%s1 + $0x20] sm:$0xff]
        %v343 = vld [vmem:[%s1 + $0x28] sm:$0xff]
        %v344 = vld [vmem:[%s2] sm:$0x1]
        %v346 = vlaneseq
        %v347 = vshrl.u32 %v346, 7
        %v348 = vsub.s32 0, %v347
        %v349 = vrot.slane %v344, %v348
        %vm351 = vcmask 392192
        %v353 = vsel %vm351, %v336, 0
        %v356 = vsel %vm351, %v337, 0
        %358 = vmatprep.subr.mxu0 0.0
        %359 = vmatpush1.msra.mxu0 %v338
        %360 = vmatprep.subr.mxu0 0.0
        %361 = vmatpush1.msra.mxu0 %v339
        %362 = vmatprep.subr.mxu0 0.0
        %363 = vmatpush1.msra.mxu0 %v340
        %364 = vmatprep.subr.mxu0 0.0
        %365 = vmatpush1.msra.mxu0 %v341
        %366 = vmatprep.subr.mxu0 0.0
        %367 = vmatpush1.msra.mxu0 %v342
        %368 = vmatprep.subr.mxu0 0.0
        %369 = vmatpush1.msra.mxu0 %v343
        %370 = vmatprep.subr.mxu0 0.0
        %371 = vmatpush1.msra.mxu0 0.0
        %372 = vmatprep.subr.mxu0 0.0
        %373 = vmatpush1.msra.mxu0 0.0
        %374 = vmatprep.subr.mxu0 0.0
        %375 = vmatpush1.msra.mxu0 0.0
        %376 = vmatprep.subr.mxu0 0.0
        %377 = vmatpush1.msra.mxu0 0.0
        %378 = vmatprep.subr.mxu0 0.0
        %379 = vmatpush1.msra.mxu0 0.0
        %380 = vmatprep.subr.mxu0 0.0
        %381 = vmatpush1.msra.mxu0 0.0
        %382 = vmatprep.subr.mxu0 0.0
        %383 = vmatpush1.msra.mxu0 0.0
        %384 = vmatprep.subr.mxu0 0.0
        %385 = vmatpush1.msra.mxu0 0.0
        %386 = vmatprep.subr.mxu0 0.0
        %387 = vmatpush1.msra.mxu0 0.0
        %388 = vmatprep.subr.mxu0 0.0
        %389 = vmatpush1.msra.mxu0 0.0
        %390 = vmatprep.subr.mxu0 0.0
        %391 = vmatpush1.msra.mxu0 0.0
        %392 = vmatprep.subr.mxu0 0.0
        %393 = vmatpush1.msra.mxu0 0.0
        %394 = vmatprep.subr.mxu0 0.0
        %395 = vmatpush1.msra.mxu0 0.0
        %396 = vmatprep.subr.mxu0 0.0
        %397 = vmatpush1.msra.mxu0 0.0
        %398 = vmatprep.subr.mxu0 0.0
        %399 = vmatpush1.msra.mxu0 0.0
        %400 = vmatprep.subr.mxu0 0.0
        %401 = vmatpush1.msra.mxu0 0.0
        %402 = vmatprep.subr.mxu0 0.0
        %403 = vmatpush1.msra.mxu0 0.0
        %404 = vmatprep.subr.mxu0 0.0
        %405 = vmatpush1.msra.mxu0 0.0
        %406 = vmatprep.subr.mxu0 0.0
        %407 = vmatpush1.msra.mxu0 0.0
        %408 = vmatprep.subr.mxu0 0.0
        %409 = vmatpush1.msra.mxu0 0.0
        %410 = vmatprep.subr.mxu0 0.0
        %411 = vmatpush1.msra.mxu0 0.0
        %412 = vmatprep.subr.mxu0 0.0
        %413 = vmatpush1.msra.mxu0 0.0
        %414 = vmatprep.subr.mxu0 0.0
        %415 = vmatpush1.msra.mxu0 0.0
        %416 = vmatprep.subr.mxu0 0.0
        %417 = vmatpush1.msra.mxu0 0.0
        %418 = vmatprep.subr.mxu0 0.0
        %419 = vmatpush1.msra.mxu0 0.0
        %420 = vmatprep.subr.mxu0 0.0
        %421 = vmatpush1.msra.mxu0 0.0
        %422 = vmatprep.mubr.f32.mxu0 0.0
        %423 = vmatmul.mubr.f32.gmra.mrb[0].mxu0 %v353
        %v424 = vpop.f32.mrb[0].mxu0
        %v425 = vadd.f32 %v349, %v424
        %v426 = vpop.f32.mrb[0].mxu0
        %427 = vmatprep.mubr.f32.mxu0 0.0
        %428 = vmatmul.mubr.f32.gmra.mrb[0].mxu0 %v356
        %v429 = vpop.f32.mrb[0].mxu0
        %v430 = vadd.f32 %v349, %v429
        %v431 = vpop.f32.mrb[0].mxu0
        %432 = vdwg.mxu0
        %433 = vst [vmem:[#allocation2 + $0x1] sm:$0xff] %v425
        %434 = vst [vmem:[#allocation2 + $0x9] sm:$0xff] %v430
        %s435 = scalar_lea.vmem [#allocation3], 128
        %v436 = vld [vmem:[%s435] sm:$0xff]
        %v437 = vld [vmem:[%s435 + $0x8] sm:$0xff]
        %v438 = vld [vmem:[%s435 + $0x10] sm:$0xff]
        %v439 = vld [vmem:[%s435 + $0x18] sm:$0xff]
        %v440 = vld [vmem:[%s435 + $0x20] sm:$0xff]
        %v441 = vld [vmem:[%s435 + $0x28] sm:$0xff]
        %v442 = vld [vmem:[%s435 + $0x30] sm:$0xff]
        %v443 = vld [vmem:[%s435 + $0x38] sm:$0xff]
        %v444 = vld [vmem:[%s435 + $0x40] sm:$0xff]
        %v445 = vld [vmem:[%s435 + $0x48] sm:$0xff]
        %v446 = vld [vmem:[%s435 + $0x50] sm:$0xff]
        %v447 = vld [vmem:[%s435 + $0x58] sm:$0xff]
        %v448 = vld [vmem:[%s435 + $0x60] sm:$0xff]
        %v449 = vld [vmem:[%s435 + $0x68] sm:$0xff]
        %v450 = vld [vmem:[%s435 + $0x70] sm:$0xff]
        %v451 = vld [vmem:[%s435 + $0x78] sm:$0xff]
        %v452 = vld [vmem:[#allocation2] sm:$0xff]
        %v453 = vld [vmem:[#allocation2 + $0x8] sm:$0xff]
        %v454 = vld [vmem:[#allocation3] sm:$0xff]
        %v455 = vld [vmem:[#allocation3 + $0x8] sm:$0xff]
        %v456 = vld [vmem:[#allocation3 + $0x10] sm:$0xff]
        %v457 = vld [vmem:[#allocation3 + $0x18] sm:$0xff]
        %v458 = vld [vmem:[#allocation3 + $0x20] sm:$0xff]
        %v459 = vld [vmem:[#allocation3 + $0x28] sm:$0xff]
        %v460 = vld [vmem:[#allocation3 + $0x30] sm:$0xff]
        %v461 = vld [vmem:[#allocation3 + $0x38] sm:$0xff]
        %v462 = vld [vmem:[#allocation3 + $0x40] sm:$0xff]
        %v463 = vld [vmem:[#allocation3 + $0x48] sm:$0xff]
        %v464 = vld [vmem:[#allocation3 + $0x50] sm:$0xff]
        %v465 = vld [vmem:[#allocation3 + $0x58] sm:$0xff]
        %v466 = vld [vmem:[#allocation3 + $0x60] sm:$0xff]
        %v467 = vld [vmem:[#allocation3 + $0x68] sm:$0xff]
        %v468 = vld [vmem:[#allocation3 + $0x70] sm:$0xff]
        %v469 = vld [vmem:[#allocation3 + $0x78] sm:$0xff]
        %470 = vmatprep.subr.mxu0 0.0
        %471 = vmatpush1.msra.mxu0 %v454
        %472 = vmatprep.subr.mxu0 0.0
        %473 = vmatpush1.msra.mxu0 %v455
        %474 = vmatprep.subr.mxu0 0.0
        %475 = vmatpush1.msra.mxu0 %v456
        %476 = vmatprep.subr.mxu0 0.0
        %477 = vmatpush1.msra.mxu0 %v457
        %478 = vmatprep.subr.mxu0 0.0
        %479 = vmatpush1.msra.mxu0 %v458
        %480 = vmatprep.subr.mxu0 0.0
        %481 = vmatpush1.msra.mxu0 %v459
        %482 = vmatprep.subr.mxu0 0.0
        %483 = vmatpush1.msra.mxu0 %v460
        %484 = vmatprep.subr.mxu0 0.0
        %485 = vmatpush1.msra.mxu0 %v461
        %486 = vmatprep.subr.mxu0 0.0
        %487 = vmatpush1.msra.mxu0 %v462
        %488 = vmatprep.subr.mxu0 0.0
        %489 = vmatpush1.msra.mxu0 %v463
        %490 = vmatprep.subr.mxu0 0.0
        %491 = vmatpush1.msra.mxu0 %v464
        %492 = vmatprep.subr.mxu0 0.0
        %493 = vmatpush1.msra.mxu0 %v465
        %494 = vmatprep.subr.mxu0 0.0
        %495 = vmatpush1.msra.mxu0 %v466
        %496 = vmatprep.subr.mxu0 0.0
        %497 = vmatpush1.msra.mxu0 %v467
        %498 = vmatprep.subr.mxu0 0.0
        %499 = vmatpush1.msra.mxu0 %v468
        %500 = vmatprep.subr.mxu0 0.0
        %501 = vmatpush1.msra.mxu0 %v469
        %502 = vmatprep.subr.mxu0 0.0
        %503 = vmatpush1.msra.mxu0 0.0
        %504 = vmatprep.subr.mxu0 0.0
        %505 = vmatpush1.msra.mxu0 0.0
        %506 = vmatprep.subr.mxu0 0.0
        %507 = vmatpush1.msra.mxu0 0.0
        %508 = vmatprep.subr.mxu0 0.0
        %509 = vmatpush1.msra.mxu0 0.0
        %510 = vmatprep.subr.mxu0 0.0
        %511 = vmatpush1.msra.mxu0 0.0
        %512 = vmatprep.subr.mxu0 0.0
        %513 = vmatpush1.msra.mxu0 0.0
        %514 = vmatprep.subr.mxu0 0.0
        %515 = vmatpush1.msra.mxu0 0.0
        %516 = vmatprep.subr.mxu0 0.0
        %517 = vmatpush1.msra.mxu0 0.0
        %518 = vmatprep.subr.mxu0 0.0
        %519 = vmatpush1.msra.mxu0 0.0
        %520 = vmatprep.subr.mxu0 0.0
        %521 = vmatpush1.msra.mxu0 0.0
        %522 = vmatprep.subr.mxu0 0.0
        %523 = vmatpush1.msra.mxu0 0.0
        %524 = vmatprep.subr.mxu0 0.0
        %525 = vmatpush1.msra.mxu0 0.0
        %526 = vmatprep.subr.mxu0 0.0
        %527 = vmatpush1.msra.mxu0 0.0
        %528 = vmatprep.subr.mxu0 0.0
        %529 = vmatpush1.msra.mxu0 0.0
        %530 = vmatprep.subr.mxu0 0.0
        %531 = vmatpush1.msra.mxu0 0.0
        %532 = vmatprep.subr.mxu0 0.0
        %533 = vmatpush1.msra.mxu0 0.0
        %534 = vmatprep.mubr.f32.mxu0 0.0
        %535 = vmatmul.mubr.f32.gmra.mrb[0].mxu0 %v452
        %v536 = vpop.f32.mrb[0].mxu0
        %v537 = vadd.f32 0.0, %v536
        %v538 = vpop.f32.mrb[0].mxu0
        %539 = vmatprep.mubr.f32.mxu0 0.0
        %540 = vmatmul.mubr.f32.gmra.mrb[0].mxu0 %v453
        %v541 = vpop.f32.mrb[0].mxu0
        %v542 = vadd.f32 0.0, %v541
        %v543 = vpop.f32.mrb[0].mxu0
        %544 = vdwg.mxu0
        %545 = vmatprep.subr.mxu0 0.0
        %546 = vmatpush1.msra.mxu0 %v436
        %547 = vmatprep.subr.mxu0 0.0
        %548 = vmatpush1.msra.mxu0 %v437
        %549 = vmatprep.subr.mxu0 0.0
        %550 = vmatpush1.msra.mxu0 %v438
        %551 = vmatprep.subr.mxu0 0.0
        %552 = vmatpush1.msra.mxu0 %v439
        %553 = vmatprep.subr.mxu0 0.0
        %554 = vmatpush1.msra.mxu0 %v440
        %555 = vmatprep.subr.mxu0 0.0
        %556 = vmatpush1.msra.mxu0 %v441
        %557 = vmatprep.subr.mxu0 0.0
        %558 = vmatpush1.msra.mxu0 %v442
        %559 = vmatprep.subr.mxu0 0.0
        %560 = vmatpush1.msra.mxu0 %v443
        %561 = vmatprep.subr.mxu0 0.0
        %562 = vmatpush1.msra.mxu0 %v444
        %563 = vmatprep.subr.mxu0 0.0
        %564 = vmatpush1.msra.mxu0 %v445
        %565 = vmatprep.subr.mxu0 0.0
        %566 = vmatpush1.msra.mxu0 %v446
        %567 = vmatprep.subr.mxu0 0.0
        %568 = vmatpush1.msra.mxu0 %v447
        %569 = vmatprep.subr.mxu0 0.0
        %570 = vmatpush1.msra.mxu0 %v448
        %571 = vmatprep.subr.mxu0 0.0
        %572 = vmatpush1.msra.mxu0 %v449
        %573 = vmatprep.subr.mxu0 0.0
        %574 = vmatpush1.msra.mxu0 %v450
        %575 = vmatprep.subr.mxu0 0.0
        %576 = vmatpush1.msra.mxu0 %v451
        %577 = vmatprep.subr.mxu0 0.0
        %578 = vmatpush1.msra.mxu0 0.0
        %579 = vmatprep.subr.mxu0 0.0
        %580 = vmatpush1.msra.mxu0 0.0
        %581 = vmatprep.subr.mxu0 0.0
        %582 = vmatpush1.msra.mxu0 0.0
        %583 = vmatprep.subr.mxu0 0.0
        %584 = vmatpush1.msra.mxu0 0.0
        %585 = vmatprep.subr.mxu0 0.0
        %586 = vmatpush1.msra.mxu0 0.0
        %587 = vmatprep.subr.mxu0 0.0
        %588 = vmatpush1.msra.mxu0 0.0
        %589 = vmatprep.subr.mxu0 0.0
        %590 = vmatpush1.msra.mxu0 0.0
        %591 = vmatprep.subr.mxu0 0.0
        %592 = vmatpush1.msra.mxu0 0.0
        %593 = vmatprep.subr.mxu0 0.0
        %594 = vmatpush1.msra.mxu0 0.0
        %595 = vmatprep.subr.mxu0 0.0
        %596 = vmatpush1.msra.mxu0 0.0
        %597 = vmatprep.subr.mxu0 0.0
        %598 = vmatpush1.msra.mxu0 0.0
        %599 = vmatprep.subr.mxu0 0.0
        %600 = vmatpush1.msra.mxu0 0.0
        %601 = vmatprep.subr.mxu0 0.0
        %602 = vmatpush1.msra.mxu0 0.0
        %603 = vmatprep.subr.mxu0 0.0
        %604 = vmatpush1.msra.mxu0 0.0
        %605 = vmatprep.subr.mxu0 0.0
        %606 = vmatpush1.msra.mxu0 0.0
        %607 = vmatprep.subr.mxu0 0.0
        %608 = vmatpush1.msra.mxu0 0.0
        %609 = vmatprep.mubr.f32.mxu0 0.0
        %610 = vmatmul.mubr.f32.gmra.mrb[0].mxu0 %v425
        %v611 = vpop.f32.mrb[0].mxu0
        %v612 = vadd.f32 %v537, %v611
        %v613 = vpop.f32.mrb[0].mxu0
        %614 = vmatprep.mubr.f32.mxu0 0.0
        %615 = vmatmul.mubr.f32.gmra.mrb[0].mxu0 %v430
        %v616 = vpop.f32.mrb[0].mxu0
        %v617 = vadd.f32 %v542, %v616
        %v618 = vpop.f32.mrb[0].mxu0
        %619 = vdwg.mxu0
        %v620 = vld [vmem:[#allocation2 + $0x2] sm:$0xff]
        %v621 = vld [vmem:[#allocation2 + $0xa] sm:$0xff]
        %s622 = scalar_lea.vmem [#allocation3], 256
        %v623 = vld [vmem:[%s622] sm:$0xff]
        %v624 = vld [vmem:[%s622 + $0x8] sm:$0xff]
        %v625 = vld [vmem:[%s622 + $0x10] sm:$0xff]
        %v626 = vld [vmem:[%s622 + $0x18] sm:$0xff]
        %v627 = vld [vmem:[%s622 + $0x20] sm:$0xff]
        %v628 = vld [vmem:[%s622 + $0x28] sm:$0xff]
        %v629 = vld [vmem:[%s622 + $0x30] sm:$0xff]
        %v630 = vld [vmem:[%s622 + $0x38] sm:$0xff]
        %v631 = vld [vmem:[%s622 + $0x40] sm:$0xff]
        %v632 = vld [vmem:[%s622 + $0x48] sm:$0xff]
        %v633 = vld [vmem:[%s622 + $0x50] sm:$0xff]
        %v634 = vld [vmem:[%s622 + $0x58] sm:$0xff]
        %v635 = vld [vmem:[%s622 + $0x60] sm:$0xff]
        %v636 = vld [vmem:[%s622 + $0x68] sm:$0xff]
        %v637 = vld [vmem:[%s622 + $0x70] sm:$0xff]
        %v638 = vld [vmem:[%s622 + $0x78] sm:$0xff]
        %639 = vmatprep.subr.mxu0 0.0
        %640 = vmatpush1.msra.mxu0 %v623
        %641 = vmatprep.subr.mxu0 0.0
        %642 = vmatpush1.msra.mxu0 %v624
        %643 = vmatprep.subr.mxu0 0.0
        %644 = vmatpush1.msra.mxu0 %v625
        %645 = vmatprep.subr.mxu0 0.0
        %646 = vmatpush1.msra.mxu0 %v626
        %647 = vmatprep.subr.mxu0 0.0
        %648 = vmatpush1.msra.mxu0 %v627
        %649 = vmatprep.subr.mxu0 0.0
        %650 = vmatpush1.msra.mxu0 %v628
        %651 = vmatprep.subr.mxu0 0.0
        %652 = vmatpush1.msra.mxu0 %v629
        %653 = vmatprep.subr.mxu0 0.0
        %654 = vmatpush1.msra.mxu0 %v630
        %655 = vmatprep.subr.mxu0 0.0
        %656 = vmatpush1.msra.mxu0 %v631
        %657 = vmatprep.subr.mxu0 0.0
        %658 = vmatpush1.msra.mxu0 %v632
        %659 = vmatprep.subr.mxu0 0.0
        %660 = vmatpush1.msra.mxu0 %v633
        %661 = vmatprep.subr.mxu0 0.0
        %662 = vmatpush1.msra.mxu0 %v634
        %663 = vmatprep.subr.mxu0 0.0
        %664 = vmatpush1.msra.mxu0 %v635
        %665 = vmatprep.subr.mxu0 0.0
        %666 = vmatpush1.msra.mxu0 %v636
        %667 = vmatprep.subr.mxu0 0.0
        %668 = vmatpush1.msra.mxu0 %v637
        %669 = vmatprep.subr.mxu0 0.0
        %670 = vmatpush1.msra.mxu0 %v638
        %671 = vmatprep.subr.mxu0 0.0
        %672 = vmatpush1.msra.mxu0 0.0
        %673 = vmatprep.subr.mxu0 0.0
        %674 = vmatpush1.msra.mxu0 0.0
        %675 = vmatprep.subr.mxu0 0.0
        %676 = vmatpush1.msra.mxu0 0.0
        %677 = vmatprep.subr.mxu0 0.0
        %678 = vmatpush1.msra.mxu0 0.0
        %679 = vmatprep.subr.mxu0 0.0
        %680 = vmatpush1.msra.mxu0 0.0
        %681 = vmatprep.subr.mxu0 0.0
        %682 = vmatpush1.msra.mxu0 0.0
        %683 = vmatprep.subr.mxu0 0.0
        %684 = vmatpush1.msra.mxu0 0.0
        %685 = vmatprep.subr.mxu0 0.0
        %686 = vmatpush1.msra.mxu0 0.0
        %687 = vmatprep.subr.mxu0 0.0
        %688 = vmatpush1.msra.mxu0 0.0
        %689 = vmatprep.subr.mxu0 0.0
        %690 = vmatpush1.msra.mxu0 0.0
        %691 = vmatprep.subr.mxu0 0.0
        %692 = vmatpush1.msra.mxu0 0.0
        %693 = vmatprep.subr.mxu0 0.0
        %694 = vmatpush1.msra.mxu0 0.0
        %695 = vmatprep.subr.mxu0 0.0
        %696 = vmatpush1.msra.mxu0 0.0
        %697 = vmatprep.subr.mxu0 0.0
        %698 = vmatpush1.msra.mxu0 0.0
        %699 = vmatprep.subr.mxu0 0.0
        %700 = vmatpush1.msra.mxu0 0.0
        %701 = vmatprep.subr.mxu0 0.0
        %702 = vmatpush1.msra.mxu0 0.0
        %703 = vmatprep.mubr.f32.mxu0 0.0
        %704 = vmatmul.mubr.f32.gmra.mrb[0].mxu0 %v620
        %v705 = vpop.f32.mrb[0].mxu0
        %v706 = vadd.f32 0.0, %v705
        %v707 = vpop.f32.mrb[0].mxu0
        %708 = vmatprep.mubr.f32.mxu0 0.0
        %709 = vmatmul.mubr.f32.gmra.mrb[0].mxu0 %v621
        %v710 = vpop.f32.mrb[0].mxu0
        %v711 = vadd.f32 0.0, %v710
        %v712 = vpop.f32.mrb[0].mxu0
        %713 = vdwg.mxu0
        %v714 = vadd.f32 %v612, %v706
        %v715 = vadd.f32 %v617, %v711
        %v716 = vld [vmem:[%s5] sm:$0x1]
        %v718 = vlaneseq
        %v719 = vshrl.u32 %v718, 7
        %v720 = vsub.s32 0, %v719
        %v721 = vrot.slane %v716, %v720
        %v723 = vadd.f32 %v714, %v721
        %v724 = vadd.f32 %v715, %v721
        %vm725 = vcmp.ge.f32.partialorder %v723, 0.0
        %vm726 = vcmp.ge.f32.partialorder %v724, 0.0
        %v727 = vmul.f32 %v723, 0.01
        %v728 = vmul.f32 %v724, 0.01
        %v729 = vsel %vm725, %v723, %v727
        %v730 = vsel %vm726, %v724, %v728
        %731 = vst [vmem:[#allocation2 + $0x1] sm:$0xff] %v729
        %732 = vst [vmem:[#allocation2 + $0x9] sm:$0xff] %v730
        %s733 = scalar_lea.vmem [#allocation5], 128
        %v734 = vld [vmem:[%s733] sm:$0xff]
        %v735 = vld [vmem:[%s733 + $0x8] sm:$0xff]
        %v736 = vld [vmem:[%s733 + $0x10] sm:$0xff]
        %v737 = vld [vmem:[%s733 + $0x18] sm:$0xff]
        %v738 = vld [vmem:[%s733 + $0x20] sm:$0xff]
        %v739 = vld [vmem:[%s733 + $0x28] sm:$0xff]
        %v740 = vld [vmem:[%s733 + $0x30] sm:$0xff]
        %v741 = vld [vmem:[%s733 + $0x38] sm:$0xff]
        %v742 = vld [vmem:[%s733 + $0x40] sm:$0xff]
        %v743 = vld [vmem:[%s733 + $0x48] sm:$0xff]
        %v744 = vld [vmem:[%s733 + $0x50] sm:$0xff]
        %v745 = vld [vmem:[%s733 + $0x58] sm:$0xff]
        %v746 = vld [vmem:[%s733 + $0x60] sm:$0xff]
        %v747 = vld [vmem:[%s733 + $0x68] sm:$0xff]
        %v748 = vld [vmem:[%s733 + $0x70] sm:$0xff]
        %v749 = vld [vmem:[%s733 + $0x78] sm:$0xff]
        %v750 = vld [vmem:[#allocation2] sm:$0xff]
        %v751 = vld [vmem:[#allocation2 + $0x8] sm:$0xff]
        %v752 = vld [vmem:[#allocation5] sm:$0xff]
        %v753 = vld [vmem:[#allocation5 + $0x8] sm:$0xff]
        %v754 = vld [vmem:[#allocation5 + $0x10] sm:$0xff]
        %v755 = vld [vmem:[#allocation5 + $0x18] sm:$0xff]
        %v756 = vld [vmem:[#allocation5 + $0x20] sm:$0xff]
        %v757 = vld [vmem:[#allocation5 + $0x28] sm:$0xff]
        %v758 = vld [vmem:[#allocation5 + $0x30] sm:$0xff]
        %v759 = vld [vmem:[#allocation5 + $0x38] sm:$0xff]
        %v760 = vld [vmem:[#allocation5 + $0x40] sm:$0xff]
        %v761 = vld [vmem:[#allocation5 + $0x48] sm:$0xff]
        %v762 = vld [vmem:[#allocation5 + $0x50] sm:$0xff]
        %v763 = vld [vmem:[#allocation5 + $0x58] sm:$0xff]
        %v764 = vld [vmem:[#allocation5 + $0x60] sm:$0xff]
        %v765 = vld [vmem:[#allocation5 + $0x68] sm:$0xff]
        %v766 = vld [vmem:[#allocation5 + $0x70] sm:$0xff]
        %v767 = vld [vmem:[#allocation5 + $0x78] sm:$0xff]
        %768 = vmatprep.subr.mxu0 0.0
        %769 = vmatpush1.msra.mxu0 %v752
        %770 = vmatprep.subr.mxu0 0.0
        %771 = vmatpush1.msra.mxu0 %v753
        %772 = vmatprep.subr.mxu0 0.0
        %773 = vmatpush1.msra.mxu0 %v754
        %774 = vmatprep.subr.mxu0 0.0
        %775 = vmatpush1.msra.mxu0 %v755
        %776 = vmatprep.subr.mxu0 0.0
        %777 = vmatpush1.msra.mxu0 %v756
        %778 = vmatprep.subr.mxu0 0.0
        %779 = vmatpush1.msra.mxu0 %v757
        %780 = vmatprep.subr.mxu0 0.0
        %781 = vmatpush1.msra.mxu0 %v758
        %782 = vmatprep.subr.mxu0 0.0
        %783 = vmatpush1.msra.mxu0 %v759
        %784 = vmatprep.subr.mxu0 0.0
        %785 = vmatpush1.msra.mxu0 %v760
        %786 = vmatprep.subr.mxu0 0.0
        %787 = vmatpush1.msra.mxu0 %v761
        %788 = vmatprep.subr.mxu0 0.0
        %789 = vmatpush1.msra.mxu0 %v762
        %790 = vmatprep.subr.mxu0 0.0
        %791 = vmatpush1.msra.mxu0 %v763
        %792 = vmatprep.subr.mxu0 0.0
        %793 = vmatpush1.msra.mxu0 %v764
        %794 = vmatprep.subr.mxu0 0.0
        %795 = vmatpush1.msra.mxu0 %v765
        %796 = vmatprep.subr.mxu0 0.0
        %797 = vmatpush1.msra.mxu0 %v766
        %798 = vmatprep.subr.mxu0 0.0
        %799 = vmatpush1.msra.mxu0 %v767
        %800 = vmatprep.subr.mxu0 0.0
        %801 = vmatpush1.msra.mxu0 0.0
        %802 = vmatprep.subr.mxu0 0.0
        %803 = vmatpush1.msra.mxu0 0.0
        %804 = vmatprep.subr.mxu0 0.0
        %805 = vmatpush1.msra.mxu0 0.0
        %806 = vmatprep.subr.mxu0 0.0
        %807 = vmatpush1.msra.mxu0 0.0
        %808 = vmatprep.subr.mxu0 0.0
        %809 = vmatpush1.msra.mxu0 0.0
        %810 = vmatprep.subr.mxu0 0.0
        %811 = vmatpush1.msra.mxu0 0.0
        %812 = vmatprep.subr.mxu0 0.0
        %813 = vmatpush1.msra.mxu0 0.0
        %814 = vmatprep.subr.mxu0 0.0
        %815 = vmatpush1.msra.mxu0 0.0
        %816 = vmatprep.subr.mxu0 0.0
        %817 = vmatpush1.msra.mxu0 0.0
        %818 = vmatprep.subr.mxu0 0.0
        %819 = vmatpush1.msra.mxu0 0.0
        %820 = vmatprep.subr.mxu0 0.0
        %821 = vmatpush1.msra.mxu0 0.0
        %822 = vmatprep.subr.mxu0 0.0
        %823 = vmatpush1.msra.mxu0 0.0
        %824 = vmatprep.subr.mxu0 0.0
        %825 = vmatpush1.msra.mxu0 0.0
        %826 = vmatprep.subr.mxu0 0.0
        %827 = vmatpush1.msra.mxu0 0.0
        %828 = vmatprep.subr.mxu0 0.0
        %829 = vmatpush1.msra.mxu0 0.0
        %830 = vmatprep.subr.mxu0 0.0
        %831 = vmatpush1.msra.mxu0 0.0
        %832 = vmatprep.mubr.f32.mxu0 0.0
        %833 = vmatmul.mubr.f32.gmra.mrb[0].mxu0 %v750
        %v834 = vpop.f32.mrb[0].mxu0
        %v835 = vadd.f32 0.0, %v834
        %v836 = vpop.f32.mrb[0].mxu0
        %837 = vmatprep.mubr.f32.mxu0 0.0
        %838 = vmatmul.mubr.f32.gmra.mrb[0].mxu0 %v751
        %v839 = vpop.f32.mrb[0].mxu0
        %v840 = vadd.f32 0.0, %v839
        %v841 = vpop.f32.mrb[0].mxu0
        %842 = vdwg.mxu0
        %843 = vmatprep.subr.mxu0 0.0
        %844 = vmatpush1.msra.mxu0 %v734
        %845 = vmatprep.subr.mxu0 0.0
        %846 = vmatpush1.msra.mxu0 %v735
        %847 = vmatprep.subr.mxu0 0.0
        %848 = vmatpush1.msra.mxu0 %v736
        %849 = vmatprep.subr.mxu0 0.0
        %850 = vmatpush1.msra.mxu0 %v737
        %851 = vmatprep.subr.mxu0 0.0
        %852 = vmatpush1.msra.mxu0 %v738
        %853 = vmatprep.subr.mxu0 0.0
        %854 = vmatpush1.msra.mxu0 %v739
        %855 = vmatprep.subr.mxu0 0.0
        %856 = vmatpush1.msra.mxu0 %v740
        %857 = vmatprep.subr.mxu0 0.0
        %858 = vmatpush1.msra.mxu0 %v741
        %859 = vmatprep.subr.mxu0 0.0
        %860 = vmatpush1.msra.mxu0 %v742
        %861 = vmatprep.subr.mxu0 0.0
        %862 = vmatpush1.msra.mxu0 %v743
        %863 = vmatprep.subr.mxu0 0.0
        %864 = vmatpush1.msra.mxu0 %v744
        %865 = vmatprep.subr.mxu0 0.0
        %866 = vmatpush1.msra.mxu0 %v745
        %867 = vmatprep.subr.mxu0 0.0
        %868 = vmatpush1.msra.mxu0 %v746
        %869 = vmatprep.subr.mxu0 0.0
        %870 = vmatpush1.msra.mxu0 %v747
        %871 = vmatprep.subr.mxu0 0.0
        %872 = vmatpush1.msra.mxu0 %v748
        %873 = vmatprep.subr.mxu0 0.0
        %874 = vmatpush1.msra.mxu0 %v749
        %875 = vmatprep.subr.mxu0 0.0
        %876 = vmatpush1.msra.mxu0 0.0
        %877 = vmatprep.subr.mxu0 0.0
        %878 = vmatpush1.msra.mxu0 0.0
        %879 = vmatprep.subr.mxu0 0.0
        %880 = vmatpush1.msra.mxu0 0.0
        %881 = vmatprep.subr.mxu0 0.0
        %882 = vmatpush1.msra.mxu0 0.0
        %883 = vmatprep.subr.mxu0 0.0
        %884 = vmatpush1.msra.mxu0 0.0
        %885 = vmatprep.subr.mxu0 0.0
        %886 = vmatpush1.msra.mxu0 0.0
        %887 = vmatprep.subr.mxu0 0.0
        %888 = vmatpush1.msra.mxu0 0.0
        %889 = vmatprep.subr.mxu0 0.0
        %890 = vmatpush1.msra.mxu0 0.0
        %891 = vmatprep.subr.mxu0 0.0
        %892 = vmatpush1.msra.mxu0 0.0
        %893 = vmatprep.subr.mxu0 0.0
        %894 = vmatpush1.msra.mxu0 0.0
        %895 = vmatprep.subr.mxu0 0.0
        %896 = vmatpush1.msra.mxu0 0.0
        %897 = vmatprep.subr.mxu0 0.0
        %898 = vmatpush1.msra.mxu0 0.0
        %899 = vmatprep.subr.mxu0 0.0
        %900 = vmatpush1.msra.mxu0 0.0
        %901 = vmatprep.subr.mxu0 0.0
        %902 = vmatpush1.msra.mxu0 0.0
        %903 = vmatprep.subr.mxu0 0.0
        %904 = vmatpush1.msra.mxu0 0.0
        %905 = vmatprep.subr.mxu0 0.0
        %906 = vmatpush1.msra.mxu0 0.0
        %907 = vmatprep.mubr.f32.mxu0 0.0
        %908 = vmatmul.mubr.f32.gmra.mrb[0].mxu0 %v729
        %v909 = vpop.f32.mrb[0].mxu0
        %v910 = vadd.f32 %v835, %v909
        %v911 = vpop.f32.mrb[0].mxu0
        %912 = vmatprep.mubr.f32.mxu0 0.0
        %913 = vmatmul.mubr.f32.gmra.mrb[0].mxu0 %v730
        %v914 = vpop.f32.mrb[0].mxu0
        %v915 = vadd.f32 %v840, %v914
        %v916 = vpop.f32.mrb[0].mxu0
        %917 = vdwg.mxu0
        %v918 = vld [vmem:[#allocation2 + $0x2] sm:$0xff]
        %v919 = vld [vmem:[#allocation2 + $0xa] sm:$0xff]
        %s920 = scalar_lea.vmem [#allocation5], 256
        %v921 = vld [vmem:[%s920] sm:$0xff]
        %v922 = vld [vmem:[%s920 + $0x8] sm:$0xff]
        %v923 = vld [vmem:[%s920 + $0x10] sm:$0xff]
        %v924 = vld [vmem:[%s920 + $0x18] sm:$0xff]
        %v925 = vld [vmem:[%s920 + $0x20] sm:$0xff]
        %v926 = vld [vmem:[%s920 + $0x28] sm:$0xff]
        %v927 = vld [vmem:[%s920 + $0x30] sm:$0xff]
        %v928 = vld [vmem:[%s920 + $0x38] sm:$0xff]
        %v929 = vld [vmem:[%s920 + $0x40] sm:$0xff]
        %v930 = vld [vmem:[%s920 + $0x48] sm:$0xff]
        %v931 = vld [vmem:[%s920 + $0x50] sm:$0xff]
        %v932 = vld [vmem:[%s920 + $0x58] sm:$0xff]
        %v933 = vld [vmem:[%s920 + $0x60] sm:$0xff]
        %v934 = vld [vmem:[%s920 + $0x68] sm:$0xff]
        %v935 = vld [vmem:[%s920 + $0x70] sm:$0xff]
        %v936 = vld [vmem:[%s920 + $0x78] sm:$0xff]
        %937 = vmatprep.subr.mxu0 0.0
        %938 = vmatpush1.msra.mxu0 %v921
        %939 = vmatprep.subr.mxu0 0.0
        %940 = vmatpush1.msra.mxu0 %v922
        %941 = vmatprep.subr.mxu0 0.0
        %942 = vmatpush1.msra.mxu0 %v923
        %943 = vmatprep.subr.mxu0 0.0
        %944 = vmatpush1.msra.mxu0 %v924
        %945 = vmatprep.subr.mxu0 0.0
        %946 = vmatpush1.msra.mxu0 %v925
        %947 = vmatprep.subr.mxu0 0.0
        %948 = vmatpush1.msra.mxu0 %v926
        %949 = vmatprep.subr.mxu0 0.0
        %950 = vmatpush1.msra.mxu0 %v927
        %951 = vmatprep.subr.mxu0 0.0
        %952 = vmatpush1.msra.mxu0 %v928
        %953 = vmatprep.subr.mxu0 0.0
        %954 = vmatpush1.msra.mxu0 %v929
        %955 = vmatprep.subr.mxu0 0.0
        %956 = vmatpush1.msra.mxu0 %v930
        %957 = vmatprep.subr.mxu0 0.0
        %958 = vmatpush1.msra.mxu0 %v931
        %959 = vmatprep.subr.mxu0 0.0
        %960 = vmatpush1.msra.mxu0 %v932
        %961 = vmatprep.subr.mxu0 0.0
        %962 = vmatpush1.msra.mxu0 %v933
        %963 = vmatprep.subr.mxu0 0.0
        %964 = vmatpush1.msra.mxu0 %v934
        %965 = vmatprep.subr.mxu0 0.0
        %966 = vmatpush1.msra.mxu0 %v935
        %967 = vmatprep.subr.mxu0 0.0
        %968 = vmatpush1.msra.mxu0 %v936
        %969 = vmatprep.subr.mxu0 0.0
        %970 = vmatpush1.msra.mxu0 0.0
        %971 = vmatprep.subr.mxu0 0.0
        %972 = vmatpush1.msra.mxu0 0.0
        %973 = vmatprep.subr.mxu0 0.0
        %974 = vmatpush1.msra.mxu0 0.0
        %975 = vmatprep.subr.mxu0 0.0
        %976 = vmatpush1.msra.mxu0 0.0
        %977 = vmatprep.subr.mxu0 0.0
        %978 = vmatpush1.msra.mxu0 0.0
        %979 = vmatprep.subr.mxu0 0.0
        %980 = vmatpush1.msra.mxu0 0.0
        %981 = vmatprep.subr.mxu0 0.0
        %982 = vmatpush1.msra.mxu0 0.0
        %983 = vmatprep.subr.mxu0 0.0
        %984 = vmatpush1.msra.mxu0 0.0
        %985 = vmatprep.subr.mxu0 0.0
        %986 = vmatpush1.msra.mxu0 0.0
        %987 = vmatprep.subr.mxu0 0.0
        %988 = vmatpush1.msra.mxu0 0.0
        %989 = vmatprep.subr.mxu0 0.0
        %990 = vmatpush1.msra.mxu0 0.0
        %991 = vmatprep.subr.mxu0 0.0
        %992 = vmatpush1.msra.mxu0 0.0
        %993 = vmatprep.subr.mxu0 0.0
        %994 = vmatpush1.msra.mxu0 0.0
        %995 = vmatprep.subr.mxu0 0.0
        %996 = vmatpush1.msra.mxu0 0.0
        %997 = vmatprep.subr.mxu0 0.0
        %998 = vmatpush1.msra.mxu0 0.0
        %999 = vmatprep.subr.mxu0 0.0
        %1000 = vmatpush1.msra.mxu0 0.0
        %1001 = vmatprep.mubr.f32.mxu0 0.0
        %1002 = vmatmul.mubr.f32.gmra.mrb[0].mxu0 %v918
        %v1003 = vpop.f32.mrb[0].mxu0
        %v1004 = vadd.f32 0.0, %v1003
        %v1005 = vpop.f32.mrb[0].mxu0
        %1006 = vmatprep.mubr.f32.mxu0 0.0
        %1007 = vmatmul.mubr.f32.gmra.mrb[0].mxu0 %v919
        %v1008 = vpop.f32.mrb[0].mxu0
        %v1009 = vadd.f32 0.0, %v1008
        %v1010 = vpop.f32.mrb[0].mxu0
        %1011 = vdwg.mxu0
        %v1012 = vadd.f32 %v910, %v1004
        %v1013 = vadd.f32 %v915, %v1009
        %v1014 = vsub.f32 %v425, %v1012
        %v1015 = vsub.f32 %v430, %v1013
        %1016 = vst [vmem:[#allocation2 + $0x1] sm:$0xff] %v1014
        %1017 = vst [vmem:[#allocation2 + $0x9] sm:$0xff] %v1015
        %s1018 = scalar_lea.vmem [#allocation3], 512
        %v1019 = vld [vmem:[%s1018] sm:$0xff]
        %v1020 = vld [vmem:[%s1018 + $0x8] sm:$0xff]
        %v1021 = vld [vmem:[%s1018 + $0x10] sm:$0xff]
        %v1022 = vld [vmem:[%s1018 + $0x18] sm:$0xff]
        %v1023 = vld [vmem:[%s1018 + $0x20] sm:$0xff]
        %v1024 = vld [vmem:[%s1018 + $0x28] sm:$0xff]
        %v1025 = vld [vmem:[%s1018 + $0x30] sm:$0xff]
        %v1026 = vld [vmem:[%s1018 + $0x38] sm:$0xff]
        %v1027 = vld [vmem:[%s1018 + $0x40] sm:$0xff]
        %v1028 = vld [vmem:[%s1018 + $0x48] sm:$0xff]
        %v1029 = vld [vmem:[%s1018 + $0x50] sm:$0xff]
        %v1030 = vld [vmem:[%s1018 + $0x58] sm:$0xff]
        %v1031 = vld [vmem:[%s1018 + $0x60] sm:$0xff]
        %v1032 = vld [vmem:[%s1018 + $0x68] sm:$0xff]
        %v1033 = vld [vmem:[%s1018 + $0x70] sm:$0xff]
        %v1034 = vld [vmem:[%s1018 + $0x78] sm:$0xff]
        %v1035 = vld [vmem:[#allocation2] sm:$0xff]
        %v1036 = vld [vmem:[#allocation2 + $0x8] sm:$0xff]
        %s1037 = scalar_lea.vmem [#allocation3], 384
        %v1038 = vld [vmem:[%s1037] sm:$0xff]
        %v1039 = vld [vmem:[%s1037 + $0x8] sm:$0xff]
        %v1040 = vld [vmem:[%s1037 + $0x10] sm:$0xff]
        %v1041 = vld [vmem:[%s1037 + $0x18] sm:$0xff]
        %v1042 = vld [vmem:[%s1037 + $0x20] sm:$0xff]
        %v1043 = vld [vmem:[%s1037 + $0x28] sm:$0xff]
        %v1044 = vld [vmem:[%s1037 + $0x30] sm:$0xff]
        %v1045 = vld [vmem:[%s1037 + $0x38] sm:$0xff]
        %v1046 = vld [vmem:[%s1037 + $0x40] sm:$0xff]
        %v1047 = vld [vmem:[%s1037 + $0x48] sm:$0xff]
        %v1048 = vld [vmem:[%s1037 + $0x50] sm:$0xff]
        %v1049 = vld [vmem:[%s1037 + $0x58] sm:$0xff]
        %v1050 = vld [vmem:[%s1037 + $0x60] sm:$0xff]
        %v1051 = vld [vmem:[%s1037 + $0x68] sm:$0xff]
        %v1052 = vld [vmem:[%s1037 + $0x70] sm:$0xff]
        %v1053 = vld [vmem:[%s1037 + $0x78] sm:$0xff]
        %1054 = vmatprep.subr.mxu0 0.0
        %1055 = vmatpush1.msra.mxu0 %v1038
        %1056 = vmatprep.subr.mxu0 0.0
        %1057 = vmatpush1.msra.mxu0 %v1039
        %1058 = vmatprep.subr.mxu0 0.0
        %1059 = vmatpush1.msra.mxu0 %v1040
        %1060 = vmatprep.subr.mxu0 0.0
        %1061 = vmatpush1.msra.mxu0 %v1041
        %1062 = vmatprep.subr.mxu0 0.0
        %1063 = vmatpush1.msra.mxu0 %v1042
        %1064 = vmatprep.subr.mxu0 0.0
        %1065 = vmatpush1.msra.mxu0 %v1043
        %1066 = vmatprep.subr.mxu0 0.0
        %1067 = vmatpush1.msra.mxu0 %v1044
        %1068 = vmatprep.subr.mxu0 0.0
        %1069 = vmatpush1.msra.mxu0 %v1045
        %1070 = vmatprep.subr.mxu0 0.0
        %1071 = vmatpush1.msra.mxu0 %v1046
        %1072 = vmatprep.subr.mxu0 0.0
        %1073 = vmatpush1.msra.mxu0 %v1047
        %1074 = vmatprep.subr.mxu0 0.0
        %1075 = vmatpush1.msra.mxu0 %v1048
        %1076 = vmatprep.subr.mxu0 0.0
        %1077 = vmatpush1.msra.mxu0 %v1049
        %1078 = vmatprep.subr.mxu0 0.0
        %1079 = vmatpush1.msra.mxu0 %v1050
        %1080 = vmatprep.subr.mxu0 0.0
        %1081 = vmatpush1.msra.mxu0 %v1051
        %1082 = vmatprep.subr.mxu0 0.0
        %1083 = vmatpush1.msra.mxu0 %v1052
        %1084 = vmatprep.subr.mxu0 0.0
        %1085 = vmatpush1.msra.mxu0 %v1053
        %1086 = vmatprep.subr.mxu0 0.0
        %1087 = vmatpush1.msra.mxu0 0.0
        %1088 = vmatprep.subr.mxu0 0.0
        %1089 = vmatpush1.msra.mxu0 0.0
        %1090 = vmatprep.subr.mxu0 0.0
        %1091 = vmatpush1.msra.mxu0 0.0
        %1092 = vmatprep.subr.mxu0 0.0
        %1093 = vmatpush1.msra.mxu0 0.0
        %1094 = vmatprep.subr.mxu0 0.0
        %1095 = vmatpush1.msra.mxu0 0.0
        %1096 = vmatprep.subr.mxu0 0.0
        %1097 = vmatpush1.msra.mxu0 0.0
        %1098 = vmatprep.subr.mxu0 0.0
        %1099 = vmatpush1.msra.mxu0 0.0
        %1100 = vmatprep.subr.mxu0 0.0
        %1101 = vmatpush1.msra.mxu0 0.0
        %1102 = vmatprep.subr.mxu0 0.0
        %1103 = vmatpush1.msra.mxu0 0.0
        %1104 = vmatprep.subr.mxu0 0.0
        %1105 = vmatpush1.msra.mxu0 0.0
        %1106 = vmatprep.subr.mxu0 0.0
        %1107 = vmatpush1.msra.mxu0 0.0
        %1108 = vmatprep.subr.mxu0 0.0
        %1109 = vmatpush1.msra.mxu0 0.0
        %1110 = vmatprep.subr.mxu0 0.0
        %1111 = vmatpush1.msra.mxu0 0.0
        %1112 = vmatprep.subr.mxu0 0.0
        %1113 = vmatpush1.msra.mxu0 0.0
        %1114 = vmatprep.subr.mxu0 0.0
        %1115 = vmatpush1.msra.mxu0 0.0
        %1116 = vmatprep.subr.mxu0 0.0
        %1117 = vmatpush1.msra.mxu0 0.0
        %1118 = vmatprep.mubr.f32.mxu0 0.0
        %1119 = vmatmul.mubr.f32.gmra.mrb[0].mxu0 %v1035
        %v1120 = vpop.f32.mrb[0].mxu0
        %v1121 = vadd.f32 0.0, %v1120
        %v1122 = vpop.f32.mrb[0].mxu0
        %1123 = vmatprep.mubr.f32.mxu0 0.0
        %1124 = vmatmul.mubr.f32.gmra.mrb[0].mxu0 %v1036
        %v1125 = vpop.f32.mrb[0].mxu0
        %v1126 = vadd.f32 0.0, %v1125
        %v1127 = vpop.f32.mrb[0].mxu0
        %1128 = vdwg.mxu0
        %1129 = vmatprep.subr.mxu0 0.0
        %1130 = vmatpush1.msra.mxu0 %v1019
        %1131 = vmatprep.subr.mxu0 0.0
        %1132 = vmatpush1.msra.mxu0 %v1020
        %1133 = vmatprep.subr.mxu0 0.0
        %1134 = vmatpush1.msra.mxu0 %v1021
        %1135 = vmatprep.subr.mxu0 0.0
        %1136 = vmatpush1.msra.mxu0 %v1022
        %1137 = vmatprep.subr.mxu0 0.0
        %1138 = vmatpush1.msra.mxu0 %v1023
        %1139 = vmatprep.subr.mxu0 0.0
        %1140 = vmatpush1.msra.mxu0 %v1024
        %1141 = vmatprep.subr.mxu0 0.0
        %1142 = vmatpush1.msra.mxu0 %v1025
        %1143 = vmatprep.subr.mxu0 0.0
        %1144 = vmatpush1.msra.mxu0 %v1026
        %1145 = vmatprep.subr.mxu0 0.0
        %1146 = vmatpush1.msra.mxu0 %v1027
        %1147 = vmatprep.subr.mxu0 0.0
        %1148 = vmatpush1.msra.mxu0 %v1028
        %1149 = vmatprep.subr.mxu0 0.0
        %1150 = vmatpush1.msra.mxu0 %v1029
        %1151 = vmatprep.subr.mxu0 0.0
        %1152 = vmatpush1.msra.mxu0 %v1030
        %1153 = vmatprep.subr.mxu0 0.0
        %1154 = vmatpush1.msra.mxu0 %v1031
        %1155 = vmatprep.subr.mxu0 0.0
        %1156 = vmatpush1.msra.mxu0 %v1032
        %1157 = vmatprep.subr.mxu0 0.0
        %1158 = vmatpush1.msra.mxu0 %v1033
        %1159 = vmatprep.subr.mxu0 0.0
        %1160 = vmatpush1.msra.mxu0 %v1034
        %1161 = vmatprep.subr.mxu0 0.0
        %1162 = vmatpush1.msra.mxu0 0.0
        %1163 = vmatprep.subr.mxu0 0.0
        %1164 = vmatpush1.msra.mxu0 0.0
        %1165 = vmatprep.subr.mxu0 0.0
        %1166 = vmatpush1.msra.mxu0 0.0
        %1167 = vmatprep.subr.mxu0 0.0
        %1168 = vmatpush1.msra.mxu0 0.0
        %1169 = vmatprep.subr.mxu0 0.0
        %1170 = vmatpush1.msra.mxu0 0.0
        %1171 = vmatprep.subr.mxu0 0.0
        %1172 = vmatpush1.msra.mxu0 0.0
        %1173 = vmatprep.subr.mxu0 0.0
        %1174 = vmatpush1.msra.mxu0 0.0
        %1175 = vmatprep.subr.mxu0 0.0
        %1176 = vmatpush1.msra.mxu0 0.0
        %1177 = vmatprep.subr.mxu0 0.0
        %1178 = vmatpush1.msra.mxu0 0.0
        %1179 = vmatprep.subr.mxu0 0.0
        %1180 = vmatpush1.msra.mxu0 0.0
        %1181 = vmatprep.subr.mxu0 0.0
        %1182 = vmatpush1.msra.mxu0 0.0
        %1183 = vmatprep.subr.mxu0 0.0
        %1184 = vmatpush1.msra.mxu0 0.0
        %1185 = vmatprep.subr.mxu0 0.0
        %1186 = vmatpush1.msra.mxu0 0.0
        %1187 = vmatprep.subr.mxu0 0.0
        %1188 = vmatpush1.msra.mxu0 0.0
        %1189 = vmatprep.subr.mxu0 0.0
        %1190 = vmatpush1.msra.mxu0 0.0
        %1191 = vmatprep.subr.mxu0 0.0
        %1192 = vmatpush1.msra.mxu0 0.0
        %1193 = vmatprep.mubr.f32.mxu0 0.0
        %1194 = vmatmul.mubr.f32.gmra.mrb[0].mxu0 %v1014
        %v1195 = vpop.f32.mrb[0].mxu0
        %v1196 = vadd.f32 %v1121, %v1195
        %v1197 = vpop.f32.mrb[0].mxu0
        %1198 = vmatprep.mubr.f32.mxu0 0.0
        %1199 = vmatmul.mubr.f32.gmra.mrb[0].mxu0 %v1015
        %v1200 = vpop.f32.mrb[0].mxu0
        %v1201 = vadd.f32 %v1126, %v1200
        %v1202 = vpop.f32.mrb[0].mxu0
        %1203 = vdwg.mxu0
        %v1204 = vld [vmem:[#allocation2 + $0x2] sm:$0xff]
        %v1205 = vld [vmem:[#allocation2 + $0xa] sm:$0xff]
        %s1206 = scalar_lea.vmem [#allocation3], 640
        %v1207 = vld [vmem:[%s1206] sm:$0xff]
        %v1208 = vld [vmem:[%s1206 + $0x8] sm:$0xff]
        %v1209 = vld [vmem:[%s1206 + $0x10] sm:$0xff]
        %v1210 = vld [vmem:[%s1206 + $0x18] sm:$0xff]
        %v1211 = vld [vmem:[%s1206 + $0x20] sm:$0xff]
        %v1212 = vld [vmem:[%s1206 + $0x28] sm:$0xff]
        %v1213 = vld [vmem:[%s1206 + $0x30] sm:$0xff]
        %v1214 = vld [vmem:[%s1206 + $0x38] sm:$0xff]
        %v1215 = vld [vmem:[%s1206 + $0x40] sm:$0xff]
        %v1216 = vld [vmem:[%s1206 + $0x48] sm:$0xff]
        %v1217 = vld [vmem:[%s1206 + $0x50] sm:$0xff]
        %v1218 = vld [vmem:[%s1206 + $0x58] sm:$0xff]
        %v1219 = vld [vmem:[%s1206 + $0x60] sm:$0xff]
        %v1220 = vld [vmem:[%s1206 + $0x68] sm:$0xff]
        %v1221 = vld [vmem:[%s1206 + $0x70] sm:$0xff]
        %v1222 = vld [vmem:[%s1206 + $0x78] sm:$0xff]
        %1223 = vmatprep.subr.mxu0 0.0
        %1224 = vmatpush1.msra.mxu0 %v1207
        %1225 = vmatprep.subr.mxu0 0.0
        %1226 = vmatpush1.msra.mxu0 %v1208
        %1227 = vmatprep.subr.mxu0 0.0
        %1228 = vmatpush1.msra.mxu0 %v1209
        %1229 = vmatprep.subr.mxu0 0.0
        %1230 = vmatpush1.msra.mxu0 %v1210
        %1231 = vmatprep.subr.mxu0 0.0
        %1232 = vmatpush1.msra.mxu0 %v1211
        %1233 = vmatprep.subr.mxu0 0.0
        %1234 = vmatpush1.msra.mxu0 %v1212
        %1235 = vmatprep.subr.mxu0 0.0
        %1236 = vmatpush1.msra.mxu0 %v1213
        %1237 = vmatprep.subr.mxu0 0.0
        %1238 = vmatpush1.msra.mxu0 %v1214
        %1239 = vmatprep.subr.mxu0 0.0
        %1240 = vmatpush1.msra.mxu0 %v1215
        %1241 = vmatprep.subr.mxu0 0.0
        %1242 = vmatpush1.msra.mxu0 %v1216
        %1243 = vmatprep.subr.mxu0 0.0
        %1244 = vmatpush1.msra.mxu0 %v1217
        %1245 = vmatprep.subr.mxu0 0.0
        %1246 = vmatpush1.msra.mxu0 %v1218
        %1247 = vmatprep.subr.mxu0 0.0
        %1248 = vmatpush1.msra.mxu0 %v1219
        %1249 = vmatprep.subr.mxu0 0.0
        %1250 = vmatpush1.msra.mxu0 %v1220
        %1251 = vmatprep.subr.mxu0 0.0
        %1252 = vmatpush1.msra.mxu0 %v1221
        %1253 = vmatprep.subr.mxu0 0.0
        %1254 = vmatpush1.msra.mxu0 %v1222
        %1255 = vmatprep.subr.mxu0 0.0
        %1256 = vmatpush1.msra.mxu0 0.0
        %1257 = vmatprep.subr.mxu0 0.0
        %1258 = vmatpush1.msra.mxu0 0.0
        %1259 = vmatprep.subr.mxu0 0.0
        %1260 = vmatpush1.msra.mxu0 0.0
        %1261 = vmatprep.subr.mxu0 0.0
        %1262 = vmatpush1.msra.mxu0 0.0
        %1263 = vmatprep.subr.mxu0 0.0
        %1264 = vmatpush1.msra.mxu0 0.0
        %1265 = vmatprep.subr.mxu0 0.0
        %1266 = vmatpush1.msra.mxu0 0.0
        %1267 = vmatprep.subr.mxu0 0.0
        %1268 = vmatpush1.msra.mxu0 0.0
        %1269 = vmatprep.subr.mxu0 0.0
        %1270 = vmatpush1.msra.mxu0 0.0
        %1271 = vmatprep.subr.mxu0 0.0
        %1272 = vmatpush1.msra.mxu0 0.0
        %1273 = vmatprep.subr.mxu0 0.0
        %1274 = vmatpush1.msra.mxu0 0.0
        %1275 = vmatprep.subr.mxu0 0.0
        %1276 = vmatpush1.msra.mxu0 0.0
        %1277 = vmatprep.subr.mxu0 0.0
        %1278 = vmatpush1.msra.mxu0 0.0
        %1279 = vmatprep.subr.mxu0 0.0
        %1280 = vmatpush1.msra.mxu0 0.0
        %1281 = vmatprep.subr.mxu0 0.0
        %1282 = vmatpush1.msra.mxu0 0.0
        %1283 = vmatprep.subr.mxu0 0.0
        %1284 = vmatpush1.msra.mxu0 0.0
        %1285 = vmatprep.subr.mxu0 0.0
        %1286 = vmatpush1.msra.mxu0 0.0
        %1287 = vmatprep.mubr.f32.mxu0 0.0
        %1288 = vmatmul.mubr.f32.gmra.mrb[0].mxu0 %v1204
        %v1289 = vpop.f32.mrb[0].mxu0
        %v1290 = vadd.f32 0.0, %v1289
        %v1291 = vpop.f32.mrb[0].mxu0
        %1292 = vmatprep.mubr.f32.mxu0 0.0
        %1293 = vmatmul.mubr.f32.gmra.mrb[0].mxu0 %v1205
        %v1294 = vpop.f32.mrb[0].mxu0
        %v1295 = vadd.f32 0.0, %v1294
        %v1296 = vpop.f32.mrb[0].mxu0
        %1297 = vdwg.mxu0
        %v1298 = vadd.f32 %v1196, %v1290
        %v1299 = vadd.f32 %v1201, %v1295
        %s1300 = scalar_lea.vmem %s5, 1
        %v1301 = vld [vmem:[%s1300] sm:$0x1]
        %v1303 = vlaneseq
        %v1304 = vshrl.u32 %v1303, 7
        %v1305 = vsub.s32 0, %v1304
        %v1306 = vrot.slane %v1301, %v1305
        %v1308 = vadd.f32 %v1298, %v1306
        %v1309 = vadd.f32 %v1299, %v1306
        %vm1310 = vcmp.ge.f32.partialorder %v1308, 0.0
        %vm1311 = vcmp.ge.f32.partialorder %v1309, 0.0
        %v1312 = vmul.f32 %v1308, 0.01
        %v1313 = vmul.f32 %v1309, 0.01
        %v1314 = vsel %vm1310, %v1308, %v1312
        %v1315 = vsel %vm1311, %v1309, %v1313
        %1316 = vst [vmem:[#allocation2 + $0x1] sm:$0xff] %v1314
        %1317 = vst [vmem:[#allocation2 + $0x9] sm:$0xff] %v1315
        %s1318 = scalar_lea.vmem [#allocation5], 512
        %v1319 = vld [vmem:[%s1318] sm:$0xff]
        %v1320 = vld [vmem:[%s1318 + $0x8] sm:$0xff]
        %v1321 = vld [vmem:[%s1318 + $0x10] sm:$0xff]
        %v1322 = vld [vmem:[%s1318 + $0x18] sm:$0xff]
        %v1323 = vld [vmem:[%s1318 + $0x20] sm:$0xff]
        %v1324 = vld [vmem:[%s1318 + $0x28] sm:$0xff]
        %v1325 = vld [vmem:[%s1318 + $0x30] sm:$0xff]
        %v1326 = vld [vmem:[%s1318 + $0x38] sm:$0xff]
        %v1327 = vld [vmem:[%s1318 + $0x40] sm:$0xff]
        %v1328 = vld [vmem:[%s1318 + $0x48] sm:$0xff]
        %v1329 = vld [vmem:[%s1318 + $0x50] sm:$0xff]
        %v1330 = vld [vmem:[%s1318 + $0x58] sm:$0xff]
        %v1331 = vld [vmem:[%s1318 + $0x60] sm:$0xff]
        %v1332 = vld [vmem:[%s1318 + $0x68] sm:$0xff]
        %v1333 = vld [vmem:[%s1318 + $0x70] sm:$0xff]
        %v1334 = vld [vmem:[%s1318 + $0x78] sm:$0xff]
        %v1335 = vld [vmem:[#allocation2] sm:$0xff]
        %v1336 = vld [vmem:[#allocation2 + $0x8] sm:$0xff]
        %s1337 = scalar_lea.vmem [#allocation5], 384
        %v1338 = vld [vmem:[%s1337] sm:$0xff]
        %v1339 = vld [vmem:[%s1337 + $0x8] sm:$0xff]
        %v1340 = vld [vmem:[%s1337 + $0x10] sm:$0xff]
        %v1341 = vld [vmem:[%s1337 + $0x18] sm:$0xff]
        %v1342 = vld [vmem:[%s1337 + $0x20] sm:$0xff]
        %v1343 = vld [vmem:[%s1337 + $0x28] sm:$0xff]
        %v1344 = vld [vmem:[%s1337 + $0x30] sm:$0xff]
        %v1345 = vld [vmem:[%s1337 + $0x38] sm:$0xff]
        %v1346 = vld [vmem:[%s1337 + $0x40] sm:$0xff]
        %v1347 = vld [vmem:[%s1337 + $0x48] sm:$0xff]
        %v1348 = vld [vmem:[%s1337 + $0x50] sm:$0xff]
        %v1349 = vld [vmem:[%s1337 + $0x58] sm:$0xff]
        %v1350 = vld [vmem:[%s1337 + $0x60] sm:$0xff]
        %v1351 = vld [vmem:[%s1337 + $0x68] sm:$0xff]
        %v1352 = vld [vmem:[%s1337 + $0x70] sm:$0xff]
        %v1353 = vld [vmem:[%s1337 + $0x78] sm:$0xff]
        %1354 = vmatprep.subr.mxu0 0.0
        %1355 = vmatpush1.msra.mxu0 %v1338
        %1356 = vmatprep.subr.mxu0 0.0
        %1357 = vmatpush1.msra.mxu0 %v1339
        %1358 = vmatprep.subr.mxu0 0.0
        %1359 = vmatpush1.msra.mxu0 %v1340
        %1360 = vmatprep.subr.mxu0 0.0
        %1361 = vmatpush1.msra.mxu0 %v1341
        %1362 = vmatprep.subr.mxu0 0.0
        %1363 = vmatpush1.msra.mxu0 %v1342
        %1364 = vmatprep.subr.mxu0 0.0
        %1365 = vmatpush1.msra.mxu0 %v1343
        %1366 = vmatprep.subr.mxu0 0.0
        %1367 = vmatpush1.msra.mxu0 %v1344
        %1368 = vmatprep.subr.mxu0 0.0
        %1369 = vmatpush1.msra.mxu0 %v1345
        %1370 = vmatprep.subr.mxu0 0.0
        %1371 = vmatpush1.msra.mxu0 %v1346
        %1372 = vmatprep.subr.mxu0 0.0
        %1373 = vmatpush1.msra.mxu0 %v1347
        %1374 = vmatprep.subr.mxu0 0.0
        %1375 = vmatpush1.msra.mxu0 %v1348
        %1376 = vmatprep.subr.mxu0 0.0
        %1377 = vmatpush1.msra.mxu0 %v1349
        %1378 = vmatprep.subr.mxu0 0.0
        %1379 = vmatpush1.msra.mxu0 %v1350
        %1380 = vmatprep.subr.mxu0 0.0
        %1381 = vmatpush1.msra.mxu0 %v1351
        %1382 = vmatprep.subr.mxu0 0.0
        %1383 = vmatpush1.msra.mxu0 %v1352
        %1384 = vmatprep.subr.mxu0 0.0
        %1385 = vmatpush1.msra.mxu0 %v1353
        %1386 = vmatprep.subr.mxu0 0.0
        %1387 = vmatpush1.msra.mxu0 0.0
        %1388 = vmatprep.subr.mxu0 0.0
        %1389 = vmatpush1.msra.mxu0 0.0
        %1390 = vmatprep.subr.mxu0 0.0
        %1391 = vmatpush1.msra.mxu0 0.0
        %1392 = vmatprep.subr.mxu0 0.0
        %1393 = vmatpush1.msra.mxu0 0.0
        %1394 = vmatprep.subr.mxu0 0.0
        %1395 = vmatpush1.msra.mxu0 0.0
        %1396 = vmatprep.subr.mxu0 0.0
        %1397 = vmatpush1.msra.mxu0 0.0
        %1398 = vmatprep.subr.mxu0 0.0
        %1399 = vmatpush1.msra.mxu0 0.0
        %1400 = vmatprep.subr.mxu0 0.0
        %1401 = vmatpush1.msra.mxu0 0.0
        %1402 = vmatprep.subr.mxu0 0.0
        %1403 = vmatpush1.msra.mxu0 0.0
        %1404 = vmatprep.subr.mxu0 0.0
        %1405 = vmatpush1.msra.mxu0 0.0
        %1406 = vmatprep.subr.mxu0 0.0
        %1407 = vmatpush1.msra.mxu0 0.0
        %1408 = vmatprep.subr.mxu0 0.0
        %1409 = vmatpush1.msra.mxu0 0.0
        %1410 = vmatprep.subr.mxu0 0.0
        %1411 = vmatpush1.msra.mxu0 0.0
        %1412 = vmatprep.subr.mxu0 0.0
        %1413 = vmatpush1.msra.mxu0 0.0
        %1414 = vmatprep.subr.mxu0 0.0
        %1415 = vmatpush1.msra.mxu0 0.0
        %1416 = vmatprep.subr.mxu0 0.0
        %1417 = vmatpush1.msra.mxu0 0.0
        %1418 = vmatprep.mubr.f32.mxu0 0.0
        %1419 = vmatmul.mubr.f32.gmra.mrb[0].mxu0 %v1335
        %v1420 = vpop.f32.mrb[0].mxu0
        %v1421 = vadd.f32 0.0, %v1420
        %v1422 = vpop.f32.mrb[0].mxu0
        %1423 = vmatprep.mubr.f32.mxu0 0.0
        %1424 = vmatmul.mubr.f32.gmra.mrb[0].mxu0 %v1336
        %v1425 = vpop.f32.mrb[0].mxu0
        %v1426 = vadd.f32 0.0, %v1425
        %v1427 = vpop.f32.mrb[0].mxu0
        %1428 = vdwg.mxu0
        %1429 = vmatprep.subr.mxu0 0.0
        %1430 = vmatpush1.msra.mxu0 %v1319
        %1431 = vmatprep.subr.mxu0 0.0
        %1432 = vmatpush1.msra.mxu0 %v1320
        %1433 = vmatprep.subr.mxu0 0.0
        %1434 = vmatpush1.msra.mxu0 %v1321
        %1435 = vmatprep.subr.mxu0 0.0
        %1436 = vmatpush1.msra.mxu0 %v1322
        %1437 = vmatprep.subr.mxu0 0.0
        %1438 = vmatpush1.msra.mxu0 %v1323
        %1439 = vmatprep.subr.mxu0 0.0
        %1440 = vmatpush1.msra.mxu0 %v1324
        %1441 = vmatprep.subr.mxu0 0.0
        %1442 = vmatpush1.msra.mxu0 %v1325
        %1443 = vmatprep.subr.mxu0 0.0
        %1444 = vmatpush1.msra.mxu0 %v1326
        %1445 = vmatprep.subr.mxu0 0.0
        %1446 = vmatpush1.msra.mxu0 %v1327
        %1447 = vmatprep.subr.mxu0 0.0
        %1448 = vmatpush1.msra.mxu0 %v1328
        %1449 = vmatprep.subr.mxu0 0.0
        %1450 = vmatpush1.msra.mxu0 %v1329
        %1451 = vmatprep.subr.mxu0 0.0
        %1452 = vmatpush1.msra.mxu0 %v1330
        %1453 = vmatprep.subr.mxu0 0.0
        %1454 = vmatpush1.msra.mxu0 %v1331
        %1455 = vmatprep.subr.mxu0 0.0
        %1456 = vmatpush1.msra.mxu0 %v1332
        %1457 = vmatprep.subr.mxu0 0.0
        %1458 = vmatpush1.msra.mxu0 %v1333
        %1459 = vmatprep.subr.mxu0 0.0
        %1460 = vmatpush1.msra.mxu0 %v1334
        %1461 = vmatprep.subr.mxu0 0.0
        %1462 = vmatpush1.msra.mxu0 0.0
        %1463 = vmatprep.subr.mxu0 0.0
        %1464 = vmatpush1.msra.mxu0 0.0
        %1465 = vmatprep.subr.mxu0 0.0
        %1466 = vmatpush1.msra.mxu0 0.0
        %1467 = vmatprep.subr.mxu0 0.0
        %1468 = vmatpush1.msra.mxu0 0.0
        %1469 = vmatprep.subr.mxu0 0.0
        %1470 = vmatpush1.msra.mxu0 0.0
        %1471 = vmatprep.subr.mxu0 0.0
        %1472 = vmatpush1.msra.mxu0 0.0
        %1473 = vmatprep.subr.mxu0 0.0
        %1474 = vmatpush1.msra.mxu0 0.0
        %1475 = vmatprep.subr.mxu0 0.0
        %1476 = vmatpush1.msra.mxu0 0.0
        %1477 = vmatprep.subr.mxu0 0.0
        %1478 = vmatpush1.msra.mxu0 0.0
        %1479 = vmatprep.subr.mxu0 0.0
        %1480 = vmatpush1.msra.mxu0 0.0
        %1481 = vmatprep.subr.mxu0 0.0
        %1482 = vmatpush1.msra.mxu0 0.0
        %1483 = vmatprep.subr.mxu0 0.0
        %1484 = vmatpush1.msra.mxu0 0.0
        %1485 = vmatprep.subr.mxu0 0.0
        %1486 = vmatpush1.msra.mxu0 0.0
        %1487 = vmatprep.subr.mxu0 0.0
        %1488 = vmatpush1.msra.mxu0 0.0
        %1489 = vmatprep.subr.mxu0 0.0
        %1490 = vmatpush1.msra.mxu0 0.0
        %1491 = vmatprep.subr.mxu0 0.0
        %1492 = vmatpush1.msra.mxu0 0.0
        %1493 = vmatprep.mubr.f32.mxu0 0.0
        %1494 = vmatmul.mubr.f32.gmra.mrb[0].mxu0 %v1314
        %v1495 = vpop.f32.mrb[0].mxu0
        %v1496 = vadd.f32 %v1421, %v1495
        %v1497 = vpop.f32.mrb[0].mxu0
        %1498 = vmatprep.mubr.f32.mxu0 0.0
        %1499 = vmatmul.mubr.f32.gmra.mrb[0].mxu0 %v1315
        %v1500 = vpop.f32.mrb[0].mxu0
        %v1501 = vadd.f32 %v1426, %v1500
        %v1502 = vpop.f32.mrb[0].mxu0
        %1503 = vdwg.mxu0
        %v1504 = vld [vmem:[#allocation2 + $0x2] sm:$0xff]
        %v1505 = vld [vmem:[#allocation2 + $0xa] sm:$0xff]
        %s1506 = scalar_lea.vmem [#allocation5], 640
        %v1507 = vld [vmem:[%s1506] sm:$0xff]
        %v1508 = vld [vmem:[%s1506 + $0x8] sm:$0xff]
        %v1509 = vld [vmem:[%s1506 + $0x10] sm:$0xff]
        %v1510 = vld [vmem:[%s1506 + $0x18] sm:$0xff]
        %v1511 = vld [vmem:[%s1506 + $0x20] sm:$0xff]
        %v1512 = vld [vmem:[%s1506 + $0x28] sm:$0xff]
        %v1513 = vld [vmem:[%s1506 + $0x30] sm:$0xff]
        %v1514 = vld [vmem:[%s1506 + $0x38] sm:$0xff]
        %v1515 = vld [vmem:[%s1506 + $0x40] sm:$0xff]
        %v1516 = vld [vmem:[%s1506 + $0x48] sm:$0xff]
        %v1517 = vld [vmem:[%s1506 + $0x50] sm:$0xff]
        %v1518 = vld [vmem:[%s1506 + $0x58] sm:$0xff]
        %v1519 = vld [vmem:[%s1506 + $0x60] sm:$0xff]
        %v1520 = vld [vmem:[%s1506 + $0x68] sm:$0xff]
        %v1521 = vld [vmem:[%s1506 + $0x70] sm:$0xff]
        %v1522 = vld [vmem:[%s1506 + $0x78] sm:$0xff]
        %1523 = vmatprep.subr.mxu0 0.0
        %1524 = vmatpush1.msra.mxu0 %v1507
        %1525 = vmatprep.subr.mxu0 0.0
        %1526 = vmatpush1.msra.mxu0 %v1508
        %1527 = vmatprep.subr.mxu0 0.0
        %1528 = vmatpush1.msra.mxu0 %v1509
        %1529 = vmatprep.subr.mxu0 0.0
        %1530 = vmatpush1.msra.mxu0 %v1510
        %1531 = vmatprep.subr.mxu0 0.0
        %1532 = vmatpush1.msra.mxu0 %v1511
        %1533 = vmatprep.subr.mxu0 0.0
        %1534 = vmatpush1.msra.mxu0 %v1512
        %1535 = vmatprep.subr.mxu0 0.0
        %1536 = vmatpush1.msra.mxu0 %v1513
        %1537 = vmatprep.subr.mxu0 0.0
        %1538 = vmatpush1.msra.mxu0 %v1514
        %1539 = vmatprep.subr.mxu0 0.0
        %1540 = vmatpush1.msra.mxu0 %v1515
        %1541 = vmatprep.subr.mxu0 0.0
        %1542 = vmatpush1.msra.mxu0 %v1516
        %1543 = vmatprep.subr.mxu0 0.0
        %1544 = vmatpush1.msra.mxu0 %v1517
        %1545 = vmatprep.subr.mxu0 0.0
        %1546 = vmatpush1.msra.mxu0 %v1518
        %1547 = vmatprep.subr.mxu0 0.0
        %1548 = vmatpush1.msra.mxu0 %v1519
        %1549 = vmatprep.subr.mxu0 0.0
        %1550 = vmatpush1.msra.mxu0 %v1520
        %1551 = vmatprep.subr.mxu0 0.0
        %1552 = vmatpush1.msra.mxu0 %v1521
        %1553 = vmatprep.subr.mxu0 0.0
        %1554 = vmatpush1.msra.mxu0 %v1522
        %1555 = vmatprep.subr.mxu0 0.0
        %1556 = vmatpush1.msra.mxu0 0.0
        %1557 = vmatprep.subr.mxu0 0.0
        %1558 = vmatpush1.msra.mxu0 0.0
        %1559 = vmatprep.subr.mxu0 0.0
        %1560 = vmatpush1.msra.mxu0 0.0
        %1561 = vmatprep.subr.mxu0 0.0
        %1562 = vmatpush1.msra.mxu0 0.0
        %1563 = vmatprep.subr.mxu0 0.0
        %1564 = vmatpush1.msra.mxu0 0.0
        %1565 = vmatprep.subr.mxu0 0.0
        %1566 = vmatpush1.msra.mxu0 0.0
        %1567 = vmatprep.subr.mxu0 0.0
        %1568 = vmatpush1.msra.mxu0 0.0
        %1569 = vmatprep.subr.mxu0 0.0
        %1570 = vmatpush1.msra.mxu0 0.0
        %1571 = vmatprep.subr.mxu0 0.0
        %1572 = vmatpush1.msra.mxu0 0.0
        %1573 = vmatprep.subr.mxu0 0.0
        %1574 = vmatpush1.msra.mxu0 0.0
        %1575 = vmatprep.subr.mxu0 0.0
        %1576 = vmatpush1.msra.mxu0 0.0
        %1577 = vmatprep.subr.mxu0 0.0
        %1578 = vmatpush1.msra.mxu0 0.0
        %1579 = vmatprep.subr.mxu0 0.0
        %1580 = vmatpush1.msra.mxu0 0.0
        %1581 = vmatprep.subr.mxu0 0.0
        %1582 = vmatpush1.msra.mxu0 0.0
        %1583 = vmatprep.subr.mxu0 0.0
        %1584 = vmatpush1.msra.mxu0 0.0
        %1585 = vmatprep.subr.mxu0 0.0
        %1586 = vmatpush1.msra.mxu0 0.0
        %1587 = vmatprep.mubr.f32.mxu0 0.0
        %1588 = vmatmul.mubr.f32.gmra.mrb[0].mxu0 %v1504
        %v1589 = vpop.f32.mrb[0].mxu0
        %v1590 = vadd.f32 0.0, %v1589
        %v1591 = vpop.f32.mrb[0].mxu0
        %1592 = vmatprep.mubr.f32.mxu0 0.0
        %1593 = vmatmul.mubr.f32.gmra.mrb[0].mxu0 %v1505
        %v1594 = vpop.f32.mrb[0].mxu0
        %v1595 = vadd.f32 0.0, %v1594
        %v1596 = vpop.f32.mrb[0].mxu0
        %1597 = vdwg.mxu0
        %v1598 = vadd.f32 %v1496, %v1590
        %v1599 = vadd.f32 %v1501, %v1595
        %v1600 = vsub.f32 %v1014, %v1598
        %v1601 = vsub.f32 %v1015, %v1599
        %v1602 = vld [vmem:[%s6] sm:$0xff]
        %v1603 = vld [vmem:[%s6 + $0x8] sm:$0xff]
        %v1604 = vld [vmem:[%s6 + $0x10] sm:$0xff]
        %v1605 = vld [vmem:[%s6 + $0x18] sm:$0xff]
        %v1606 = vld [vmem:[%s6 + $0x20] sm:$0xff]
        %v1607 = vld [vmem:[%s6 + $0x28] sm:$0xff]
        %v1608 = vld [vmem:[%s6 + $0x30] sm:$0xff]
        %v1609 = vld [vmem:[%s6 + $0x38] sm:$0xff]
        %v1610 = vld [vmem:[%s6 + $0x40] sm:$0xff]
        %v1611 = vld [vmem:[%s6 + $0x48] sm:$0xff]
        %v1612 = vld [vmem:[%s6 + $0x50] sm:$0xff]
        %v1613 = vld [vmem:[%s6 + $0x58] sm:$0xff]
        %v1614 = vld [vmem:[%s6 + $0x60] sm:$0xff]
        %v1615 = vld [vmem:[%s6 + $0x68] sm:$0xff]
        %v1616 = vld [vmem:[%s6 + $0x70] sm:$0xff]
        %v1617 = vld [vmem:[%s6 + $0x78] sm:$0xff]
        %1618 = vmatprep.subr.mxu0 0.0
        %1619 = vmatpush1.msra.mxu0 %v1602
        %1620 = vmatprep.subr.mxu0 0.0
        %1621 = vmatpush1.msra.mxu0 %v1603
        %1622 = vmatprep.subr.mxu0 0.0
        %1623 = vmatpush1.msra.mxu0 %v1604
        %1624 = vmatprep.subr.mxu0 0.0
        %1625 = vmatpush1.msra.mxu0 %v1605
        %1626 = vmatprep.subr.mxu0 0.0
        %1627 = vmatpush1.msra.mxu0 %v1606
        %1628 = vmatprep.subr.mxu0 0.0
        %1629 = vmatpush1.msra.mxu0 %v1607
        %1630 = vmatprep.subr.mxu0 0.0
        %1631 = vmatpush1.msra.mxu0 %v1608
        %1632 = vmatprep.subr.mxu0 0.0
        %1633 = vmatpush1.msra.mxu0 %v1609
        %1634 = vmatprep.subr.mxu0 0.0
        %1635 = vmatpush1.msra.mxu0 %v1610
        %1636 = vmatprep.subr.mxu0 0.0
        %1637 = vmatpush1.msra.mxu0 %v1611
        %1638 = vmatprep.subr.mxu0 0.0
        %1639 = vmatpush1.msra.mxu0 %v1612
        %1640 = vmatprep.subr.mxu0 0.0
        %1641 = vmatpush1.msra.mxu0 %v1613
        %1642 = vmatprep.subr.mxu0 0.0
        %1643 = vmatpush1.msra.mxu0 %v1614
        %1644 = vmatprep.subr.mxu0 0.0
        %1645 = vmatpush1.msra.mxu0 %v1615
        %1646 = vmatprep.subr.mxu0 0.0
        %1647 = vmatpush1.msra.mxu0 %v1616
        %1648 = vmatprep.subr.mxu0 0.0
        %1649 = vmatpush1.msra.mxu0 %v1617
        %1650 = vmatprep.subr.mxu0 0.0
        %1651 = vmatpush1.msra.mxu0 0.0
        %1652 = vmatprep.subr.mxu0 0.0
        %1653 = vmatpush1.msra.mxu0 0.0
        %1654 = vmatprep.subr.mxu0 0.0
        %1655 = vmatpush1.msra.mxu0 0.0
        %1656 = vmatprep.subr.mxu0 0.0
        %1657 = vmatpush1.msra.mxu0 0.0
        %1658 = vmatprep.subr.mxu0 0.0
        %1659 = vmatpush1.msra.mxu0 0.0
        %1660 = vmatprep.subr.mxu0 0.0
        %1661 = vmatpush1.msra.mxu0 0.0
        %1662 = vmatprep.subr.mxu0 0.0
        %1663 = vmatpush1.msra.mxu0 0.0
        %1664 = vmatprep.subr.mxu0 0.0
        %1665 = vmatpush1.msra.mxu0 0.0
        %1666 = vmatprep.subr.mxu0 0.0
        %1667 = vmatpush1.msra.mxu0 0.0
        %1668 = vmatprep.subr.mxu0 0.0
        %1669 = vmatpush1.msra.mxu0 0.0
        %1670 = vmatprep.subr.mxu0 0.0
        %1671 = vmatpush1.msra.mxu0 0.0
        %1672 = vmatprep.subr.mxu0 0.0
        %1673 = vmatpush1.msra.mxu0 0.0
        %1674 = vmatprep.subr.mxu0 0.0
        %1675 = vmatpush1.msra.mxu0 0.0
        %1676 = vmatprep.subr.mxu0 0.0
        %1677 = vmatpush1.msra.mxu0 0.0
        %1678 = vmatprep.subr.mxu0 0.0
        %1679 = vmatpush1.msra.mxu0 0.0
        %1680 = vmatprep.subr.mxu0 0.0
        %1681 = vmatpush1.msra.mxu0 0.0
        %1682 = vmatprep.mubr.f32.mxu0 0.0
        %1683 = vmatmul.mubr.f32.gmra.mrb[0].mxu0 %v1600
        %v1684 = vpop.f32.mrb[0].mxu0
        %v1685 = vadd.f32 0.0, %v1684
        %v1686 = vpop.f32.mrb[0].mxu0
        %1687 = vmatprep.mubr.f32.mxu0 0.0
        %1688 = vmatmul.mubr.f32.gmra.mrb[0].mxu0 %v1601
        %v1689 = vpop.f32.mrb[0].mxu0
        %v1690 = vadd.f32 0.0, %v1689
        %v1691 = vpop.f32.mrb[0].mxu0
        %1692 = vdwg.mxu0
        %v1694 = vunpack.c.l.s4 1966171168
        %v1695 = vunpack.c.0.s8 %v1694
        %v1696 = vlaneseq
        %v1697 = vshrl.u32 %v1696, 7
        %v1698 = vsub.s32 %v1695, %v1697
        %v1699 = vrot.slane %v1685, %v1698
        %v1701 = vunpack.c.l.s4 1966171168
        %v1702 = vunpack.c.0.s8 %v1701
        %v1703 = vlaneseq
        %v1704 = vshrl.u32 %v1703, 7
        %v1705 = vsub.s32 %v1702, %v1704
        %v1706 = vrot.slane %v1690, %v1705
        %v1709 = vrot.slane %v1699, 4
        %v1710 = vrot.slane %v1706, 4
        %v1713 = vadd.f32 %v1699, %v1709
        %v1714 = vadd.f32 %v1706, %v1710
        %v1715 = vld [vmem:[%s7] sm:$0x1]
        %v1717 = vlaneseq
        %v1718 = vshrl.u32 %v1717, 7
        %v1719 = vsub.s32 0, %v1718
        %v1720 = vrot.slane %v1715, %v1719
        %v1722 = vcombine.high %v1720, %v1720
        %v1724 = vadd.f32 %v1713, %v1720
        %v1725 = vadd.f32 %v1714, %v1722
        %v1728 = vcombine.low %v1724, %v1725
        %1730 = vst [vmem:[%s333] sm:$0xff] %v1728
        %p1731 = scmp.lt.s32.totalorder %s21, 1
        %s1732 = scalar_select %p1731, %s21, 1
        %s1733 = smul.addr %s1732, 8
        %s1734 = scalar_lea.vmem %s8, %s1733
        // Predicated region
        $region61: #{forward.2} parent=51 // pred_check
          %p1735 = pneg %p212
        $region62: #{forward.2} parent=51 // pred_check_branch
          %1737 = sbr.rel (%p1735) target = $region64
        $region63: #{forward.2} parent=51 // pred_region
          _
        $region64: #{forward.2} parent=51 // pred_fallthru
          _
      $region52: #{forward.2} parent=5 // pred_fallthru
        _
      %p1738 = scmp.le.s32.totalorder 2, %s16
      // Predicated region
      $region65: #{forward.2} parent=5 // pred_check
        %p1739 = pneg %p1738
      $region66: #{forward.2} parent=5 // pred_check_branch
        %1741 = sbr.rel (%p1739) target = $region68
      $region67: #{forward.2} parent=5 // pred_region
        %s1742 = ssub.s32 %s16, 2
        // Predicated region
        $region69: #{forward.2} parent=67 // pred_check
          %p1743 = pneg %p218
        $region70: #{forward.2} parent=67 // pred_check_branch
          %1745 = sbr.rel (%p1743) target = $region72
        $region71: #{forward.2} parent=67 // pred_region
          %p1746 = scmp.lt.s32.totalorder %s22, 1
          %s1747 = scalar_select %p1746, %s22, 1
          %s1748 = smul.addr %s1747, 8
          %s1749 = scalar_lea.vmem %s8, %s1748
        $region72: #{forward.2} parent=67 // pred_fallthru
          _
      $region68: #{forward.2} parent=5 // pred_fallthru
        _
    $region6: #{forward.2} parent=1 // loop_footer
      %s20 = sadd.s32 1, %s16
    $region7: #{forward.2} parent=1 // loop_footer_branch
      %15 = sbr.rel target = $region3
    $region8: #{forward.2} parent=1 // loop_exit
      _
    %1750 = vsyncpa [#allocation4], 1
    %s1751 = scalar_lea.sflag [#allocation4], 1
    %1752 = vsyncpa %s1751, 1
    %1753 = vsyncpa [#allocation6], 1

// kernel: forward.3
$region0: #{forward.3}
  #allocation0 [shape = 'u32[]', space=smem, size = 0x4, offset = 0x4, fixed_abs, tag = 'smem constant byte address 0x4 - core index']
  #allocation1 [shape = 'u32[144,128]{1,0:T(1,128)}', space=vmem, size = 0x12000, scoped, tag = 'internal scratch']
  #allocation2 [shape = 'f32[1,10,128]{2,1,0:T(8,128)}', space=vmem, size = 0x2000, scoped, tag = 'scratch operand']
  %s0 = inlined_call_operand.vmem [shape: f32[2,8,128], index: 0, kind: input, shape index: {}]
  %s1 = inlined_call_operand.vmem [shape: f32[6,128,128], index: 1, kind: input, shape index: {}]
  %s2 = inlined_call_operand.vmem [shape: f32[6,128,128], index: 2, kind: input, shape index: {}]
  %s3 = inlined_call_operand.vmem [shape: f32[2,1,128], index: 3, kind: input, shape index: {}]
  %s4 = inlined_call_operand.vmem [shape: f32[128,32], index: 4, kind: input, shape index: {}]
  %s5 = inlined_call_operand.vmem [shape: f32[1,32], index: 5, kind: input, shape index: {}]
  %s6 = inlined_call_operand.vmem [shape: f32[32,10], index: 6, kind: input, shape index: {}]
  %s7 = inlined_call_operand.vmem [shape: f32[1,10], index: 7, kind: input, shape index: {}]
  %s8 = inlined_call_operand.hbm [shape: f32[2,1,10], index: 8, kind: output, shape index: {}]
  %s9 = sld [smem:[#allocation0]]
  $region65: #{forward.3} parent=0
    _
  %s11 = ssub.s32 1, %s9
  %s12 = scalar_select 0, %s11, %s9
  $region1: #{forward.3} parent=0
    #allocation3 [shape = 'u8[1024]{0}', space=vmem, size = 0x400, scoped, tag = 'output window, operand 0']
    #allocation4 [shape = 's32[2]{0}', space=sflag, size = 0x8, scoped, tag = 'scoped memory for forward.3']
    %13 = vsyncpa [#allocation4], 0
    %s14 = scalar_lea.sflag [#allocation4], 1
    %15 = vsyncpa %s14, 0
    loop: start=0, step=1, limit=4
    $region2: #{forward.3} parent=1 // loop_pre_header
      _
    $region3: #{forward.3} parent=1 // loop_header
      %s17 = sphi 0, %s21
      %p18 = scmp.ge.s32.totalorder %s17, 4
      %s27 = sphi 0, %s29
      %s30 = sphi 0, %s27
      %s31 = sphi 0, %s30
      %s47 = sphi 0, %s31
      %s51 = sphi 0, %s51
      %s53 = sphi 0, %s51
      %s54 = sphi 0, %s53
      %s68 = sphi 0, %s54
      %s72 = sphi 0, %s72
      %s74 = sphi 0, %s72
      %s75 = sphi 0, %s74
      %s89 = sphi 0, %s75
      %s93 = sphi 0, %s93
      %s95 = sphi 0, %s93
      %s96 = sphi 0, %s95
      %s110 = sphi 0, %s96
      %s114 = sphi 0, %s114
      %s116 = sphi 0, %s114
      %s117 = sphi 0, %s116
      %s131 = sphi 0, %s117
      %s135 = sphi 0, %s135
      %s137 = sphi 0, %s135
      %s138 = sphi 0, %s137
      %s152 = sphi 0, %s138
      %s156 = sphi 0, %s156
      %s158 = sphi 0, %s156
      %s159 = sphi 0, %s158
      %s173 = sphi 0, %s159
      %s177 = sphi 0, %s177
      %s179 = sphi 0, %s177
      %s180 = sphi 0, %s179
      %s194 = sphi 0, %s180
      %s200 = sphi 0, %s202
      %s203 = sphi 0, %s200
      %s204 = sphi 0, %s203
      %s220 = sphi 0, %s204
    $region4: #{forward.3} parent=1 // loop_header_branch
      %20 = sbr.rel (%p18) target = $region8
    $region5: #{forward.3} parent=1 // loop_body
      %s22 = ssub.s32 %s17, 1
      %s23 = ssub.s32 %s17, 2
      %s24 = sadd.s32 %s17, 1
      %s25 = ssub.s32 %s17, %s24
      %p26 = scmp.eq.s32.totalorder %s25, 0
      %s28 = sadd.s32 %s27, 1
      %s29 = scalar_select %p26, %s27, %s28
      %p32 = pneg %p26
      %p33 = scmp.eq.s32.totalorder %s17, 1
      %p34 = por %p32, %p33
      %p35 = scmp.ne.s32.totalorder %s27, %s30
      %p36 = scmp.eq.s32.totalorder %s17, 0
      %p37 = por %p35, %p36
      %p38 = scmp.ne.s32.totalorder %s27, %s30
      %p39 = scmp.eq.s32.totalorder %s22, 1
      %p40 = por %p38, %p39
      %p41 = scmp.ne.s32.totalorder %s30, %s31
      %p42 = scmp.eq.s32.totalorder %s22, 0
      %p43 = por %p41, %p42
      %p44 = scmp.ne.s32.totalorder %s30, %s31
      %p45 = scmp.eq.s32.totalorder %s23, 1
      %p46 = por %p44, %p45
      %p48 = scmp.ne.s32.totalorder %s31, %s47
      %p49 = scmp.eq.s32.totalorder %s23, 0
      %p50 = por %p48, %p49
      %s52 = sadd.s32 %s51, 1
      %p55 = scmp.eq.s32.totalorder %s17, 1
      %p56 = scmp.ne.s32.totalorder %s51, %s53
      %p57 = scmp.eq.s32.totalorder %s17, 0
      %p58 = por %p56, %p57
      %p59 = scmp.ne.s32.totalorder %s51, %s53
      %p60 = scmp.eq.s32.totalorder %s22, 1
      %p61 = por %p59, %p60
      %p62 = scmp.ne.s32.totalorder %s53, %s54
      %p63 = scmp.eq.s32.totalorder %s22, 0
      %p64 = por %p62, %p63
      %p65 = scmp.ne.s32.totalorder %s53, %s54
      %p66 = scmp.eq.s32.totalorder %s23, 1
      %p67 = por %p65, %p66
      %p69 = scmp.ne.s32.totalorder %s54, %s68
      %p70 = scmp.eq.s32.totalorder %s23, 0
      %p71 = por %p69, %p70
      %s73 = sadd.s32 %s72, 1
      %p76 = scmp.eq.s32.totalorder %s17, 1
      %p77 = scmp.ne.s32.totalorder %s72, %s74
      %p78 = scmp.eq.s32.totalorder %s17, 0
      %p79 = por %p77, %p78
      %p80 = scmp.ne.s32.totalorder %s72, %s74
      %p81 = scmp.eq.s32.totalorder %s22, 1
      %p82 = por %p80, %p81
      %p83 = scmp.ne.s32.totalorder %s74, %s75
      %p84 = scmp.eq.s32.totalorder %s22, 0
      %p85 = por %p83, %p84
      %p86 = scmp.ne.s32.totalorder %s74, %s75
      %p87 = scmp.eq.s32.totalorder %s23, 1
      %p88 = por %p86, %p87
      %p90 = scmp.ne.s32.totalorder %s75, %s89
      %p91 = scmp.eq.s32.totalorder %s23, 0
      %p92 = por %p90, %p91
      %s94 = sadd.s32 %s93, 1
      %p97 = scmp.eq.s32.totalorder %s17, 1
      %p98 = scmp.ne.s32.totalorder %s93, %s95
      %p99 = scmp.eq.s32.totalorder %s17, 0
      %p100 = por %p98, %p99
      %p101 = scmp.ne.s32.totalorder %s93, %s95
      %p102 = scmp.eq.s32.totalorder %s22, 1
      %p103 = por %p101, %p102
      %p104 = scmp.ne.s32.totalorder %s95, %s96
      %p105 = scmp.eq.s32.totalorder %s22, 0
      %p106 = por %p104, %p105
      %p107 = scmp.ne.s32.totalorder %s95, %s96
      %p108 = scmp.eq.s32.totalorder %s23, 1
      %p109 = por %p107, %p108
      %p111 = scmp.ne.s32.totalorder %s96, %s110
      %p112 = scmp.eq.s32.totalorder %s23, 0
      %p113 = por %p111, %p112
      %s115 = sadd.s32 %s114, 1
      %p118 = scmp.eq.s32.totalorder %s17, 1
      %p119 = scmp.ne.s32.totalorder %s114, %s116
      %p120 = scmp.eq.s32.totalorder %s17, 0
      %p121 = por %p119, %p120
      %p122 = scmp.ne.s32.totalorder %s114, %s116
      %p123 = scmp.eq.s32.totalorder %s22, 1
      %p124 = por %p122, %p123
      %p125 = scmp.ne.s32.totalorder %s116, %s117
      %p126 = scmp.eq.s32.totalorder %s22, 0
      %p127 = por %p125, %p126
      %p128 = scmp.ne.s32.totalorder %s116, %s117
      %p129 = scmp.eq.s32.totalorder %s23, 1
      %p130 = por %p128, %p129
      %p132 = scmp.ne.s32.totalorder %s117, %s131
      %p133 = scmp.eq.s32.totalorder %s23, 0
      %p134 = por %p132, %p133
      %s136 = sadd.s32 %s135, 1
      %p139 = scmp.eq.s32.totalorder %s17, 1
      %p140 = scmp.ne.s32.totalorder %s135, %s137
      %p141 = scmp.eq.s32.totalorder %s17, 0
      %p142 = por %p140, %p141
      %p143 = scmp.ne.s32.totalorder %s135, %s137
      %p144 = scmp.eq.s32.totalorder %s22, 1
      %p145 = por %p143, %p144
      %p146 = scmp.ne.s32.totalorder %s137, %s138
      %p147 = scmp.eq.s32.totalorder %s22, 0
      %p148 = por %p146, %p147
      %p149 = scmp.ne.s32.totalorder %s137, %s138
      %p150 = scmp.eq.s32.totalorder %s23, 1
      %p151 = por %p149, %p150
      %p153 = scmp.ne.s32.totalorder %s138, %s152
      %p154 = scmp.eq.s32.totalorder %s23, 0
      %p155 = por %p153, %p154
      %s157 = sadd.s32 %s156, 1
      %p160 = scmp.eq.s32.totalorder %s17, 1
      %p161 = scmp.ne.s32.totalorder %s156, %s158
      %p162 = scmp.eq.s32.totalorder %s17, 0
      %p163 = por %p161, %p162
      %p164 = scmp.ne.s32.totalorder %s156, %s158
      %p165 = scmp.eq.s32.totalorder %s22, 1
      %p166 = por %p164, %p165
      %p167 = scmp.ne.s32.totalorder %s158, %s159
      %p168 = scmp.eq.s32.totalorder %s22, 0
      %p169 = por %p167, %p168
      %p170 = scmp.ne.s32.totalorder %s158, %s159
      %p171 = scmp.eq.s32.totalorder %s23, 1
      %p172 = por %p170, %p171
      %p174 = scmp.ne.s32.totalorder %s159, %s173
      %p175 = scmp.eq.s32.totalorder %s23, 0
      %p176 = por %p174, %p175
      %s178 = sadd.s32 %s177, 1
      %p181 = scmp.eq.s32.totalorder %s17, 1
      %p182 = scmp.ne.s32.totalorder %s177, %s179
      %p183 = scmp.eq.s32.totalorder %s17, 0
      %p184 = por %p182, %p183
      %p185 = scmp.ne.s32.totalorder %s177, %s179
      %p186 = scmp.eq.s32.totalorder %s22, 1
      %p187 = por %p185, %p186
      %p188 = scmp.ne.s32.totalorder %s179, %s180
      %p189 = scmp.eq.s32.totalorder %s22, 0
      %p190 = por %p188, %p189
      %p191 = scmp.ne.s32.totalorder %s179, %s180
      %p192 = scmp.eq.s32.totalorder %s23, 1
      %p193 = por %p191, %p192
      %p195 = scmp.ne.s32.totalorder %s180, %s194
      %p196 = scmp.eq.s32.totalorder %s23, 0
      %p197 = por %p195, %p196
      %s198 = ssub.s32 %s17, %s24
      %p199 = scmp.eq.s32.totalorder %s198, 0
      %s201 = sadd.s32 %s200, 1
      %s202 = scalar_select %p199, %s200, %s201
      %p205 = pneg %p199
      %p206 = scmp.eq.s32.totalorder %s17, 1
      %p207 = por %p205, %p206
      %p208 = scmp.ne.s32.totalorder %s200, %s203
      %p209 = scmp.eq.s32.totalorder %s17, 0
      %p210 = por %p208, %p209
      %p211 = scmp.ne.s32.totalorder %s200, %s203
      %p212 = scmp.eq.s32.totalorder %s22, 1
      %p213 = por %p211, %p212
      %p214 = scmp.ne.s32.totalorder %s203, %s204
      %p215 = scmp.eq.s32.totalorder %s22, 0
      %p216 = por %p214, %p215
      %p217 = scmp.ne.s32.totalorder %s203, %s204
      %p218 = scmp.eq.s32.totalorder %s23, 1
      %p219 = por %p217, %p218
      %p221 = scmp.ne.s32.totalorder %s204, %s220
      %p222 = scmp.eq.s32.totalorder %s23, 0
      %p223 = por %p221, %p222
      %p224 = scmp.le.s32.totalorder 1, %s17
      %p225 = scmp.lt.s32.totalorder %s17, 3
      %p226 = pnand %p224, %p225
      %p227 = pneg %p226
      // Predicated region
      $region9: #{forward.3} parent=5 // pred_check
        _
      $region10: #{forward.3} parent=5 // pred_check_branch
        %229 = sbr.rel (%p226) target = $region12
      $region11: #{forward.3} parent=5 // pred_region
        %s230 = ssub.s32 %s17, 1
        // Predicated region
        $region13: #{forward.3} parent=11 // pred_check
          %p231 = pneg %p64
        $region14: #{forward.3} parent=11 // pred_check_branch
          %233 = sbr.rel (%p231) target = $region16
        $region15: #{forward.3} parent=11 // pred_region
          _
        $region16: #{forward.3} parent=11 // pred_fallthru
          _
        // Predicated region
        $region17: #{forward.3} parent=11 // pred_check
          %p234 = pneg %p85
        $region18: #{forward.3} parent=11 // pred_check_branch
          %236 = sbr.rel (%p234) target = $region20
        $region19: #{forward.3} parent=11 // pred_region
          _
        $region20: #{forward.3} parent=11 // pred_fallthru
          _
        // Predicated region
        $region21: #{forward.3} parent=11 // pred_check
          %p237 = pneg %p106
        $region22: #{forward.3} parent=11 // pred_check_branch
          %239 = sbr.rel (%p237) target = $region24
        $region23: #{forward.3} parent=11 // pred_region
          _
        $region24: #{forward.3} parent=11 // pred_fallthru
          _
        // Predicated region
        $region25: #{forward.3} parent=11 // pred_check
          %p240 = pneg %p127
        $region26: #{forward.3} parent=11 // pred_check_branch
          %242 = sbr.rel (%p240) target = $region28
        $region27: #{forward.3} parent=11 // pred_region
          _
        $region28: #{forward.3} parent=11 // pred_fallthru
          _
        // Predicated region
        $region29: #{forward.3} parent=11 // pred_check
          %p243 = pneg %p148
        $region30: #{forward.3} parent=11 // pred_check_branch
          %245 = sbr.rel (%p243) target = $region32
        $region31: #{forward.3} parent=11 // pred_region
          _
        $region32: #{forward.3} parent=11 // pred_fallthru
          _
        // Predicated region
        $region33: #{forward.3} parent=11 // pred_check
          %p246 = pneg %p169
        $region34: #{forward.3} parent=11 // pred_check_branch
          %248 = sbr.rel (%p246) target = $region36
        $region35: #{forward.3} parent=11 // pred_region
          _
        $region36: #{forward.3} parent=11 // pred_fallthru
          _
        // Predicated region
        $region37: #{forward.3} parent=11 // pred_check
          %p249 = pneg %p190
        $region38: #{forward.3} parent=11 // pred_check_branch
          %251 = sbr.rel (%p249) target = $region40
        $region39: #{forward.3} parent=11 // pred_region
          _
        $region40: #{forward.3} parent=11 // pred_fallthru
          _
      $region12: #{forward.3} parent=5 // pred_fallthru
        _
      %p252 = scmp.lt.s32.totalorder %s17, 2
      // Predicated region
      $region41: #{forward.3} parent=5 // pred_check
        %p253 = pneg %p252
      $region42: #{forward.3} parent=5 // pred_check_branch
        %255 = sbr.rel (%p253) target = $region44
      $region43: #{forward.3} parent=5 // pred_region
        // Predicated region
        $region45: #{forward.3} parent=43 // pred_check
          %p256 = pneg %p37
        $region46: #{forward.3} parent=43 // pred_check_branch
          %258 = sbr.rel (%p256) target = $region48
        $region47: #{forward.3} parent=43 // pred_region
          %p259 = scmp.lt.s32.totalorder %s17, 1
          %s260 = scalar_select %p259, %s17, 1
          %s261 = smul.addr %s260, 8
          %s262 = scalar_lea.vmem %s0, %s261
        $region48: #{forward.3} parent=43 // pred_fallthru
          _
      $region44: #{forward.3} parent=5 // pred_fallthru
        _
      %p263 = scmp.le.s32.totalorder 1, %s17
      %p264 = scmp.lt.s32.totalorder %s17, 3
      %p265 = pnand %p263, %p264
      %p266 = pneg %p265
      // Predicated region
      $region49: #{forward.3} parent=5 // pred_check
        _
      $region50: #{forward.3} parent=5 // pred_check_branch
        %268 = sbr.rel (%p265) target = $region52
      $region51: #{forward.3} parent=5 // pred_region
        %s269 = ssub.s32 %s17, 1
        %p270 = scmp.lt.s32.totalorder %s22, 1
        %s271 = scalar_select %p270, %s22, 1
        %s272 = smul.addr %s271, 8
        %s273 = scalar_lea.vmem %s0, %s272
        %p274 = pneg %p43
        %p275 = pneg %p40
        %p276 = pneg %p64
        %p277 = pneg %p61
        %p278 = pneg %p85
        %p279 = pneg %p82
        %p280 = pneg %p106
        %p281 = pneg %p103
        %p282 = pneg %p127
        %p283 = pneg %p124
        %p284 = pneg %p148
        %p285 = pneg %p145
        %p286 = pneg %p169
        %p287 = pneg %p166
        %p288 = pneg %p190
        %p289 = pneg %p187
        %p290 = pneg %p216
        %p291 = pneg %p213
        %s292 = sand.u32 %s203, 1
        %s293 = scalar_lea.sflag [#allocation4], %s292
        %s294 = sand.u32 %s203, 1
        %s295 = scalar_lea.vmem [#allocation3], %s294
        %p296 = scmp.lt.s32.totalorder %s22, 1
        %s297 = scalar_select %p296, %s22, 1
        %s298 = smul.addr %s297, 8
        %s299 = scalar_lea.vmem %s0, %s298
        %300 = vst [vmem:[#allocation2] sm:$0x1] 0.0
        %301 = vst [vmem:[#allocation2 + $0x9] sm:$0x1] 0.0
        %v302 = vld [vmem:[%s299] sm:$0xff]
        %303 = vst [vmem:[#allocation2 + $0x1] sm:$0xff] %v302
        %s304 = scalar_lea.vmem %s1, 128
        %v305 = vld [vmem:[%s304] sm:$0xff]
        %v306 = vld [vmem:[%s304 + $0x8] sm:$0xff]
        %v307 = vld [vmem:[%s304 + $0x10] sm:$0xff]
        %v308 = vld [vmem:[%s304 + $0x18] sm:$0xff]
        %v309 = vld [vmem:[%s304 + $0x20] sm:$0xff]
        %v310 = vld [vmem:[%s304 + $0x28] sm:$0xff]
        %v311 = vld [vmem:[%s304 + $0x30] sm:$0xff]
        %v312 = vld [vmem:[%s304 + $0x38] sm:$0xff]
        %v313 = vld [vmem:[%s304 + $0x40] sm:$0xff]
        %v314 = vld [vmem:[%s304 + $0x48] sm:$0xff]
        %v315 = vld [vmem:[%s304 + $0x50] sm:$0xff]
        %v316 = vld [vmem:[%s304 + $0x58] sm:$0xff]
        %v317 = vld [vmem:[%s304 + $0x60] sm:$0xff]
        %v318 = vld [vmem:[%s304 + $0x68] sm:$0xff]
        %v319 = vld [vmem:[%s304 + $0x70] sm:$0xff]
        %v320 = vld [vmem:[%s304 + $0x78] sm:$0xff]
        %v321 = vld [vmem:[#allocation2] sm:$0xff]
        %v322 = vld [vmem:[%s1] sm:$0xff]
        %v323 = vld [vmem:[%s1 + $0x8] sm:$0xff]
        %v324 = vld [vmem:[%s1 + $0x10] sm:$0xff]
        %v325 = vld [vmem:[%s1 + $0x18] sm:$0xff]
        %v326 = vld [vmem:[%s1 + $0x20] sm:$0xff]
        %v327 = vld [vmem:[%s1 + $0x28] sm:$0xff]
        %v328 = vld [vmem:[%s1 + $0x30] sm:$0xff]
        %v329 = vld [vmem:[%s1 + $0x38] sm:$0xff]
        %v330 = vld [vmem:[%s1 + $0x40] sm:$0xff]
        %v331 = vld [vmem:[%s1 + $0x48] sm:$0xff]
        %v332 = vld [vmem:[%s1 + $0x50] sm:$0xff]
        %v333 = vld [vmem:[%s1 + $0x58] sm:$0xff]
        %v334 = vld [vmem:[%s1 + $0x60] sm:$0xff]
        %v335 = vld [vmem:[%s1 + $0x68] sm:$0xff]
        %v336 = vld [vmem:[%s1 + $0x70] sm:$0xff]
        %v337 = vld [vmem:[%s1 + $0x78] sm:$0xff]
        %338 = vmatprep.subr.mxu0 0.0
        %339 = vmatpush1.msra.mxu0 %v322
        %340 = vmatprep.subr.mxu0 0.0
        %341 = vmatpush1.msra.mxu0 %v323
        %342 = vmatprep.subr.mxu0 0.0
        %343 = vmatpush1.msra.mxu0 %v324
        %344 = vmatprep.subr.mxu0 0.0
        %345 = vmatpush1.msra.mxu0 %v325
        %346 = vmatprep.subr.mxu0 0.0
        %347 = vmatpush1.msra.mxu0 %v326
        %348 = vmatprep.subr.mxu0 0.0
        %349 = vmatpush1.msra.mxu0 %v327
        %350 = vmatprep.subr.mxu0 0.0
        %351 = vmatpush1.msra.mxu0 %v328
        %352 = vmatprep.subr.mxu0 0.0
        %353 = vmatpush1.msra.mxu0 %v329
        %354 = vmatprep.subr.mxu0 0.0
        %355 = vmatpush1.msra.mxu0 %v330
        %356 = vmatprep.subr.mxu0 0.0
        %357 = vmatpush1.msra.mxu0 %v331
        %358 = vmatprep.subr.mxu0 0.0
        %359 = vmatpush1.msra.mxu0 %v332
        %360 = vmatprep.subr.mxu0 0.0
        %361 = vmatpush1.msra.mxu0 %v333
        %362 = vmatprep.subr.mxu0 0.0
        %363 = vmatpush1.msra.mxu0 %v334
        %364 = vmatprep.subr.mxu0 0.0
        %365 = vmatpush1.msra.mxu0 %v335
        %366 = vmatprep.subr.mxu0 0.0
        %367 = vmatpush1.msra.mxu0 %v336
        %368 = vmatprep.subr.mxu0 0.0
        %369 = vmatpush1.msra.mxu0 %v337
        %370 = vmatprep.subr.mxu0 0.0
        %371 = vmatpush1.msra.mxu0 0.0
        %372 = vmatprep.subr.mxu0 0.0
        %373 = vmatpush1.msra.mxu0 0.0
        %374 = vmatprep.subr.mxu0 0.0
        %375 = vmatpush1.msra.mxu0 0.0
        %376 = vmatprep.subr.mxu0 0.0
        %377 = vmatpush1.msra.mxu0 0.0
        %378 = vmatprep.subr.mxu0 0.0
        %379 = vmatpush1.msra.mxu0 0.0
        %380 = vmatprep.subr.mxu0 0.0
        %381 = vmatpush1.msra.mxu0 0.0
        %382 = vmatprep.subr.mxu0 0.0
        %383 = vmatpush1.msra.mxu0 0.0
        %384 = vmatprep.subr.mxu0 0.0
        %385 = vmatpush1.msra.mxu0 0.0
        %386 = vmatprep.subr.mxu0 0.0
        %387 = vmatpush1.msra.mxu0 0.0
        %388 = vmatprep.subr.mxu0 0.0
        %389 = vmatpush1.msra.mxu0 0.0
        %390 = vmatprep.subr.mxu0 0.0
        %391 = vmatpush1.msra.mxu0 0.0
        %392 = vmatprep.subr.mxu0 0.0
        %393 = vmatpush1.msra.mxu0 0.0
        %394 = vmatprep.subr.mxu0 0.0
        %395 = vmatpush1.msra.mxu0 0.0
        %396 = vmatprep.subr.mxu0 0.0
        %397 = vmatpush1.msra.mxu0 0.0
        %398 = vmatprep.subr.mxu0 0.0
        %399 = vmatpush1.msra.mxu0 0.0
        %400 = vmatprep.subr.mxu0 0.0
        %401 = vmatpush1.msra.mxu0 0.0
        %402 = vmatprep.mubr.f32.mxu0 0.0
        %403 = vmatmul.mubr.f32.gmra.mrb[0].mxu0 %v321
        %v404 = vpop.f32.mrb[0].mxu0
        %v405 = vadd.f32 0.0, %v404
        %v406 = vpop.f32.mrb[0].mxu0
        %407 = vdwg.mxu0
        %408 = vmatprep.subr.mxu0 0.0
        %409 = vmatpush1.msra.mxu0 %v305
        %410 = vmatprep.subr.mxu0 0.0
        %411 = vmatpush1.msra.mxu0 %v306
        %412 = vmatprep.subr.mxu0 0.0
        %413 = vmatpush1.msra.mxu0 %v307
        %414 = vmatprep.subr.mxu0 0.0
        %415 = vmatpush1.msra.mxu0 %v308
        %416 = vmatprep.subr.mxu0 0.0
        %417 = vmatpush1.msra.mxu0 %v309
        %418 = vmatprep.subr.mxu0 0.0
        %419 = vmatpush1.msra.mxu0 %v310
        %420 = vmatprep.subr.mxu0 0.0
        %421 = vmatpush1.msra.mxu0 %v311
        %422 = vmatprep.subr.mxu0 0.0
        %423 = vmatpush1.msra.mxu0 %v312
        %424 = vmatprep.subr.mxu0 0.0
        %425 = vmatpush1.msra.mxu0 %v313
        %426 = vmatprep.subr.mxu0 0.0
        %427 = vmatpush1.msra.mxu0 %v314
        %428 = vmatprep.subr.mxu0 0.0
        %429 = vmatpush1.msra.mxu0 %v315
        %430 = vmatprep.subr.mxu0 0.0
        %431 = vmatpush1.msra.mxu0 %v316
        %432 = vmatprep.subr.mxu0 0.0
        %433 = vmatpush1.msra.mxu0 %v317
        %434 = vmatprep.subr.mxu0 0.0
        %435 = vmatpush1.msra.mxu0 %v318
        %436 = vmatprep.subr.mxu0 0.0
        %437 = vmatpush1.msra.mxu0 %v319
        %438 = vmatprep.subr.mxu0 0.0
        %439 = vmatpush1.msra.mxu0 %v320
        %440 = vmatprep.subr.mxu0 0.0
        %441 = vmatpush1.msra.mxu0 0.0
        %442 = vmatprep.subr.mxu0 0.0
        %443 = vmatpush1.msra.mxu0 0.0
        %444 = vmatprep.subr.mxu0 0.0
        %445 = vmatpush1.msra.mxu0 0.0
        %446 = vmatprep.subr.mxu0 0.0
        %447 = vmatpush1.msra.mxu0 0.0
        %448 = vmatprep.subr.mxu0 0.0
        %449 = vmatpush1.msra.mxu0 0.0
        %450 = vmatprep.subr.mxu0 0.0
        %451 = vmatpush1.msra.mxu0 0.0
        %452 = vmatprep.subr.mxu0 0.0
        %453 = vmatpush1.msra.mxu0 0.0
        %454 = vmatprep.subr.mxu0 0.0
        %455 = vmatpush1.msra.mxu0 0.0
        %456 = vmatprep.subr.mxu0 0.0
        %457 = vmatpush1.msra.mxu0 0.0
        %458 = vmatprep.subr.mxu0 0.0
        %459 = vmatpush1.msra.mxu0 0.0
        %460 = vmatprep.subr.mxu0 0.0
        %461 = vmatpush1.msra.mxu0 0.0
        %462 = vmatprep.subr.mxu0 0.0
        %463 = vmatpush1.msra.mxu0 0.0
        %464 = vmatprep.subr.mxu0 0.0
        %465 = vmatpush1.msra.mxu0 0.0
        %466 = vmatprep.subr.mxu0 0.0
        %467 = vmatpush1.msra.mxu0 0.0
        %468 = vmatprep.subr.mxu0 0.0
        %469 = vmatpush1.msra.mxu0 0.0
        %470 = vmatprep.subr.mxu0 0.0
        %471 = vmatpush1.msra.mxu0 0.0
        %472 = vmatprep.mubr.f32.mxu0 0.0
        %473 = vmatmul.mubr.f32.gmra.mrb[0].mxu0 %v302
        %v474 = vpop.f32.mrb[0].mxu0
        %v475 = vadd.f32 %v405, %v474
        %v476 = vpop.f32.mrb[0].mxu0
        %477 = vdwg.mxu0
        %v478 = vld [vmem:[#allocation2 + $0x2] sm:$0xff]
        %s479 = scalar_lea.vmem %s1, 256
        %v480 = vld [vmem:[%s479] sm:$0xff]
        %v481 = vld [vmem:[%s479 + $0x8] sm:$0xff]
        %v482 = vld [vmem:[%s479 + $0x10] sm:$0xff]
        %v483 = vld [vmem:[%s479 + $0x18] sm:$0xff]
        %v484 = vld [vmem:[%s479 + $0x20] sm:$0xff]
        %v485 = vld [vmem:[%s479 + $0x28] sm:$0xff]
        %v486 = vld [vmem:[%s479 + $0x30] sm:$0xff]
        %v487 = vld [vmem:[%s479 + $0x38] sm:$0xff]
        %v488 = vld [vmem:[%s479 + $0x40] sm:$0xff]
        %v489 = vld [vmem:[%s479 + $0x48] sm:$0xff]
        %v490 = vld [vmem:[%s479 + $0x50] sm:$0xff]
        %v491 = vld [vmem:[%s479 + $0x58] sm:$0xff]
        %v492 = vld [vmem:[%s479 + $0x60] sm:$0xff]
        %v493 = vld [vmem:[%s479 + $0x68] sm:$0xff]
        %v494 = vld [vmem:[%s479 + $0x70] sm:$0xff]
        %v495 = vld [vmem:[%s479 + $0x78] sm:$0xff]
        %496 = vmatprep.subr.mxu0 0.0
        %497 = vmatpush1.msra.mxu0 %v480
        %498 = vmatprep.subr.mxu0 0.0
        %499 = vmatpush1.msra.mxu0 %v481
        %500 = vmatprep.subr.mxu0 0.0
        %501 = vmatpush1.msra.mxu0 %v482
        %502 = vmatprep.subr.mxu0 0.0
        %503 = vmatpush1.msra.mxu0 %v483
        %504 = vmatprep.subr.mxu0 0.0
        %505 = vmatpush1.msra.mxu0 %v484
        %506 = vmatprep.subr.mxu0 0.0
        %507 = vmatpush1.msra.mxu0 %v485
        %508 = vmatprep.subr.mxu0 0.0
        %509 = vmatpush1.msra.mxu0 %v486
        %510 = vmatprep.subr.mxu0 0.0
        %511 = vmatpush1.msra.mxu0 %v487
        %512 = vmatprep.subr.mxu0 0.0
        %513 = vmatpush1.msra.mxu0 %v488
        %514 = vmatprep.subr.mxu0 0.0
        %515 = vmatpush1.msra.mxu0 %v489
        %516 = vmatprep.subr.mxu0 0.0
        %517 = vmatpush1.msra.mxu0 %v490
        %518 = vmatprep.subr.mxu0 0.0
        %519 = vmatpush1.msra.mxu0 %v491
        %520 = vmatprep.subr.mxu0 0.0
        %521 = vmatpush1.msra.mxu0 %v492
        %522 = vmatprep.subr.mxu0 0.0
        %523 = vmatpush1.msra.mxu0 %v493
        %524 = vmatprep.subr.mxu0 0.0
        %525 = vmatpush1.msra.mxu0 %v494
        %526 = vmatprep.subr.mxu0 0.0
        %527 = vmatpush1.msra.mxu0 %v495
        %528 = vmatprep.subr.mxu0 0.0
        %529 = vmatpush1.msra.mxu0 0.0
        %530 = vmatprep.subr.mxu0 0.0
        %531 = vmatpush1.msra.mxu0 0.0
        %532 = vmatprep.subr.mxu0 0.0
        %533 = vmatpush1.msra.mxu0 0.0
        %534 = vmatprep.subr.mxu0 0.0
        %535 = vmatpush1.msra.mxu0 0.0
        %536 = vmatprep.subr.mxu0 0.0
        %537 = vmatpush1.msra.mxu0 0.0
        %538 = vmatprep.subr.mxu0 0.0
        %539 = vmatpush1.msra.mxu0 0.0
        %540 = vmatprep.subr.mxu0 0.0
        %541 = vmatpush1.msra.mxu0 0.0
        %542 = vmatprep.subr.mxu0 0.0
        %543 = vmatpush1.msra.mxu0 0.0
        %544 = vmatprep.subr.mxu0 0.0
        %545 = vmatpush1.msra.mxu0 0.0
        %546 = vmatprep.subr.mxu0 0.0
        %547 = vmatpush1.msra.mxu0 0.0
        %548 = vmatprep.subr.mxu0 0.0
        %549 = vmatpush1.msra.mxu0 0.0
        %550 = vmatprep.subr.mxu0 0.0
        %551 = vmatpush1.msra.mxu0 0.0
        %552 = vmatprep.subr.mxu0 0.0
        %553 = vmatpush1.msra.mxu0 0.0
        %554 = vmatprep.subr.mxu0 0.0
        %555 = vmatpush1.msra.mxu0 0.0
        %556 = vmatprep.subr.mxu0 0.0
        %557 = vmatpush1.msra.mxu0 0.0
        %558 = vmatprep.subr.mxu0 0.0
        %559 = vmatpush1.msra.mxu0 0.0
        %560 = vmatprep.mubr.f32.mxu0 0.0
        %561 = vmatmul.mubr.f32.gmra.mrb[0].mxu0 %v478
        %v562 = vpop.f32.mrb[0].mxu0
        %v563 = vadd.f32 0.0, %v562
        %v564 = vpop.f32.mrb[0].mxu0
        %565 = vdwg.mxu0
        %v566 = vadd.f32 %v475, %v563
        %v567 = vld [vmem:[%s3] sm:$0x1]
        %v569 = vlaneseq
        %v570 = vshrl.u32 %v569, 7
        %v571 = vsub.s32 0, %v570
        %v572 = vrot.slane %v567, %v571
        %v574 = vadd.f32 %v566, %v572
        %vm575 = vcmp.ge.f32.partialorder %v574, 0.0
        %v576 = vmul.f32 %v574, 0.01
        %v577 = vsel %vm575, %v574, %v576
        %578 = vst [vmem:[#allocation2 + $0x1] sm:$0xff] %v577
        %s579 = scalar_lea.vmem %s2, 128
        %v580 = vld [vmem:[%s579] sm:$0xff]
        %v581 = vld [vmem:[%s579 + $0x8] sm:$0xff]
        %v582 = vld [vmem:[%s579 + $0x10] sm:$0xff]
        %v583 = vld [vmem:[%s579 + $0x18] sm:$0xff]
        %v584 = vld [vmem:[%s579 + $0x20] sm:$0xff]
        %v585 = vld [vmem:[%s579 + $0x28] sm:$0xff]
        %v586 = vld [vmem:[%s579 + $0x30] sm:$0xff]
        %v587 = vld [vmem:[%s579 + $0x38] sm:$0xff]
        %v588 = vld [vmem:[%s579 + $0x40] sm:$0xff]
        %v589 = vld [vmem:[%s579 + $0x48] sm:$0xff]
        %v590 = vld [vmem:[%s579 + $0x50] sm:$0xff]
        %v591 = vld [vmem:[%s579 + $0x58] sm:$0xff]
        %v592 = vld [vmem:[%s579 + $0x60] sm:$0xff]
        %v593 = vld [vmem:[%s579 + $0x68] sm:$0xff]
        %v594 = vld [vmem:[%s579 + $0x70] sm:$0xff]
        %v595 = vld [vmem:[%s579 + $0x78] sm:$0xff]
        %v596 = vld [vmem:[#allocation2] sm:$0xff]
        %v597 = vld [vmem:[%s2] sm:$0xff]
        %v598 = vld [vmem:[%s2 + $0x8] sm:$0xff]
        %v599 = vld [vmem:[%s2 + $0x10] sm:$0xff]
        %v600 = vld [vmem:[%s2 + $0x18] sm:$0xff]
        %v601 = vld [vmem:[%s2 + $0x20] sm:$0xff]
        %v602 = vld [vmem:[%s2 + $0x28] sm:$0xff]
        %v603 = vld [vmem:[%s2 + $0x30] sm:$0xff]
        %v604 = vld [vmem:[%s2 + $0x38] sm:$0xff]
        %v605 = vld [vmem:[%s2 + $0x40] sm:$0xff]
        %v606 = vld [vmem:[%s2 + $0x48] sm:$0xff]
        %v607 = vld [vmem:[%s2 + $0x50] sm:$0xff]
        %v608 = vld [vmem:[%s2 + $0x58] sm:$0xff]
        %v609 = vld [vmem:[%s2 + $0x60] sm:$0xff]
        %v610 = vld [vmem:[%s2 + $0x68] sm:$0xff]
        %v611 = vld [vmem:[%s2 + $0x70] sm:$0xff]
        %v612 = vld [vmem:[%s2 + $0x78] sm:$0xff]
        %613 = vmatprep.subr.mxu0 0.0
        %614 = vmatpush1.msra.mxu0 %v597
        %615 = vmatprep.subr.mxu0 0.0
        %616 = vmatpush1.msra.mxu0 %v598
        %617 = vmatprep.subr.mxu0 0.0
        %618 = vmatpush1.msra.mxu0 %v599
        %619 = vmatprep.subr.mxu0 0.0
        %620 = vmatpush1.msra.mxu0 %v600
        %621 = vmatprep.subr.mxu0 0.0
        %622 = vmatpush1.msra.mxu0 %v601
        %623 = vmatprep.subr.mxu0 0.0
        %624 = vmatpush1.msra.mxu0 %v602
        %625 = vmatprep.subr.mxu0 0.0
        %626 = vmatpush1.msra.mxu0 %v603
        %627 = vmatprep.subr.mxu0 0.0
        %628 = vmatpush1.msra.mxu0 %v604
        %629 = vmatprep.subr.mxu0 0.0
        %630 = vmatpush1.msra.mxu0 %v605
        %631 = vmatprep.subr.mxu0 0.0
        %632 = vmatpush1.msra.mxu0 %v606
        %633 = vmatprep.subr.mxu0 0.0
        %634 = vmatpush1.msra.mxu0 %v607
        %635 = vmatprep.subr.mxu0 0.0
        %636 = vmatpush1.msra.mxu0 %v608
        %637 = vmatprep.subr.mxu0 0.0
        %638 = vmatpush1.msra.mxu0 %v609
        %639 = vmatprep.subr.mxu0 0.0
        %640 = vmatpush1.msra.mxu0 %v610
        %641 = vmatprep.subr.mxu0 0.0
        %642 = vmatpush1.msra.mxu0 %v611
        %643 = vmatprep.subr.mxu0 0.0
        %644 = vmatpush1.msra.mxu0 %v612
        %645 = vmatprep.subr.mxu0 0.0
        %646 = vmatpush1.msra.mxu0 0.0
        %647 = vmatprep.subr.mxu0 0.0
        %648 = vmatpush1.msra.mxu0 0.0
        %649 = vmatprep.subr.mxu0 0.0
        %650 = vmatpush1.msra.mxu0 0.0
        %651 = vmatprep.subr.mxu0 0.0
        %652 = vmatpush1.msra.mxu0 0.0
        %653 = vmatprep.subr.mxu0 0.0
        %654 = vmatpush1.msra.mxu0 0.0
        %655 = vmatprep.subr.mxu0 0.0
        %656 = vmatpush1.msra.mxu0 0.0
        %657 = vmatprep.subr.mxu0 0.0
        %658 = vmatpush1.msra.mxu0 0.0
        %659 = vmatprep.subr.mxu0 0.0
        %660 = vmatpush1.msra.mxu0 0.0
        %661 = vmatprep.subr.mxu0 0.0
        %662 = vmatpush1.msra.mxu0 0.0
        %663 = vmatprep.subr.mxu0 0.0
        %664 = vmatpush1.msra.mxu0 0.0
        %665 = vmatprep.subr.mxu0 0.0
        %666 = vmatpush1.msra.mxu0 0.0
        %667 = vmatprep.subr.mxu0 0.0
        %668 = vmatpush1.msra.mxu0 0.0
        %669 = vmatprep.subr.mxu0 0.0
        %670 = vmatpush1.msra.mxu0 0.0
        %671 = vmatprep.subr.mxu0 0.0
        %672 = vmatpush1.msra.mxu0 0.0
        %673 = vmatprep.subr.mxu0 0.0
        %674 = vmatpush1.msra.mxu0 0.0
        %675 = vmatprep.subr.mxu0 0.0
        %676 = vmatpush1.msra.mxu0 0.0
        %677 = vmatprep.mubr.f32.mxu0 0.0
        %678 = vmatmul.mubr.f32.gmra.mrb[0].mxu0 %v596
        %v679 = vpop.f32.mrb[0].mxu0
        %v680 = vadd.f32 0.0, %v679
        %v681 = vpop.f32.mrb[0].mxu0
        %682 = vdwg.mxu0
        %683 = vmatprep.subr.mxu0 0.0
        %684 = vmatpush1.msra.mxu0 %v580
        %685 = vmatprep.subr.mxu0 0.0
        %686 = vmatpush1.msra.mxu0 %v581
        %687 = vmatprep.subr.mxu0 0.0
        %688 = vmatpush1.msra.mxu0 %v582
        %689 = vmatprep.subr.mxu0 0.0
        %690 = vmatpush1.msra.mxu0 %v583
        %691 = vmatprep.subr.mxu0 0.0
        %692 = vmatpush1.msra.mxu0 %v584
        %693 = vmatprep.subr.mxu0 0.0
        %694 = vmatpush1.msra.mxu0 %v585
        %695 = vmatprep.subr.mxu0 0.0
        %696 = vmatpush1.msra.mxu0 %v586
        %697 = vmatprep.subr.mxu0 0.0
        %698 = vmatpush1.msra.mxu0 %v587
        %699 = vmatprep.subr.mxu0 0.0
        %700 = vmatpush1.msra.mxu0 %v588
        %701 = vmatprep.subr.mxu0 0.0
        %702 = vmatpush1.msra.mxu0 %v589
        %703 = vmatprep.subr.mxu0 0.0
        %704 = vmatpush1.msra.mxu0 %v590
        %705 = vmatprep.subr.mxu0 0.0
        %706 = vmatpush1.msra.mxu0 %v591
        %707 = vmatprep.subr.mxu0 0.0
        %708 = vmatpush1.msra.mxu0 %v592
        %709 = vmatprep.subr.mxu0 0.0
        %710 = vmatpush1.msra.mxu0 %v593
        %711 = vmatprep.subr.mxu0 0.0
        %712 = vmatpush1.msra.mxu0 %v594
        %713 = vmatprep.subr.mxu0 0.0
        %714 = vmatpush1.msra.mxu0 %v595
        %715 = vmatprep.subr.mxu0 0.0
        %716 = vmatpush1.msra.mxu0 0.0
        %717 = vmatprep.subr.mxu0 0.0
        %718 = vmatpush1.msra.mxu0 0.0
        %719 = vmatprep.subr.mxu0 0.0
        %720 = vmatpush1.msra.mxu0 0.0
        %721 = vmatprep.subr.mxu0 0.0
        %722 = vmatpush1.msra.mxu0 0.0
        %723 = vmatprep.subr.mxu0 0.0
        %724 = vmatpush1.msra.mxu0 0.0
        %725 = vmatprep.subr.mxu0 0.0
        %726 = vmatpush1.msra.mxu0 0.0
        %727 = vmatprep.subr.mxu0 0.0
        %728 = vmatpush1.msra.mxu0 0.0
        %729 = vmatprep.subr.mxu0 0.0
        %730 = vmatpush1.msra.mxu0 0.0
        %731 = vmatprep.subr.mxu0 0.0
        %732 = vmatpush1.msra.mxu0 0.0
        %733 = vmatprep.subr.mxu0 0.0
        %734 = vmatpush1.msra.mxu0 0.0
        %735 = vmatprep.subr.mxu0 0.0
        %736 = vmatpush1.msra.mxu0 0.0
        %737 = vmatprep.subr.mxu0 0.0
        %738 = vmatpush1.msra.mxu0 0.0
        %739 = vmatprep.subr.mxu0 0.0
        %740 = vmatpush1.msra.mxu0 0.0
        %741 = vmatprep.subr.mxu0 0.0
        %742 = vmatpush1.msra.mxu0 0.0
        %743 = vmatprep.subr.mxu0 0.0
        %744 = vmatpush1.msra.mxu0 0.0
        %745 = vmatprep.subr.mxu0 0.0
        %746 = vmatpush1.msra.mxu0 0.0
        %747 = vmatprep.mubr.f32.mxu0 0.0
        %748 = vmatmul.mubr.f32.gmra.mrb[0].mxu0 %v577
        %v749 = vpop.f32.mrb[0].mxu0
        %v750 = vadd.f32 %v680, %v749
        %v751 = vpop.f32.mrb[0].mxu0
        %752 = vdwg.mxu0
        %v753 = vld [vmem:[#allocation2 + $0x2] sm:$0xff]
        %s754 = scalar_lea.vmem %s2, 256
        %v755 = vld [vmem:[%s754] sm:$0xff]
        %v756 = vld [vmem:[%s754 + $0x8] sm:$0xff]
        %v757 = vld [vmem:[%s754 + $0x10] sm:$0xff]
        %v758 = vld [vmem:[%s754 + $0x18] sm:$0xff]
        %v759 = vld [vmem:[%s754 + $0x20] sm:$0xff]
        %v760 = vld [vmem:[%s754 + $0x28] sm:$0xff]
        %v761 = vld [vmem:[%s754 + $0x30] sm:$0xff]
        %v762 = vld [vmem:[%s754 + $0x38] sm:$0xff]
        %v763 = vld [vmem:[%s754 + $0x40] sm:$0xff]
        %v764 = vld [vmem:[%s754 + $0x48] sm:$0xff]
        %v765 = vld [vmem:[%s754 + $0x50] sm:$0xff]
        %v766 = vld [vmem:[%s754 + $0x58] sm:$0xff]
        %v767 = vld [vmem:[%s754 + $0x60] sm:$0xff]
        %v768 = vld [vmem:[%s754 + $0x68] sm:$0xff]
        %v769 = vld [vmem:[%s754 + $0x70] sm:$0xff]
        %v770 = vld [vmem:[%s754 + $0x78] sm:$0xff]
        %771 = vmatprep.subr.mxu0 0.0
        %772 = vmatpush1.msra.mxu0 %v755
        %773 = vmatprep.subr.mxu0 0.0
        %774 = vmatpush1.msra.mxu0 %v756
        %775 = vmatprep.subr.mxu0 0.0
        %776 = vmatpush1.msra.mxu0 %v757
        %777 = vmatprep.subr.mxu0 0.0
        %778 = vmatpush1.msra.mxu0 %v758
        %779 = vmatprep.subr.mxu0 0.0
        %780 = vmatpush1.msra.mxu0 %v759
        %781 = vmatprep.subr.mxu0 0.0
        %782 = vmatpush1.msra.mxu0 %v760
        %783 = vmatprep.subr.mxu0 0.0
        %784 = vmatpush1.msra.mxu0 %v761
        %785 = vmatprep.subr.mxu0 0.0
        %786 = vmatpush1.msra.mxu0 %v762
        %787 = vmatprep.subr.mxu0 0.0
        %788 = vmatpush1.msra.mxu0 %v763
        %789 = vmatprep.subr.mxu0 0.0
        %790 = vmatpush1.msra.mxu0 %v764
        %791 = vmatprep.subr.mxu0 0.0
        %792 = vmatpush1.msra.mxu0 %v765
        %793 = vmatprep.subr.mxu0 0.0
        %794 = vmatpush1.msra.mxu0 %v766
        %795 = vmatprep.subr.mxu0 0.0
        %796 = vmatpush1.msra.mxu0 %v767
        %797 = vmatprep.subr.mxu0 0.0
        %798 = vmatpush1.msra.mxu0 %v768
        %799 = vmatprep.subr.mxu0 0.0
        %800 = vmatpush1.msra.mxu0 %v769
        %801 = vmatprep.subr.mxu0 0.0
        %802 = vmatpush1.msra.mxu0 %v770
        %803 = vmatprep.subr.mxu0 0.0
        %804 = vmatpush1.msra.mxu0 0.0
        %805 = vmatprep.subr.mxu0 0.0
        %806 = vmatpush1.msra.mxu0 0.0
        %807 = vmatprep.subr.mxu0 0.0
        %808 = vmatpush1.msra.mxu0 0.0
        %809 = vmatprep.subr.mxu0 0.0
        %810 = vmatpush1.msra.mxu0 0.0
        %811 = vmatprep.subr.mxu0 0.0
        %812 = vmatpush1.msra.mxu0 0.0
        %813 = vmatprep.subr.mxu0 0.0
        %814 = vmatpush1.msra.mxu0 0.0
        %815 = vmatprep.subr.mxu0 0.0
        %816 = vmatpush1.msra.mxu0 0.0
        %817 = vmatprep.subr.mxu0 0.0
        %818 = vmatpush1.msra.mxu0 0.0
        %819 = vmatprep.subr.mxu0 0.0
        %820 = vmatpush1.msra.mxu0 0.0
        %821 = vmatprep.subr.mxu0 0.0
        %822 = vmatpush1.msra.mxu0 0.0
        %823 = vmatprep.subr.mxu0 0.0
        %824 = vmatpush1.msra.mxu0 0.0
        %825 = vmatprep.subr.mxu0 0.0
        %826 = vmatpush1.msra.mxu0 0.0
        %827 = vmatprep.subr.mxu0 0.0
        %828 = vmatpush1.msra.mxu0 0.0
        %829 = vmatprep.subr.mxu0 0.0
        %830 = vmatpush1.msra.mxu0 0.0
        %831 = vmatprep.subr.mxu0 0.0
        %832 = vmatpush1.msra.mxu0 0.0
        %833 = vmatprep.subr.mxu0 0.0
        %834 = vmatpush1.msra.mxu0 0.0
        %835 = vmatprep.mubr.f32.mxu0 0.0
        %836 = vmatmul.mubr.f32.gmra.mrb[0].mxu0 %v753
        %v837 = vpop.f32.mrb[0].mxu0
        %v838 = vadd.f32 0.0, %v837
        %v839 = vpop.f32.mrb[0].mxu0
        %840 = vdwg.mxu0
        %v841 = vadd.f32 %v750, %v838
        %v842 = vsub.f32 %v302, %v841
        %843 = vst [vmem:[#allocation2 + $0x1] sm:$0xff] %v842
        %s844 = scalar_lea.vmem %s1, 512
        %v845 = vld [vmem:[%s844] sm:$0xff]
        %v846 = vld [vmem:[%s844 + $0x8] sm:$0xff]
        %v847 = vld [vmem:[%s844 + $0x10] sm:$0xff]
        %v848 = vld [vmem:[%s844 + $0x18] sm:$0xff]
        %v849 = vld [vmem:[%s844 + $0x20] sm:$0xff]
        %v850 = vld [vmem:[%s844 + $0x28] sm:$0xff]
        %v851 = vld [vmem:[%s844 + $0x30] sm:$0xff]
        %v852 = vld [vmem:[%s844 + $0x38] sm:$0xff]
        %v853 = vld [vmem:[%s844 + $0x40] sm:$0xff]
        %v854 = vld [vmem:[%s844 + $0x48] sm:$0xff]
        %v855 = vld [vmem:[%s844 + $0x50] sm:$0xff]
        %v856 = vld [vmem:[%s844 + $0x58] sm:$0xff]
        %v857 = vld [vmem:[%s844 + $0x60] sm:$0xff]
        %v858 = vld [vmem:[%s844 + $0x68] sm:$0xff]
        %v859 = vld [vmem:[%s844 + $0x70] sm:$0xff]
        %v860 = vld [vmem:[%s844 + $0x78] sm:$0xff]
        %v861 = vld [vmem:[#allocation2] sm:$0xff]
        %s862 = scalar_lea.vmem %s1, 384
        %v863 = vld [vmem:[%s862] sm:$0xff]
        %v864 = vld [vmem:[%s862 + $0x8] sm:$0xff]
        %v865 = vld [vmem:[%s862 + $0x10] sm:$0xff]
        %v866 = vld [vmem:[%s862 + $0x18] sm:$0xff]
        %v867 = vld [vmem:[%s862 + $0x20] sm:$0xff]
        %v868 = vld [vmem:[%s862 + $0x28] sm:$0xff]
        %v869 = vld [vmem:[%s862 + $0x30] sm:$0xff]
        %v870 = vld [vmem:[%s862 + $0x38] sm:$0xff]
        %v871 = vld [vmem:[%s862 + $0x40] sm:$0xff]
        %v872 = vld [vmem:[%s862 + $0x48] sm:$0xff]
        %v873 = vld [vmem:[%s862 + $0x50] sm:$0xff]
        %v874 = vld [vmem:[%s862 + $0x58] sm:$0xff]
        %v875 = vld [vmem:[%s862 + $0x60] sm:$0xff]
        %v876 = vld [vmem:[%s862 + $0x68] sm:$0xff]
        %v877 = vld [vmem:[%s862 + $0x70] sm:$0xff]
        %v878 = vld [vmem:[%s862 + $0x78] sm:$0xff]
        %879 = vmatprep.subr.mxu0 0.0
        %880 = vmatpush1.msra.mxu0 %v863
        %881 = vmatprep.subr.mxu0 0.0
        %882 = vmatpush1.msra.mxu0 %v864
        %883 = vmatprep.subr.mxu0 0.0
        %884 = vmatpush1.msra.mxu0 %v865
        %885 = vmatprep.subr.mxu0 0.0
        %886 = vmatpush1.msra.mxu0 %v866
        %887 = vmatprep.subr.mxu0 0.0
        %888 = vmatpush1.msra.mxu0 %v867
        %889 = vmatprep.subr.mxu0 0.0
        %890 = vmatpush1.msra.mxu0 %v868
        %891 = vmatprep.subr.mxu0 0.0
        %892 = vmatpush1.msra.mxu0 %v869
        %893 = vmatprep.subr.mxu0 0.0
        %894 = vmatpush1.msra.mxu0 %v870
        %895 = vmatprep.subr.mxu0 0.0
        %896 = vmatpush1.msra.mxu0 %v871
        %897 = vmatprep.subr.mxu0 0.0
        %898 = vmatpush1.msra.mxu0 %v872
        %899 = vmatprep.subr.mxu0 0.0
        %900 = vmatpush1.msra.mxu0 %v873
        %901 = vmatprep.subr.mxu0 0.0
        %902 = vmatpush1.msra.mxu0 %v874
        %903 = vmatprep.subr.mxu0 0.0
        %904 = vmatpush1.msra.mxu0 %v875
        %905 = vmatprep.subr.mxu0 0.0
        %906 = vmatpush1.msra.mxu0 %v876
        %907 = vmatprep.subr.mxu0 0.0
        %908 = vmatpush1.msra.mxu0 %v877
        %909 = vmatprep.subr.mxu0 0.0
        %910 = vmatpush1.msra.mxu0 %v878
        %911 = vmatprep.subr.mxu0 0.0
        %912 = vmatpush1.msra.mxu0 0.0
        %913 = vmatprep.subr.mxu0 0.0
        %914 = vmatpush1.msra.mxu0 0.0
        %915 = vmatprep.subr.mxu0 0.0
        %916 = vmatpush1.msra.mxu0 0.0
        %917 = vmatprep.subr.mxu0 0.0
        %918 = vmatpush1.msra.mxu0 0.0
        %919 = vmatprep.subr.mxu0 0.0
        %920 = vmatpush1.msra.mxu0 0.0
        %921 = vmatprep.subr.mxu0 0.0
        %922 = vmatpush1.msra.mxu0 0.0
        %923 = vmatprep.subr.mxu0 0.0
        %924 = vmatpush1.msra.mxu0 0.0
        %925 = vmatprep.subr.mxu0 0.0
        %926 = vmatpush1.msra.mxu0 0.0
        %927 = vmatprep.subr.mxu0 0.0
        %928 = vmatpush1.msra.mxu0 0.0
        %929 = vmatprep.subr.mxu0 0.0
        %930 = vmatpush1.msra.mxu0 0.0
        %931 = vmatprep.subr.mxu0 0.0
        %932 = vmatpush1.msra.mxu0 0.0
        %933 = vmatprep.subr.mxu0 0.0
        %934 = vmatpush1.msra.mxu0 0.0
        %935 = vmatprep.subr.mxu0 0.0
        %936 = vmatpush1.msra.mxu0 0.0
        %937 = vmatprep.subr.mxu0 0.0
        %938 = vmatpush1.msra.mxu0 0.0
        %939 = vmatprep.subr.mxu0 0.0
        %940 = vmatpush1.msra.mxu0 0.0
        %941 = vmatprep.subr.mxu0 0.0
        %942 = vmatpush1.msra.mxu0 0.0
        %943 = vmatprep.mubr.f32.mxu0 0.0
        %944 = vmatmul.mubr.f32.gmra.mrb[0].mxu0 %v861
        %v945 = vpop.f32.mrb[0].mxu0
        %v946 = vadd.f32 0.0, %v945
        %v947 = vpop.f32.mrb[0].mxu0
        %948 = vdwg.mxu0
        %949 = vmatprep.subr.mxu0 0.0
        %950 = vmatpush1.msra.mxu0 %v845
        %951 = vmatprep.subr.mxu0 0.0
        %952 = vmatpush1.msra.mxu0 %v846
        %953 = vmatprep.subr.mxu0 0.0
        %954 = vmatpush1.msra.mxu0 %v847
        %955 = vmatprep.subr.mxu0 0.0
        %956 = vmatpush1.msra.mxu0 %v848
        %957 = vmatprep.subr.mxu0 0.0
        %958 = vmatpush1.msra.mxu0 %v849
        %959 = vmatprep.subr.mxu0 0.0
        %960 = vmatpush1.msra.mxu0 %v850
        %961 = vmatprep.subr.mxu0 0.0
        %962 = vmatpush1.msra.mxu0 %v851
        %963 = vmatprep.subr.mxu0 0.0
        %964 = vmatpush1.msra.mxu0 %v852
        %965 = vmatprep.subr.mxu0 0.0
        %966 = vmatpush1.msra.mxu0 %v853
        %967 = vmatprep.subr.mxu0 0.0
        %968 = vmatpush1.msra.mxu0 %v854
        %969 = vmatprep.subr.mxu0 0.0
        %970 = vmatpush1.msra.mxu0 %v855
        %971 = vmatprep.subr.mxu0 0.0
        %972 = vmatpush1.msra.mxu0 %v856
        %973 = vmatprep.subr.mxu0 0.0
        %974 = vmatpush1.msra.mxu0 %v857
        %975 = vmatprep.subr.mxu0 0.0
        %976 = vmatpush1.msra.mxu0 %v858
        %977 = vmatprep.subr.mxu0 0.0
        %978 = vmatpush1.msra.mxu0 %v859
        %979 = vmatprep.subr.mxu0 0.0
        %980 = vmatpush1.msra.mxu0 %v860
        %981 = vmatprep.subr.mxu0 0.0
        %982 = vmatpush1.msra.mxu0 0.0
        %983 = vmatprep.subr.mxu0 0.0
        %984 = vmatpush1.msra.mxu0 0.0
        %985 = vmatprep.subr.mxu0 0.0
        %986 = vmatpush1.msra.mxu0 0.0
        %987 = vmatprep.subr.mxu0 0.0
        %988 = vmatpush1.msra.mxu0 0.0
        %989 = vmatprep.subr.mxu0 0.0
        %990 = vmatpush1.msra.mxu0 0.0
        %991 = vmatprep.subr.mxu0 0.0
        %992 = vmatpush1.msra.mxu0 0.0
        %993 = vmatprep.subr.mxu0 0.0
        %994 = vmatpush1.msra.mxu0 0.0
        %995 = vmatprep.subr.mxu0 0.0
        %996 = vmatpush1.msra.mxu0 0.0
        %997 = vmatprep.subr.mxu0 0.0
        %998 = vmatpush1.msra.mxu0 0.0
        %999 = vmatprep.subr.mxu0 0.0
        %1000 = vmatpush1.msra.mxu0 0.0
        %1001 = vmatprep.subr.mxu0 0.0
        %1002 = vmatpush1.msra.mxu0 0.0
        %1003 = vmatprep.subr.mxu0 0.0
        %1004 = vmatpush1.msra.mxu0 0.0
        %1005 = vmatprep.subr.mxu0 0.0
        %1006 = vmatpush1.msra.mxu0 0.0
        %1007 = vmatprep.subr.mxu0 0.0
        %1008 = vmatpush1.msra.mxu0 0.0
        %1009 = vmatprep.subr.mxu0 0.0
        %1010 = vmatpush1.msra.mxu0 0.0
        %1011 = vmatprep.subr.mxu0 0.0
        %1012 = vmatpush1.msra.mxu0 0.0
        %1013 = vmatprep.mubr.f32.mxu0 0.0
        %1014 = vmatmul.mubr.f32.gmra.mrb[0].mxu0 %v842
        %v1015 = vpop.f32.mrb[0].mxu0
        %v1016 = vadd.f32 %v946, %v1015
        %v1017 = vpop.f32.mrb[0].mxu0
        %1018 = vdwg.mxu0
        %v1019 = vld [vmem:[#allocation2 + $0x2] sm:$0xff]
        %s1020 = scalar_lea.vmem %s1, 640
        %v1021 = vld [vmem:[%s1020] sm:$0xff]
        %v1022 = vld [vmem:[%s1020 + $0x8] sm:$0xff]
        %v1023 = vld [vmem:[%s1020 + $0x10] sm:$0xff]
        %v1024 = vld [vmem:[%s1020 + $0x18] sm:$0xff]
        %v1025 = vld [vmem:[%s1020 + $0x20] sm:$0xff]
        %v1026 = vld [vmem:[%s1020 + $0x28] sm:$0xff]
        %v1027 = vld [vmem:[%s1020 + $0x30] sm:$0xff]
        %v1028 = vld [vmem:[%s1020 + $0x38] sm:$0xff]
        %v1029 = vld [vmem:[%s1020 + $0x40] sm:$0xff]
        %v1030 = vld [vmem:[%s1020 + $0x48] sm:$0xff]
        %v1031 = vld [vmem:[%s1020 + $0x50] sm:$0xff]
        %v1032 = vld [vmem:[%s1020 + $0x58] sm:$0xff]
        %v1033 = vld [vmem:[%s1020 + $0x60] sm:$0xff]
        %v1034 = vld [vmem:[%s1020 + $0x68] sm:$0xff]
        %v1035 = vld [vmem:[%s1020 + $0x70] sm:$0xff]
        %v1036 = vld [vmem:[%s1020 + $0x78] sm:$0xff]
        %1037 = vmatprep.subr.mxu0 0.0
        %1038 = vmatpush1.msra.mxu0 %v1021
        %1039 = vmatprep.subr.mxu0 0.0
        %1040 = vmatpush1.msra.mxu0 %v1022
        %1041 = vmatprep.subr.mxu0 0.0
        %1042 = vmatpush1.msra.mxu0 %v1023
        %1043 = vmatprep.subr.mxu0 0.0
        %1044 = vmatpush1.msra.mxu0 %v1024
        %1045 = vmatprep.subr.mxu0 0.0
        %1046 = vmatpush1.msra.mxu0 %v1025
        %1047 = vmatprep.subr.mxu0 0.0
        %1048 = vmatpush1.msra.mxu0 %v1026
        %1049 = vmatprep.subr.mxu0 0.0
        %1050 = vmatpush1.msra.mxu0 %v1027
        %1051 = vmatprep.subr.mxu0 0.0
        %1052 = vmatpush1.msra.mxu0 %v1028
        %1053 = vmatprep.subr.mxu0 0.0
        %1054 = vmatpush1.msra.mxu0 %v1029
        %1055 = vmatprep.subr.mxu0 0.0
        %1056 = vmatpush1.msra.mxu0 %v1030
        %1057 = vmatprep.subr.mxu0 0.0
        %1058 = vmatpush1.msra.mxu0 %v1031
        %1059 = vmatprep.subr.mxu0 0.0
        %1060 = vmatpush1.msra.mxu0 %v1032
        %1061 = vmatprep.subr.mxu0 0.0
        %1062 = vmatpush1.msra.mxu0 %v1033
        %1063 = vmatprep.subr.mxu0 0.0
        %1064 = vmatpush1.msra.mxu0 %v1034
        %1065 = vmatprep.subr.mxu0 0.0
        %1066 = vmatpush1.msra.mxu0 %v1035
        %1067 = vmatprep.subr.mxu0 0.0
        %1068 = vmatpush1.msra.mxu0 %v1036
        %1069 = vmatprep.subr.mxu0 0.0
        %1070 = vmatpush1.msra.mxu0 0.0
        %1071 = vmatprep.subr.mxu0 0.0
        %1072 = vmatpush1.msra.mxu0 0.0
        %1073 = vmatprep.subr.mxu0 0.0
        %1074 = vmatpush1.msra.mxu0 0.0
        %1075 = vmatprep.subr.mxu0 0.0
        %1076 = vmatpush1.msra.mxu0 0.0
        %1077 = vmatprep.subr.mxu0 0.0
        %1078 = vmatpush1.msra.mxu0 0.0
        %1079 = vmatprep.subr.mxu0 0.0
        %1080 = vmatpush1.msra.mxu0 0.0
        %1081 = vmatprep.subr.mxu0 0.0
        %1082 = vmatpush1.msra.mxu0 0.0
        %1083 = vmatprep.subr.mxu0 0.0
        %1084 = vmatpush1.msra.mxu0 0.0
        %1085 = vmatprep.subr.mxu0 0.0
        %1086 = vmatpush1.msra.mxu0 0.0
        %1087 = vmatprep.subr.mxu0 0.0
        %1088 = vmatpush1.msra.mxu0 0.0
        %1089 = vmatprep.subr.mxu0 0.0
        %1090 = vmatpush1.msra.mxu0 0.0
        %1091 = vmatprep.subr.mxu0 0.0
        %1092 = vmatpush1.msra.mxu0 0.0
        %1093 = vmatprep.subr.mxu0 0.0
        %1094 = vmatpush1.msra.mxu0 0.0
        %1095 = vmatprep.subr.mxu0 0.0
        %1096 = vmatpush1.msra.mxu0 0.0
        %1097 = vmatprep.subr.mxu0 0.0
        %1098 = vmatpush1.msra.mxu0 0.0
        %1099 = vmatprep.subr.mxu0 0.0
        %1100 = vmatpush1.msra.mxu0 0.0
        %1101 = vmatprep.mubr.f32.mxu0 0.0
        %1102 = vmatmul.mubr.f32.gmra.mrb[0].mxu0 %v1019
        %v1103 = vpop.f32.mrb[0].mxu0
        %v1104 = vadd.f32 0.0, %v1103
        %v1105 = vpop.f32.mrb[0].mxu0
        %1106 = vdwg.mxu0
        %v1107 = vadd.f32 %v1016, %v1104
        %s1108 = scalar_lea.vmem %s3, 1
        %v1109 = vld [vmem:[%s1108] sm:$0x1]
        %v1111 = vlaneseq
        %v1112 = vshrl.u32 %v1111, 7
        %v1113 = vsub.s32 0, %v1112
        %v1114 = vrot.slane %v1109, %v1113
        %v1116 = vadd.f32 %v1107, %v1114
        %vm1117 = vcmp.ge.f32.partialorder %v1116, 0.0
        %v1118 = vmul.f32 %v1116, 0.01
        %v1119 = vsel %vm1117, %v1116, %v1118
        %1120 = vst [vmem:[#allocation2 + $0x1] sm:$0xff] %v1119
        %s1121 = scalar_lea.vmem %s2, 512
        %v1122 = vld [vmem:[%s1121] sm:$0xff]
        %v1123 = vld [vmem:[%s1121 + $0x8] sm:$0xff]
        %v1124 = vld [vmem:[%s1121 + $0x10] sm:$0xff]
        %v1125 = vld [vmem:[%s1121 + $0x18] sm:$0xff]
        %v1126 = vld [vmem:[%s1121 + $0x20] sm:$0xff]
        %v1127 = vld [vmem:[%s1121 + $0x28] sm:$0xff]
        %v1128 = vld [vmem:[%s1121 + $0x30] sm:$0xff]
        %v1129 = vld [vmem:[%s1121 + $0x38] sm:$0xff]
        %v1130 = vld [vmem:[%s1121 + $0x40] sm:$0xff]
        %v1131 = vld [vmem:[%s1121 + $0x48] sm:$0xff]
        %v1132 = vld [vmem:[%s1121 + $0x50] sm:$0xff]
        %v1133 = vld [vmem:[%s1121 + $0x58] sm:$0xff]
        %v1134 = vld [vmem:[%s1121 + $0x60] sm:$0xff]
        %v1135 = vld [vmem:[%s1121 + $0x68] sm:$0xff]
        %v1136 = vld [vmem:[%s1121 + $0x70] sm:$0xff]
        %v1137 = vld [vmem:[%s1121 + $0x78] sm:$0xff]
        %v1138 = vld [vmem:[#allocation2] sm:$0xff]
        %s1139 = scalar_lea.vmem %s2, 384
        %v1140 = vld [vmem:[%s1139] sm:$0xff]
        %v1141 = vld [vmem:[%s1139 + $0x8] sm:$0xff]
        %v1142 = vld [vmem:[%s1139 + $0x10] sm:$0xff]
        %v1143 = vld [vmem:[%s1139 + $0x18] sm:$0xff]
        %v1144 = vld [vmem:[%s1139 + $0x20] sm:$0xff]
        %v1145 = vld [vmem:[%s1139 + $0x28] sm:$0xff]
        %v1146 = vld [vmem:[%s1139 + $0x30] sm:$0xff]
        %v1147 = vld [vmem:[%s1139 + $0x38] sm:$0xff]
        %v1148 = vld [vmem:[%s1139 + $0x40] sm:$0xff]
        %v1149 = vld [vmem:[%s1139 + $0x48] sm:$0xff]
        %v1150 = vld [vmem:[%s1139 + $0x50] sm:$0xff]
        %v1151 = vld [vmem:[%s1139 + $0x58] sm:$0xff]
        %v1152 = vld [vmem:[%s1139 + $0x60] sm:$0xff]
        %v1153 = vld [vmem:[%s1139 + $0x68] sm:$0xff]
        %v1154 = vld [vmem:[%s1139 + $0x70] sm:$0xff]
        %v1155 = vld [vmem:[%s1139 + $0x78] sm:$0xff]
        %1156 = vmatprep.subr.mxu0 0.0
        %1157 = vmatpush1.msra.mxu0 %v1140
        %1158 = vmatprep.subr.mxu0 0.0
        %1159 = vmatpush1.msra.mxu0 %v1141
        %1160 = vmatprep.subr.mxu0 0.0
        %1161 = vmatpush1.msra.mxu0 %v1142
        %1162 = vmatprep.subr.mxu0 0.0
        %1163 = vmatpush1.msra.mxu0 %v1143
        %1164 = vmatprep.subr.mxu0 0.0
        %1165 = vmatpush1.msra.mxu0 %v1144
        %1166 = vmatprep.subr.mxu0 0.0
        %1167 = vmatpush1.msra.mxu0 %v1145
        %1168 = vmatprep.subr.mxu0 0.0
        %1169 = vmatpush1.msra.mxu0 %v1146
        %1170 = vmatprep.subr.mxu0 0.0
        %1171 = vmatpush1.msra.mxu0 %v1147
        %1172 = vmatprep.subr.mxu0 0.0
        %1173 = vmatpush1.msra.mxu0 %v1148
        %1174 = vmatprep.subr.mxu0 0.0
        %1175 = vmatpush1.msra.mxu0 %v1149
        %1176 = vmatprep.subr.mxu0 0.0
        %1177 = vmatpush1.msra.mxu0 %v1150
        %1178 = vmatprep.subr.mxu0 0.0
        %1179 = vmatpush1.msra.mxu0 %v1151
        %1180 = vmatprep.subr.mxu0 0.0
        %1181 = vmatpush1.msra.mxu0 %v1152
        %1182 = vmatprep.subr.mxu0 0.0
        %1183 = vmatpush1.msra.mxu0 %v1153
        %1184 = vmatprep.subr.mxu0 0.0
        %1185 = vmatpush1.msra.mxu0 %v1154
        %1186 = vmatprep.subr.mxu0 0.0
        %1187 = vmatpush1.msra.mxu0 %v1155
        %1188 = vmatprep.subr.mxu0 0.0
        %1189 = vmatpush1.msra.mxu0 0.0
        %1190 = vmatprep.subr.mxu0 0.0
        %1191 = vmatpush1.msra.mxu0 0.0
        %1192 = vmatprep.subr.mxu0 0.0
        %1193 = vmatpush1.msra.mxu0 0.0
        %1194 = vmatprep.subr.mxu0 0.0
        %1195 = vmatpush1.msra.mxu0 0.0
        %1196 = vmatprep.subr.mxu0 0.0
        %1197 = vmatpush1.msra.mxu0 0.0
        %1198 = vmatprep.subr.mxu0 0.0
        %1199 = vmatpush1.msra.mxu0 0.0
        %1200 = vmatprep.subr.mxu0 0.0
        %1201 = vmatpush1.msra.mxu0 0.0
        %1202 = vmatprep.subr.mxu0 0.0
        %1203 = vmatpush1.msra.mxu0 0.0
        %1204 = vmatprep.subr.mxu0 0.0
        %1205 = vmatpush1.msra.mxu0 0.0
        %1206 = vmatprep.subr.mxu0 0.0
        %1207 = vmatpush1.msra.mxu0 0.0
        %1208 = vmatprep.subr.mxu0 0.0
        %1209 = vmatpush1.msra.mxu0 0.0
        %1210 = vmatprep.subr.mxu0 0.0
        %1211 = vmatpush1.msra.mxu0 0.0
        %1212 = vmatprep.subr.mxu0 0.0
        %1213 = vmatpush1.msra.mxu0 0.0
        %1214 = vmatprep.subr.mxu0 0.0
        %1215 = vmatpush1.msra.mxu0 0.0
        %1216 = vmatprep.subr.mxu0 0.0
        %1217 = vmatpush1.msra.mxu0 0.0
        %1218 = vmatprep.subr.mxu0 0.0
        %1219 = vmatpush1.msra.mxu0 0.0
        %1220 = vmatprep.mubr.f32.mxu0 0.0
        %1221 = vmatmul.mubr.f32.gmra.mrb[0].mxu0 %v1138
        %v1222 = vpop.f32.mrb[0].mxu0
        %v1223 = vadd.f32 0.0, %v1222
        %v1224 = vpop.f32.mrb[0].mxu0
        %1225 = vdwg.mxu0
        %1226 = vmatprep.subr.mxu0 0.0
        %1227 = vmatpush1.msra.mxu0 %v1122
        %1228 = vmatprep.subr.mxu0 0.0
        %1229 = vmatpush1.msra.mxu0 %v1123
        %1230 = vmatprep.subr.mxu0 0.0
        %1231 = vmatpush1.msra.mxu0 %v1124
        %1232 = vmatprep.subr.mxu0 0.0
        %1233 = vmatpush1.msra.mxu0 %v1125
        %1234 = vmatprep.subr.mxu0 0.0
        %1235 = vmatpush1.msra.mxu0 %v1126
        %1236 = vmatprep.subr.mxu0 0.0
        %1237 = vmatpush1.msra.mxu0 %v1127
        %1238 = vmatprep.subr.mxu0 0.0
        %1239 = vmatpush1.msra.mxu0 %v1128
        %1240 = vmatprep.subr.mxu0 0.0
        %1241 = vmatpush1.msra.mxu0 %v1129
        %1242 = vmatprep.subr.mxu0 0.0
        %1243 = vmatpush1.msra.mxu0 %v1130
        %1244 = vmatprep.subr.mxu0 0.0
        %1245 = vmatpush1.msra.mxu0 %v1131
        %1246 = vmatprep.subr.mxu0 0.0
        %1247 = vmatpush1.msra.mxu0 %v1132
        %1248 = vmatprep.subr.mxu0 0.0
        %1249 = vmatpush1.msra.mxu0 %v1133
        %1250 = vmatprep.subr.mxu0 0.0
        %1251 = vmatpush1.msra.mxu0 %v1134
        %1252 = vmatprep.subr.mxu0 0.0
        %1253 = vmatpush1.msra.mxu0 %v1135
        %1254 = vmatprep.subr.mxu0 0.0
        %1255 = vmatpush1.msra.mxu0 %v1136
        %1256 = vmatprep.subr.mxu0 0.0
        %1257 = vmatpush1.msra.mxu0 %v1137
        %1258 = vmatprep.subr.mxu0 0.0
        %1259 = vmatpush1.msra.mxu0 0.0
        %1260 = vmatprep.subr.mxu0 0.0
        %1261 = vmatpush1.msra.mxu0 0.0
        %1262 = vmatprep.subr.mxu0 0.0
        %1263 = vmatpush1.msra.mxu0 0.0
        %1264 = vmatprep.subr.mxu0 0.0
        %1265 = vmatpush1.msra.mxu0 0.0
        %1266 = vmatprep.subr.mxu0 0.0
        %1267 = vmatpush1.msra.mxu0 0.0
        %1268 = vmatprep.subr.mxu0 0.0
        %1269 = vmatpush1.msra.mxu0 0.0
        %1270 = vmatprep.subr.mxu0 0.0
        %1271 = vmatpush1.msra.mxu0 0.0
        %1272 = vmatprep.subr.mxu0 0.0
        %1273 = vmatpush1.msra.mxu0 0.0
        %1274 = vmatprep.subr.mxu0 0.0
        %1275 = vmatpush1.msra.mxu0 0.0
        %1276 = vmatprep.subr.mxu0 0.0
        %1277 = vmatpush1.msra.mxu0 0.0
        %1278 = vmatprep.subr.mxu0 0.0
        %1279 = vmatpush1.msra.mxu0 0.0
        %1280 = vmatprep.subr.mxu0 0.0
        %1281 = vmatpush1.msra.mxu0 0.0
        %1282 = vmatprep.subr.mxu0 0.0
        %1283 = vmatpush1.msra.mxu0 0.0
        %1284 = vmatprep.subr.mxu0 0.0
        %1285 = vmatpush1.msra.mxu0 0.0
        %1286 = vmatprep.subr.mxu0 0.0
        %1287 = vmatpush1.msra.mxu0 0.0
        %1288 = vmatprep.subr.mxu0 0.0
        %1289 = vmatpush1.msra.mxu0 0.0
        %1290 = vmatprep.mubr.f32.mxu0 0.0
        %1291 = vmatmul.mubr.f32.gmra.mrb[0].mxu0 %v1119
        %v1292 = vpop.f32.mrb[0].mxu0
        %v1293 = vadd.f32 %v1223, %v1292
        %v1294 = vpop.f32.mrb[0].mxu0
        %1295 = vdwg.mxu0
        %v1296 = vld [vmem:[#allocation2 + $0x2] sm:$0xff]
        %s1297 = scalar_lea.vmem %s2, 640
        %v1298 = vld [vmem:[%s1297] sm:$0xff]
        %v1299 = vld [vmem:[%s1297 + $0x8] sm:$0xff]
        %v1300 = vld [vmem:[%s1297 + $0x10] sm:$0xff]
        %v1301 = vld [vmem:[%s1297 + $0x18] sm:$0xff]
        %v1302 = vld [vmem:[%s1297 + $0x20] sm:$0xff]
        %v1303 = vld [vmem:[%s1297 + $0x28] sm:$0xff]
        %v1304 = vld [vmem:[%s1297 + $0x30] sm:$0xff]
        %v1305 = vld [vmem:[%s1297 + $0x38] sm:$0xff]
        %v1306 = vld [vmem:[%s1297 + $0x40] sm:$0xff]
        %v1307 = vld [vmem:[%s1297 + $0x48] sm:$0xff]
        %v1308 = vld [vmem:[%s1297 + $0x50] sm:$0xff]
        %v1309 = vld [vmem:[%s1297 + $0x58] sm:$0xff]
        %v1310 = vld [vmem:[%s1297 + $0x60] sm:$0xff]
        %v1311 = vld [vmem:[%s1297 + $0x68] sm:$0xff]
        %v1312 = vld [vmem:[%s1297 + $0x70] sm:$0xff]
        %v1313 = vld [vmem:[%s1297 + $0x78] sm:$0xff]
        %1314 = vmatprep.subr.mxu0 0.0
        %1315 = vmatpush1.msra.mxu0 %v1298
        %1316 = vmatprep.subr.mxu0 0.0
        %1317 = vmatpush1.msra.mxu0 %v1299
        %1318 = vmatprep.subr.mxu0 0.0
        %1319 = vmatpush1.msra.mxu0 %v1300
        %1320 = vmatprep.subr.mxu0 0.0
        %1321 = vmatpush1.msra.mxu0 %v1301
        %1322 = vmatprep.subr.mxu0 0.0
        %1323 = vmatpush1.msra.mxu0 %v1302
        %1324 = vmatprep.subr.mxu0 0.0
        %1325 = vmatpush1.msra.mxu0 %v1303
        %1326 = vmatprep.subr.mxu0 0.0
        %1327 = vmatpush1.msra.mxu0 %v1304
        %1328 = vmatprep.subr.mxu0 0.0
        %1329 = vmatpush1.msra.mxu0 %v1305
        %1330 = vmatprep.subr.mxu0 0.0
        %1331 = vmatpush1.msra.mxu0 %v1306
        %1332 = vmatprep.subr.mxu0 0.0
        %1333 = vmatpush1.msra.mxu0 %v1307
        %1334 = vmatprep.subr.mxu0 0.0
        %1335 = vmatpush1.msra.mxu0 %v1308
        %1336 = vmatprep.subr.mxu0 0.0
        %1337 = vmatpush1.msra.mxu0 %v1309
        %1338 = vmatprep.subr.mxu0 0.0
        %1339 = vmatpush1.msra.mxu0 %v1310
        %1340 = vmatprep.subr.mxu0 0.0
        %1341 = vmatpush1.msra.mxu0 %v1311
        %1342 = vmatprep.subr.mxu0 0.0
        %1343 = vmatpush1.msra.mxu0 %v1312
        %1344 = vmatprep.subr.mxu0 0.0
        %1345 = vmatpush1.msra.mxu0 %v1313
        %1346 = vmatprep.subr.mxu0 0.0
        %1347 = vmatpush1.msra.mxu0 0.0
        %1348 = vmatprep.subr.mxu0 0.0
        %1349 = vmatpush1.msra.mxu0 0.0
        %1350 = vmatprep.subr.mxu0 0.0
        %1351 = vmatpush1.msra.mxu0 0.0
        %1352 = vmatprep.subr.mxu0 0.0
        %1353 = vmatpush1.msra.mxu0 0.0
        %1354 = vmatprep.subr.mxu0 0.0
        %1355 = vmatpush1.msra.mxu0 0.0
        %1356 = vmatprep.subr.mxu0 0.0
        %1357 = vmatpush1.msra.mxu0 0.0
        %1358 = vmatprep.subr.mxu0 0.0
        %1359 = vmatpush1.msra.mxu0 0.0
        %1360 = vmatprep.subr.mxu0 0.0
        %1361 = vmatpush1.msra.mxu0 0.0
        %1362 = vmatprep.subr.mxu0 0.0
        %1363 = vmatpush1.msra.mxu0 0.0
        %1364 = vmatprep.subr.mxu0 0.0
        %1365 = vmatpush1.msra.mxu0 0.0
        %1366 = vmatprep.subr.mxu0 0.0
        %1367 = vmatpush1.msra.mxu0 0.0
        %1368 = vmatprep.subr.mxu0 0.0
        %1369 = vmatpush1.msra.mxu0 0.0
        %1370 = vmatprep.subr.mxu0 0.0
        %1371 = vmatpush1.msra.mxu0 0.0
        %1372 = vmatprep.subr.mxu0 0.0
        %1373 = vmatpush1.msra.mxu0 0.0
        %1374 = vmatprep.subr.mxu0 0.0
        %1375 = vmatpush1.msra.mxu0 0.0
        %1376 = vmatprep.subr.mxu0 0.0
        %1377 = vmatpush1.msra.mxu0 0.0
        %1378 = vmatprep.mubr.f32.mxu0 0.0
        %1379 = vmatmul.mubr.f32.gmra.mrb[0].mxu0 %v1296
        %v1380 = vpop.f32.mrb[0].mxu0
        %v1381 = vadd.f32 0.0, %v1380
        %v1382 = vpop.f32.mrb[0].mxu0
        %1383 = vdwg.mxu0
        %v1384 = vadd.f32 %v1293, %v1381
        %v1385 = vsub.f32 %v842, %v1384
        %v1386 = vrot.slane %v1385, 4
        %v1387 = vadd.f32 %v1385, %v1386
        %v1388 = vrot.slane %v1387, 2
        %v1389 = vadd.f32 %v1387, %v1388
        %v1390 = vrot.slane %v1389, 1
        %v1391 = vadd.f32 %v1389, %v1390
        %v1392 = vld [vmem:[%s4] sm:$0xff]
        %v1393 = vld [vmem:[%s4 + $0x8] sm:$0xff]
        %v1394 = vld [vmem:[%s4 + $0x10] sm:$0xff]
        %v1395 = vld [vmem:[%s4 + $0x18] sm:$0xff]
        %v1396 = vld [vmem:[%s4 + $0x20] sm:$0xff]
        %v1397 = vld [vmem:[%s4 + $0x28] sm:$0xff]
        %v1398 = vld [vmem:[%s4 + $0x30] sm:$0xff]
        %v1399 = vld [vmem:[%s4 + $0x38] sm:$0xff]
        %v1400 = vld [vmem:[%s4 + $0x40] sm:$0xff]
        %v1401 = vld [vmem:[%s4 + $0x48] sm:$0xff]
        %v1402 = vld [vmem:[%s4 + $0x50] sm:$0xff]
        %v1403 = vld [vmem:[%s4 + $0x58] sm:$0xff]
        %v1404 = vld [vmem:[%s4 + $0x60] sm:$0xff]
        %v1405 = vld [vmem:[%s4 + $0x68] sm:$0xff]
        %v1406 = vld [vmem:[%s4 + $0x70] sm:$0xff]
        %v1407 = vld [vmem:[%s4 + $0x78] sm:$0xff]
        %v1408 = vld [vmem:[%s5] sm:$0x1]
        %1409 = vmatprep.subr.mxu0 0.0
        %1410 = vmatpush1.msra.mxu0 %v1392
        %1411 = vmatprep.subr.mxu0 0.0
        %1412 = vmatpush1.msra.mxu0 %v1393
        %1413 = vmatprep.subr.mxu0 0.0
        %1414 = vmatpush1.msra.mxu0 %v1394
        %1415 = vmatprep.subr.mxu0 0.0
        %1416 = vmatpush1.msra.mxu0 %v1395
        %1417 = vmatprep.subr.mxu0 0.0
        %1418 = vmatpush1.msra.mxu0 %v1396
        %1419 = vmatprep.subr.mxu0 0.0
        %1420 = vmatpush1.msra.mxu0 %v1397
        %1421 = vmatprep.subr.mxu0 0.0
        %1422 = vmatpush1.msra.mxu0 %v1398
        %1423 = vmatprep.subr.mxu0 0.0
        %1424 = vmatpush1.msra.mxu0 %v1399
        %1425 = vmatprep.subr.mxu0 0.0
        %1426 = vmatpush1.msra.mxu0 %v1400
        %1427 = vmatprep.subr.mxu0 0.0
        %1428 = vmatpush1.msra.mxu0 %v1401
        %1429 = vmatprep.subr.mxu0 0.0
        %1430 = vmatpush1.msra.mxu0 %v1402
        %1431 = vmatprep.subr.mxu0 0.0
        %1432 = vmatpush1.msra.mxu0 %v1403
        %1433 = vmatprep.subr.mxu0 0.0
        %1434 = vmatpush1.msra.mxu0 %v1404
        %1435 = vmatprep.subr.mxu0 0.0
        %1436 = vmatpush1.msra.mxu0 %v1405
        %1437 = vmatprep.subr.mxu0 0.0
        %1438 = vmatpush1.msra.mxu0 %v1406
        %1439 = vmatprep.subr.mxu0 0.0
        %1440 = vmatpush1.msra.mxu0 %v1407
        %1441 = vmatprep.subr.mxu0 0.0
        %1442 = vmatpush1.msra.mxu0 0.0
        %1443 = vmatprep.subr.mxu0 0.0
        %1444 = vmatpush1.msra.mxu0 0.0
        %1445 = vmatprep.subr.mxu0 0.0
        %1446 = vmatpush1.msra.mxu0 0.0
        %1447 = vmatprep.subr.mxu0 0.0
        %1448 = vmatpush1.msra.mxu0 0.0
        %1449 = vmatprep.subr.mxu0 0.0
        %1450 = vmatpush1.msra.mxu0 0.0
        %1451 = vmatprep.subr.mxu0 0.0
        %1452 = vmatpush1.msra.mxu0 0.0
        %1453 = vmatprep.subr.mxu0 0.0
        %1454 = vmatpush1.msra.mxu0 0.0
        %1455 = vmatprep.subr.mxu0 0.0
        %1456 = vmatpush1.msra.mxu0 0.0
        %1457 = vmatprep.subr.mxu0 0.0
        %1458 = vmatpush1.msra.mxu0 0.0
        %1459 = vmatprep.subr.mxu0 0.0
        %1460 = vmatpush1.msra.mxu0 0.0
        %1461 = vmatprep.subr.mxu0 0.0
        %1462 = vmatpush1.msra.mxu0 0.0
        %1463 = vmatprep.subr.mxu0 0.0
        %1464 = vmatpush1.msra.mxu0 0.0
        %1465 = vmatprep.subr.mxu0 0.0
        %1466 = vmatpush1.msra.mxu0 0.0
        %1467 = vmatprep.subr.mxu0 0.0
        %1468 = vmatpush1.msra.mxu0 0.0
        %1469 = vmatprep.subr.mxu0 0.0
        %1470 = vmatpush1.msra.mxu0 0.0
        %1471 = vmatprep.subr.mxu0 0.0
        %1472 = vmatpush1.msra.mxu0 0.0
        %1473 = vmatprep.mubr.f32.mxu0 0.0
        %1474 = vmatmul.mubr.f32.gmra.mrb[0].mxu0 %v1391
        %v1475 = vpop.f32.mrb[0].mxu0
        %v1476 = vadd.f32 %v1408, %v1475
        %v1477 = vpop.f32.mrb[0].mxu0
        %1478 = vdwg.mxu0
        %v1479 = vld [vmem:[%s6] sm:$0xff]
        %v1480 = vld [vmem:[%s6 + $0x8] sm:$0xff]
        %v1481 = vld [vmem:[%s6 + $0x10] sm:$0xff]
        %v1482 = vld [vmem:[%s6 + $0x18] sm:$0xff]
        %v1483 = vld [vmem:[%s7] sm:$0x1]
        %vm1484 = vcmask 261120
        %v1486 = vsel %vm1484, %v1476, 0
        %1488 = vmatprep.subr.mxu0 0.0
        %1489 = vmatpush1.msra.mxu0 %v1479
        %1490 = vmatprep.subr.mxu0 0.0
        %1491 = vmatpush1.msra.mxu0 %v1480
        %1492 = vmatprep.subr.mxu0 0.0
        %1493 = vmatpush1.msra.mxu0 %v1481
        %1494 = vmatprep.subr.mxu0 0.0
        %1495 = vmatpush1.msra.mxu0 %v1482
        %1496 = vmatprep.subr.mxu0 0.0
        %1497 = vmatpush1.msra.mxu0 0.0
        %1498 = vmatprep.subr.mxu0 0.0
        %1499 = vmatpush1.msra.mxu0 0.0
        %1500 = vmatprep.subr.mxu0 0.0
        %1501 = vmatpush1.msra.mxu0 0.0
        %1502 = vmatprep.subr.mxu0 0.0
        %1503 = vmatpush1.msra.mxu0 0.0
        %1504 = vmatprep.subr.mxu0 0.0
        %1505 = vmatpush1.msra.mxu0 0.0
        %1506 = vmatprep.subr.mxu0 0.0
        %1507 = vmatpush1.msra.mxu0 0.0
        %1508 = vmatprep.subr.mxu0 0.0
        %1509 = vmatpush1.msra.mxu0 0.0
        %1510 = vmatprep.subr.mxu0 0.0
        %1511 = vmatpush1.msra.mxu0 0.0
        %1512 = vmatprep.subr.mxu0 0.0
        %1513 = vmatpush1.msra.mxu0 0.0
        %1514 = vmatprep.subr.mxu0 0.0
        %1515 = vmatpush1.msra.mxu0 0.0
        %1516 = vmatprep.subr.mxu0 0.0
        %1517 = vmatpush1.msra.mxu0 0.0
        %1518 = vmatprep.subr.mxu0 0.0
        %1519 = vmatpush1.msra.mxu0 0.0
        %1520 = vmatprep.subr.mxu0 0.0
        %1521 = vmatpush1.msra.mxu0 0.0
        %1522 = vmatprep.subr.mxu0 0.0
        %1523 = vmatpush1.msra.mxu0 0.0
        %1524 = vmatprep.subr.mxu0 0.0
        %1525 = vmatpush1.msra.mxu0 0.0
        %1526 = vmatprep.subr.mxu0 0.0
        %1527 = vmatpush1.msra.mxu0 0.0
        %1528 = vmatprep.subr.mxu0 0.0
        %1529 = vmatpush1.msra.mxu0 0.0
        %1530 = vmatprep.subr.mxu0 0.0
        %1531 = vmatpush1.msra.mxu0 0.0
        %1532 = vmatprep.subr.mxu0 0.0
        %1533 = vmatpush1.msra.mxu0 0.0
        %1534 = vmatprep.subr.mxu0 0.0
        %1535 = vmatpush1.msra.mxu0 0.0
        %1536 = vmatprep.subr.mxu0 0.0
        %1537 = vmatpush1.msra.mxu0 0.0
        %1538 = vmatprep.subr.mxu0 0.0
        %1539 = vmatpush1.msra.mxu0 0.0
        %1540 = vmatprep.subr.mxu0 0.0
        %1541 = vmatpush1.msra.mxu0 0.0
        %1542 = vmatprep.subr.mxu0 0.0
        %1543 = vmatpush1.msra.mxu0 0.0
        %1544 = vmatprep.subr.mxu0 0.0
        %1545 = vmatpush1.msra.mxu0 0.0
        %1546 = vmatprep.subr.mxu0 0.0
        %1547 = vmatpush1.msra.mxu0 0.0
        %1548 = vmatprep.subr.mxu0 0.0
        %1549 = vmatpush1.msra.mxu0 0.0
        %1550 = vmatprep.subr.mxu0 0.0
        %1551 = vmatpush1.msra.mxu0 0.0
        %1552 = vmatprep.mubr.f32.mxu0 0.0
        %1553 = vmatmul.mubr.f32.gmra.mrb[0].mxu0 %v1486
        %v1554 = vpop.f32.mrb[0].mxu0
        %v1555 = vadd.f32 %v1483, %v1554
        %v1556 = vpop.f32.mrb[0].mxu0
        %1557 = vdwg.mxu0
        %vm1558 = vcmask 73728
        %1559 = vst.msk [vmem:[%s295] sm:$0x1] %vm1558, %v1555
        %s1560 = sand.u32 %s203, 1
        %s1561 = scalar_lea.sflag [#allocation4], %s1560
        %s1562 = sand.u32 %s203, 1
        %s1563 = scalar_lea.vmem [#allocation3], %s1562
        // Predicated region
        $region53: #{forward.3} parent=51 // pred_check
          %p1564 = pneg %p213
        $region54: #{forward.3} parent=51 // pred_check_branch
          %1566 = sbr.rel (%p1564) target = $region56
        $region55: #{forward.3} parent=51 // pred_region
          %s1568 = ssub.s32 16, 16
          %1569 = vsyncadd %s1561, %s1568
          %s1570 = smul.addr %s22, 16
          %s1571 = scalar_lea.hbm %s8, %s1570
          %s1573 = sshll.u32 %s1563, 4
          %s1574 = int_to_ptr.vmem [resolvable:$true] %s1573
          %1576 = dma.vmem_to_hbm [thread:$0]  %s1574, 16, %s1571, %s1561
        $region56: #{forward.3} parent=51 // pred_fallthru
          _
      $region52: #{forward.3} parent=5 // pred_fallthru
        _
      %p1577 = scmp.le.s32.totalorder 2, %s17
      // Predicated region
      $region57: #{forward.3} parent=5 // pred_check
        %p1578 = pneg %p1577
      $region58: #{forward.3} parent=5 // pred_check_branch
        %1580 = sbr.rel (%p1578) target = $region60
      $region59: #{forward.3} parent=5 // pred_region
        %s1581 = ssub.s32 %s17, 2
        // Predicated region
        $region61: #{forward.3} parent=59 // pred_check
          %p1582 = pneg %p219
        $region62: #{forward.3} parent=59 // pred_check_branch
          %1584 = sbr.rel (%p1582) target = $region64
        $region63: #{forward.3} parent=59 // pred_region
          %s1585 = sand.u32 %s204, 1
          %s1586 = scalar_lea.sflag [#allocation4], %s1585
          %s1587 = sand.u32 %s204, 1
          %s1588 = scalar_lea.vmem [#allocation3], %s1587
          %1589 = dma.done %s1586, 16
        $region64: #{forward.3} parent=59 // pred_fallthru
          _
      $region60: #{forward.3} parent=5 // pred_fallthru
        _
    $region6: #{forward.3} parent=1 // loop_footer
      %s21 = sadd.s32 1, %s17
    $region7: #{forward.3} parent=1 // loop_footer_branch
      %16 = sbr.rel target = $region3
    $region8: #{forward.3} parent=1 // loop_exit
      _
    %1590 = vsyncpa [#allocation4], 1
    %s1591 = scalar_lea.sflag [#allocation4], 1
    %1592 = vsyncpa %s1591, 1

</llo_original>
